<compile_context>
chip_gen: v6e
topology: v6e:2x2x1
jax: 0.10.0
libtpu: 0.0.40
codegen_flags: <defaults>
</compile_context>

<pallas_src>
import functools

import jax
import jax.numpy as jnp
from jax.experimental import pallas as pl
from jax.experimental.pallas import tpu as pltpu


def _repeat_lanes_kernel(x_ref, o_ref, *, scale):
    # x_ref: (tm, L) ; o_ref: (tm, scale * L)
    # Nearest-neighbor repeat along lanes: out[:, q] = x[:, q // scale].
    o_ref[...] = jnp.repeat(x_ref[...], scale, axis=-1)


def _cdiv(a, b):
    return -(-a // b)


def _chip_profile():
    """Best-effort, generation-aware tiling policy.

    step_budget : target (input + output) bytes moved per grid step
    vmem_cap    : ceiling for the scoped-VMEM request
    num_tc      : TensorCores per chip (2 on v7x -> prefer even step counts)
    in_buffers  : pipeline depth requested for the input BlockSpec
    """
    kind = ""
    try:
        kind = jax.devices()[0].device_kind.lower()
    except Exception:
        pass
    if "7" in kind:
        # v7x: 64 MiB VMEM/TC, ~3.2 TB/s HBM, 2 TCs/chip.
        return dict(step_budget=8 << 20, vmem_cap=40 << 20, num_tc=2, in_buffers=3)
    if "v6" in kind:
        # v6e: 128 MiB VMEM, ~1.4 TB/s HBM, 1 TC -> big steps amortize overhead.
        return dict(step_budget=14 << 20, vmem_cap=96 << 20, num_tc=1, in_buffers=2)
    if "v5" in kind or "v4" in kind:
        # v5e: 128 MiB VMEM, ~0.8 TB/s HBM, 1 TC; ~8 MiB steps already amortize.
        return dict(step_budget=8 << 20, vmem_cap=96 << 20, num_tc=1, in_buffers=2)
    # Unknown backend / interpret mode: conservative (v7x-safe) defaults.
    return dict(step_budget=8 << 20, vmem_cap=40 << 20, num_tc=1, in_buffers=2)


def _pick_lane_width(total_elems: int, w: int) -> int:
    # Prefer a lane width that is a multiple of 128 (dense vld/vst, efficient
    # DMA).  512 lanes = 4 full vregs; try other 128-multiples next.
    for cand in (512, 1024, 2048, 384, 256, 128):
        if total_elems % cand == 0:
            return cand
    # Caller pads the flat array to a 128-multiple when this is not aligned.
    return w


def _pick_row_tile(num_rows: int, lane_width: int, scale: int,
                   dtype_bytes: int, sublane: int, step_budget: int) -> int:
    per_row_bytes = lane_width * (1 + scale) * dtype_bytes
    tm = (step_budget // per_row_bytes) // sublane * sublane
    tm = max(tm, sublane)
    return min(tm, num_rows)


def _even_grid_tm(num_rows: int, tm: int, sublane: int) -> int:
    """Shrink tm slightly (balanced) so the 1-D grid step count is even (>=2)."""
    steps = _cdiv(num_rows, tm)
    if steps >= 2 and steps % 2 == 0:
        return tm
    cand = _cdiv(_cdiv(num_rows, steps + 1), sublane) * sublane
    cand = max(cand, sublane)
    if cand < num_rows and _cdiv(num_rows, cand) % 2 == 0:
        return cand
    return tm


def anisotropic_upsample_2d(x, scale_factor: int, *, force_pallas: bool = False):
    """Pallas TPU implementation of AnisotropicUpsample2D.forward.

    x: (N, C, D, W)  ->  (N, C, D, scale_factor * W)   (nearest along W only)
    """
    # TODO(synk): non-integer scale_factor (which nn.Upsample accepts) has no
    # clean integer-repeat formulation; only integer scale factors supported.
    S = int(scale_factor)
    assert S >= 1 and S == scale_factor, "integer scale_factor required"
    N, C, D, W = x.shape
    if S == 1:
        return x

    T = N * C * D * W                                   # flat element count
    dtype_bytes = jnp.dtype(x.dtype).itemsize
    sublane = {4: 8, 2: 16, 1: 32}.get(dtype_bytes, 8)  # packed-sublane rows

    # Tiny inputs: kernel launch + DMA setup dwarfs the streaming work.
    if not force_pallas and (1 + S) * T * dtype_bytes < (1 << 20):
        return jnp.repeat(x, S, axis=-1)

    prof = _chip_profile()

    # Lane-dense fold of the flat-repeat identity.
    L = _pick_lane_width(T, W)
    pad = 0
    if L % 128 != 0:
        # Odd flat size: pad to a 128-multiple so stores stay unmasked and
        # lane-dense, then slice the flat output back down.
        pad = (-T) % 128
        L = _pick_lane_width(T + pad, W)
    Tp = T + pad
    R = Tp // L                                          # folded row count

    tm = _pick_row_tile(R, L, S, dtype_bytes, sublane, prof["step_budget"])
    if prof["num_tc"] >= 2 and R >= 2 * sublane:
        tm = _even_grid_tm(R, tm, sublane)               # megacore-friendly grid
    grid_r = _cdiv(R, tm)                                # ragged tail is clipped

    # Scoped-VMEM request: actual multi-buffered footprint + slack, per-gen cap.
    in_buffers = prof["in_buffers"]
    vmem_needed = (in_buffers * tm * L + 2 * tm * S * L) * dtype_bytes
    vmem_limit = int(min(prof["vmem_cap"], max(vmem_needed + (2 << 20), 16 << 20)))

    x_flat = x.reshape(-1)
    if pad:
        x_flat = jnp.pad(x_flat, (0, pad))
    x2 = x_flat.reshape(R, L)                            # row-major re-view

    def _call(deep_buffering: bool):
        in_spec = pl.BlockSpec((tm, L), lambda i: (i, 0))
        if deep_buffering:
            in_spec = pl.BlockSpec((tm, L), lambda i: (i, 0),
                                   pipeline_mode=pl.Buffered(in_buffers))
        return pl.pallas_call(
            functools.partial(_repeat_lanes_kernel, scale=S),
            out_shape=jax.ShapeDtypeStruct((R, S * L), x.dtype),
            grid=(grid_r,),
            in_specs=[in_spec],
            out_specs=pl.BlockSpec((tm, S * L), lambda i: (i, 0)),
            compiler_params=pltpu.CompilerParams(
                dimension_semantics=("parallel",),
                vmem_limit_bytes=vmem_limit,
            ),
            # Pure streaming op: advisory cost for XLA's scheduler.
            cost_estimate=pl.CostEstimate(
                flops=0,
                transcendentals=0,
                bytes_accessed=Tp * (1 + S) * dtype_bytes,
            ),
        )(x2)

    if in_buffers > 2:
        # Deep buffering is a v7x-only few-% win; never let it block execution.
        try:
            out2 = _call(True)
        except Exception:
            out2 = _call(False)
    else:
        out2 = _call(False)

    out_flat = out2.reshape(-1)
    if pad:
        out_flat = out_flat[: S * T]
    return out_flat.reshape(N, C, D, S * W)


def _reference(x, scale_factor: int):
    # Pure-JAX reference: nearest-neighbor repeat along the last axis.
    return jnp.repeat(x, scale_factor, axis=-1)


if __name__ == "__main__":
    key = jax.random.PRNGKey(0)
    k1, k2, k3 = jax.random.split(key, 3)

    # 1) Primary module-implied shape; force the Pallas path so the kernel runs.
    N, C, D, W, S = 2, 4, 16, 16, 2
    x = jax.random.normal(k1, (N, C, D, W), dtype=jnp.float32)
    out = jax.block_until_ready(anisotropic_upsample_2d(x, S, force_pallas=True))
    assert out.shape == (N, C, D, S * W), out.shape
    assert out.dtype == x.dtype
    assert jnp.array_equal(out, _reference(x, S)), "mismatch vs reference (primary)"

    # 1b) Same shape through the auto path (small-input fast path).
    out_auto = jax.block_until_ready(anisotropic_upsample_2d(x, S))
    assert jnp.array_equal(out_auto, _reference(x, S)), "mismatch (fast path)"

    # 2) Larger input: auto path takes the Pallas kernel (lane-folded rows).
    x2 = jax.random.normal(k2, (4, 8, 64, 64), dtype=jnp.float32)
    out2 = jax.block_until_ready(anisotropic_upsample_2d(x2, 2))
    assert out2.shape == (4, 8, 64, 128)
    assert jnp.array_equal(out2, _reference(x2, 2)), "mismatch vs reference (large)"

    # 3) Odd flat size exercises the lane-dense pad path (W not 128-friendly).
    x3 = jax.random.normal(k3, (2, 4, 9, 15), dtype=jnp.float32)
    out3 = jax.block_until_ready(anisotropic_upsample_2d(x3, 3, force_pallas=True))
    assert out3.shape == (2, 4, 9, 45)
    assert jnp.array_equal(out3, _reference(x3, 3)), "mismatch vs reference (pad path)"

    print("KERNEL_OK")
</pallas_src>

<mosaic_0001>
module attributes {stable_mosaic.version = 11 : i64} {
  func.func @_repeat_lanes_kernel(%arg0: i32, %arg1: memref<4x512xf32, #tpu.memory_space<vmem>>, %arg2: memref<4x1024xf32, #tpu.memory_space<vmem>>) attributes {dimension_semantics = [#tpu.dimension_semantics<parallel>], iteration_bounds = array<i64: 1>, scalar_prefetch = 0 : i64, scratch_operands = 0 : i64, tpu.core_type = #tpu.core_type<tc>, window_params = [{transform_indices = @transform_0, window_bounds = array<i64: 4, 512>}, {transform_indices = @transform_1, window_bounds = array<i64: 4, 1024>}]} {
    %c0 = arith.constant 0 : index
    %c0_0 = arith.constant 0 : index
    %0 = vector.load %arg1[%c0, %c0_0] : memref<4x512xf32, #tpu.memory_space<vmem>>, vector<4x512xf32>
    %1 = vector.shape_cast %0 : vector<4x512xf32> to vector<4x512x1xf32>
    %2 = vector.broadcast %1 : vector<4x512x1xf32> to vector<4x512x2xf32>
    %3 = vector.shape_cast %2 : vector<4x512x2xf32> to vector<4x1024xf32>
    %c0_1 = arith.constant 0 : index
    %c0_2 = arith.constant 0 : index
    %4 = vector.load %arg2[%c0_1, %c0_2] : memref<4x1024xf32, #tpu.memory_space<vmem>>, vector<4x1024xf32>
    tpu.vector_store %arg2[%c0_1, %c0_2], %3 {strides = array<i32>} : memref<4x1024xf32, #tpu.memory_space<vmem>>, vector<4x1024xf32>,
    return
  }
  func.func @transform_0(%arg0: i32) -> (i32, i32) {
    %c0_i32 = arith.constant 0 : i32
    %c0_i32_0 = arith.constant 0 : i32
    return %arg0, %c0_i32 : i32, i32
  }
  func.func @transform_1(%arg0: i32) -> (i32, i32) {
    %c0_i32 = arith.constant 0 : i32
    %c0_i32_0 = arith.constant 0 : i32
    return %arg0, %c0_i32 : i32, i32
  }
}

</mosaic_0001>

<llo_original>
// kernel: tpu_custom_call.1
$region0: #{tpu_custom_call.1}
  #allocation0 [shape = 'u32[]', space=smem, size = 0x4, offset = 0x4, fixed_abs, tag = 'smem constant byte address 0x4 - core index']
  #allocation1 [shape = 'u32[144,128]{1,0:T(1,128)}', space=vmem, size = 0x12000, scoped, tag = 'internal scratch']
  %s0 = inlined_call_operand.hbm [shape: f32[4,512], index: 0, kind: input, shape index: {}]
  %s1 = inlined_call_operand.hbm [shape: f32[4,1024], index: 1, kind: output, shape index: {}]
  %s2 = sld [smem:[#allocation0]]
  $region18: #{tpu_custom_call.1} parent=0
    _
  %s4 = ssub.s32 1, %s2
  %s5 = scalar_select 0, %s4, %s2
  $region1: #{tpu_custom_call.1} parent=0
    #allocation2 [shape = 'u8[8192]{0}', space=vmem, size = 0x2000, scoped, tag = 'input window, operand 0, single buffered']
    #allocation3 [shape = 's32[1]{0}', space=sflag, size = 0x4, scoped, tag = 'scoped memory for tpu_custom_call.1']
    #allocation4 [shape = 's32[1]{0}', space=sflag, size = 0x4, scoped, tag = 'scoped memory for tpu_custom_call.1']
    #allocation5 [shape = 'u8[16384]{0}', space=vmem, size = 0x4000, scoped, tag = 'output window, operand 0, single buffered']
    %6 = vsyncpa [#allocation3], 0
    %7 = vsyncpa [#allocation4], 0
    // Predicated region
    $region2: #{tpu_custom_call.1} parent=1 // pred_check
      _
    $region3: #{tpu_custom_call.1} parent=1 // pred_check_branch
      %9 = sbr.rel (0) target = $region5
    $region4: #{tpu_custom_call.1} parent=1 // pred_region
      %s11 = ssub.s32 256, 256
      %12 = vsyncadd [#allocation3], %s11
      %s14 = sshll.u32 [#allocation2], 4
      %s15 = int_to_ptr.vmem [resolvable:$true] %s14
      %17 = dma.hbm_to_vmem [thread:$0]  %s0, 256, %s15, [#allocation3]
    $region5: #{tpu_custom_call.1} parent=1 // pred_fallthru
      _
    // Predicated region
    $region6: #{tpu_custom_call.1} parent=1 // pred_check
      _
    $region7: #{tpu_custom_call.1} parent=1 // pred_check_branch
      %19 = sbr.rel (0) target = $region9
    $region8: #{tpu_custom_call.1} parent=1 // pred_region
      %20 = dma.done [#allocation3], 256
    $region9: #{tpu_custom_call.1} parent=1 // pred_fallthru
      _
    %v21 = vld [vmem:[#allocation2] sm:$0xff]
    %v22 = vld [vmem:[#allocation2 + $0x8] sm:$0xff]
    %v25 = vcombine.high %v21, %v21
    %v26 = vcombine.high %v22, %v22
    %v29 = vlaneseq
    %v30 = vshrl.u32 %v29, 7
    %v31 = vsub.s32 0, %v30
    %v32 = vrot.slane %v21, %v31
    %34 = vbcast.lane.b32.xlu0 %v32, 256
    %v35 = vpop.permute.xlu0 %34
    %s37 = sor.u32 256, 8
    %38 = vbcast.lane.b32.xlu0 %v32, %s37
    %v39 = vpop.permute.xlu0 %38
    %s41 = sor.u32 256, 16
    %42 = vbcast.lane.b32.xlu0 %v32, %s41
    %v43 = vpop.permute.xlu0 %42
    %s45 = sor.u32 256, 24
    %46 = vbcast.lane.b32.xlu0 %v32, %s45
    %v47 = vpop.permute.xlu0 %46
    %s49 = sor.u32 256, 32
    %50 = vbcast.lane.b32.xlu0 %v32, %s49
    %v51 = vpop.permute.xlu0 %50
    %s53 = sor.u32 256, 40
    %54 = vbcast.lane.b32.xlu0 %v32, %s53
    %v55 = vpop.permute.xlu0 %54
    %s57 = sor.u32 256, 48
    %58 = vbcast.lane.b32.xlu0 %v32, %s57
    %v59 = vpop.permute.xlu0 %58
    %s61 = sor.u32 256, 56
    %62 = vbcast.lane.b32.xlu0 %v32, %s61
    %v63 = vpop.permute.xlu0 %62
    %s65 = sor.u32 256, 64
    %66 = vbcast.lane.b32.xlu0 %v32, %s65
    %v67 = vpop.permute.xlu0 %66
    %s69 = sor.u32 256, 72
    %70 = vbcast.lane.b32.xlu0 %v32, %s69
    %v71 = vpop.permute.xlu0 %70
    %s73 = sor.u32 256, 80
    %74 = vbcast.lane.b32.xlu0 %v32, %s73
    %v75 = vpop.permute.xlu0 %74
    %s77 = sor.u32 256, 88
    %78 = vbcast.lane.b32.xlu0 %v32, %s77
    %v79 = vpop.permute.xlu0 %78
    %s81 = sor.u32 256, 96
    %82 = vbcast.lane.b32.xlu0 %v32, %s81
    %v83 = vpop.permute.xlu0 %82
    %s85 = sor.u32 256, 104
    %86 = vbcast.lane.b32.xlu0 %v32, %s85
    %v87 = vpop.permute.xlu0 %86
    %s89 = sor.u32 256, 112
    %90 = vbcast.lane.b32.xlu0 %v32, %s89
    %v91 = vpop.permute.xlu0 %90
    %s93 = sor.u32 256, 120
    %94 = vbcast.lane.b32.xlu0 %v32, %s93
    %v95 = vpop.permute.xlu0 %94
    %v96 = vlaneseq
    %v97 = vshrl.u32 %v96, 7
    %v98 = vsub.s32 0, %v97
    %v99 = vrot.slane %v25, %v98
    %101 = vbcast.lane.b32.xlu0 %v99, 256
    %v102 = vpop.permute.xlu0 %101
    %s104 = sor.u32 256, 8
    %105 = vbcast.lane.b32.xlu0 %v99, %s104
    %v106 = vpop.permute.xlu0 %105
    %s108 = sor.u32 256, 16
    %109 = vbcast.lane.b32.xlu0 %v99, %s108
    %v110 = vpop.permute.xlu0 %109
    %s112 = sor.u32 256, 24
    %113 = vbcast.lane.b32.xlu0 %v99, %s112
    %v114 = vpop.permute.xlu0 %113
    %s116 = sor.u32 256, 32
    %117 = vbcast.lane.b32.xlu0 %v99, %s116
    %v118 = vpop.permute.xlu0 %117
    %s120 = sor.u32 256, 40
    %121 = vbcast.lane.b32.xlu0 %v99, %s120
    %v122 = vpop.permute.xlu0 %121
    %s124 = sor.u32 256, 48
    %125 = vbcast.lane.b32.xlu0 %v99, %s124
    %v126 = vpop.permute.xlu0 %125
    %s128 = sor.u32 256, 56
    %129 = vbcast.lane.b32.xlu0 %v99, %s128
    %v130 = vpop.permute.xlu0 %129
    %s132 = sor.u32 256, 64
    %133 = vbcast.lane.b32.xlu0 %v99, %s132
    %v134 = vpop.permute.xlu0 %133
    %s136 = sor.u32 256, 72
    %137 = vbcast.lane.b32.xlu0 %v99, %s136
    %v138 = vpop.permute.xlu0 %137
    %s140 = sor.u32 256, 80
    %141 = vbcast.lane.b32.xlu0 %v99, %s140
    %v142 = vpop.permute.xlu0 %141
    %s144 = sor.u32 256, 88
    %145 = vbcast.lane.b32.xlu0 %v99, %s144
    %v146 = vpop.permute.xlu0 %145
    %s148 = sor.u32 256, 96
    %149 = vbcast.lane.b32.xlu0 %v99, %s148
    %v150 = vpop.permute.xlu0 %149
    %s152 = sor.u32 256, 104
    %153 = vbcast.lane.b32.xlu0 %v99, %s152
    %v154 = vpop.permute.xlu0 %153
    %s156 = sor.u32 256, 112
    %157 = vbcast.lane.b32.xlu0 %v99, %s156
    %v158 = vpop.permute.xlu0 %157
    %s160 = sor.u32 256, 120
    %161 = vbcast.lane.b32.xlu0 %v99, %s160
    %v162 = vpop.permute.xlu0 %161
    %v163 = vlaneseq
    %v164 = vshrl.u32 %v163, 7
    %v165 = vsub.s32 0, %v164
    %v166 = vrot.slane %v22, %v165
    %168 = vbcast.lane.b32.xlu0 %v166, 256
    %v169 = vpop.permute.xlu0 %168
    %s171 = sor.u32 256, 8
    %172 = vbcast.lane.b32.xlu0 %v166, %s171
    %v173 = vpop.permute.xlu0 %172
    %s175 = sor.u32 256, 16
    %176 = vbcast.lane.b32.xlu0 %v166, %s175
    %v177 = vpop.permute.xlu0 %176
    %s179 = sor.u32 256, 24
    %180 = vbcast.lane.b32.xlu0 %v166, %s179
    %v181 = vpop.permute.xlu0 %180
    %s183 = sor.u32 256, 32
    %184 = vbcast.lane.b32.xlu0 %v166, %s183
    %v185 = vpop.permute.xlu0 %184
    %s187 = sor.u32 256, 40
    %188 = vbcast.lane.b32.xlu0 %v166, %s187
    %v189 = vpop.permute.xlu0 %188
    %s191 = sor.u32 256, 48
    %192 = vbcast.lane.b32.xlu0 %v166, %s191
    %v193 = vpop.permute.xlu0 %192
    %s195 = sor.u32 256, 56
    %196 = vbcast.lane.b32.xlu0 %v166, %s195
    %v197 = vpop.permute.xlu0 %196
    %s199 = sor.u32 256, 64
    %200 = vbcast.lane.b32.xlu0 %v166, %s199
    %v201 = vpop.permute.xlu0 %200
    %s203 = sor.u32 256, 72
    %204 = vbcast.lane.b32.xlu0 %v166, %s203
    %v205 = vpop.permute.xlu0 %204
    %s207 = sor.u32 256, 80
    %208 = vbcast.lane.b32.xlu0 %v166, %s207
    %v209 = vpop.permute.xlu0 %208
    %s211 = sor.u32 256, 88
    %212 = vbcast.lane.b32.xlu0 %v166, %s211
    %v213 = vpop.permute.xlu0 %212
    %s215 = sor.u32 256, 96
    %216 = vbcast.lane.b32.xlu0 %v166, %s215
    %v217 = vpop.permute.xlu0 %216
    %s219 = sor.u32 256, 104
    %220 = vbcast.lane.b32.xlu0 %v166, %s219
    %v221 = vpop.permute.xlu0 %220
    %s223 = sor.u32 256, 112
    %224 = vbcast.lane.b32.xlu0 %v166, %s223
    %v225 = vpop.permute.xlu0 %224
    %s227 = sor.u32 256, 120
    %228 = vbcast.lane.b32.xlu0 %v166, %s227
    %v229 = vpop.permute.xlu0 %228
    %v230 = vlaneseq
    %v231 = vshrl.u32 %v230, 7
    %v232 = vsub.s32 0, %v231
    %v233 = vrot.slane %v26, %v232
    %235 = vbcast.lane.b32.xlu0 %v233, 256
    %v236 = vpop.permute.xlu0 %235
    %s238 = sor.u32 256, 8
    %239 = vbcast.lane.b32.xlu0 %v233, %s238
    %v240 = vpop.permute.xlu0 %239
    %s242 = sor.u32 256, 16
    %243 = vbcast.lane.b32.xlu0 %v233, %s242
    %v244 = vpop.permute.xlu0 %243
    %s246 = sor.u32 256, 24
    %247 = vbcast.lane.b32.xlu0 %v233, %s246
    %v248 = vpop.permute.xlu0 %247
    %s250 = sor.u32 256, 32
    %251 = vbcast.lane.b32.xlu0 %v233, %s250
    %v252 = vpop.permute.xlu0 %251
    %s254 = sor.u32 256, 40
    %255 = vbcast.lane.b32.xlu0 %v233, %s254
    %v256 = vpop.permute.xlu0 %255
    %s258 = sor.u32 256, 48
    %259 = vbcast.lane.b32.xlu0 %v233, %s258
    %v260 = vpop.permute.xlu0 %259
    %s262 = sor.u32 256, 56
    %263 = vbcast.lane.b32.xlu0 %v233, %s262
    %v264 = vpop.permute.xlu0 %263
    %s266 = sor.u32 256, 64
    %267 = vbcast.lane.b32.xlu0 %v233, %s266
    %v268 = vpop.permute.xlu0 %267
    %s270 = sor.u32 256, 72
    %271 = vbcast.lane.b32.xlu0 %v233, %s270
    %v272 = vpop.permute.xlu0 %271
    %s274 = sor.u32 256, 80
    %275 = vbcast.lane.b32.xlu0 %v233, %s274
    %v276 = vpop.permute.xlu0 %275
    %s278 = sor.u32 256, 88
    %279 = vbcast.lane.b32.xlu0 %v233, %s278
    %v280 = vpop.permute.xlu0 %279
    %s282 = sor.u32 256, 96
    %283 = vbcast.lane.b32.xlu0 %v233, %s282
    %v284 = vpop.permute.xlu0 %283
    %s286 = sor.u32 256, 104
    %287 = vbcast.lane.b32.xlu0 %v233, %s286
    %v288 = vpop.permute.xlu0 %287
    %s290 = sor.u32 256, 112
    %291 = vbcast.lane.b32.xlu0 %v233, %s290
    %v292 = vpop.permute.xlu0 %291
    %s294 = sor.u32 256, 120
    %295 = vbcast.lane.b32.xlu0 %v233, %s294
    %v296 = vpop.permute.xlu0 %295
    %v297 = vlaneseq
    %v298 = vshrl.u32 %v297, 7
    %v299 = vsub.s32 1, %v298
    %v300 = vrot.slane %v21, %v299
    %302 = vbcast.lane.b32.xlu0 %v300, 256
    %v303 = vpop.permute.xlu0 %302
    %s305 = sor.u32 256, 8
    %306 = vbcast.lane.b32.xlu0 %v300, %s305
    %v307 = vpop.permute.xlu0 %306
    %s309 = sor.u32 256, 16
    %310 = vbcast.lane.b32.xlu0 %v300, %s309
    %v311 = vpop.permute.xlu0 %310
    %s313 = sor.u32 256, 24
    %314 = vbcast.lane.b32.xlu0 %v300, %s313
    %v315 = vpop.permute.xlu0 %314
    %s317 = sor.u32 256, 32
    %318 = vbcast.lane.b32.xlu0 %v300, %s317
    %v319 = vpop.permute.xlu0 %318
    %s321 = sor.u32 256, 40
    %322 = vbcast.lane.b32.xlu0 %v300, %s321
    %v323 = vpop.permute.xlu0 %322
    %s325 = sor.u32 256, 48
    %326 = vbcast.lane.b32.xlu0 %v300, %s325
    %v327 = vpop.permute.xlu0 %326
    %s329 = sor.u32 256, 56
    %330 = vbcast.lane.b32.xlu0 %v300, %s329
    %v331 = vpop.permute.xlu0 %330
    %s333 = sor.u32 256, 64
    %334 = vbcast.lane.b32.xlu0 %v300, %s333
    %v335 = vpop.permute.xlu0 %334
    %s337 = sor.u32 256, 72
    %338 = vbcast.lane.b32.xlu0 %v300, %s337
    %v339 = vpop.permute.xlu0 %338
    %s341 = sor.u32 256, 80
    %342 = vbcast.lane.b32.xlu0 %v300, %s341
    %v343 = vpop.permute.xlu0 %342
    %s345 = sor.u32 256, 88
    %346 = vbcast.lane.b32.xlu0 %v300, %s345
    %v347 = vpop.permute.xlu0 %346
    %s349 = sor.u32 256, 96
    %350 = vbcast.lane.b32.xlu0 %v300, %s349
    %v351 = vpop.permute.xlu0 %350
    %s353 = sor.u32 256, 104
    %354 = vbcast.lane.b32.xlu0 %v300, %s353
    %v355 = vpop.permute.xlu0 %354
    %s357 = sor.u32 256, 112
    %358 = vbcast.lane.b32.xlu0 %v300, %s357
    %v359 = vpop.permute.xlu0 %358
    %s361 = sor.u32 256, 120
    %362 = vbcast.lane.b32.xlu0 %v300, %s361
    %v363 = vpop.permute.xlu0 %362
    %v364 = vlaneseq
    %v365 = vshrl.u32 %v364, 7
    %v366 = vsub.s32 1, %v365
    %v367 = vrot.slane %v25, %v366
    %369 = vbcast.lane.b32.xlu0 %v367, 256
    %v370 = vpop.permute.xlu0 %369
    %s372 = sor.u32 256, 8
    %373 = vbcast.lane.b32.xlu0 %v367, %s372
    %v374 = vpop.permute.xlu0 %373
    %s376 = sor.u32 256, 16
    %377 = vbcast.lane.b32.xlu0 %v367, %s376
    %v378 = vpop.permute.xlu0 %377
    %s380 = sor.u32 256, 24
    %381 = vbcast.lane.b32.xlu0 %v367, %s380
    %v382 = vpop.permute.xlu0 %381
    %s384 = sor.u32 256, 32
    %385 = vbcast.lane.b32.xlu0 %v367, %s384
    %v386 = vpop.permute.xlu0 %385
    %s388 = sor.u32 256, 40
    %389 = vbcast.lane.b32.xlu0 %v367, %s388
    %v390 = vpop.permute.xlu0 %389
    %s392 = sor.u32 256, 48
    %393 = vbcast.lane.b32.xlu0 %v367, %s392
    %v394 = vpop.permute.xlu0 %393
    %s396 = sor.u32 256, 56
    %397 = vbcast.lane.b32.xlu0 %v367, %s396
    %v398 = vpop.permute.xlu0 %397
    %s400 = sor.u32 256, 64
    %401 = vbcast.lane.b32.xlu0 %v367, %s400
    %v402 = vpop.permute.xlu0 %401
    %s404 = sor.u32 256, 72
    %405 = vbcast.lane.b32.xlu0 %v367, %s404
    %v406 = vpop.permute.xlu0 %405
    %s408 = sor.u32 256, 80
    %409 = vbcast.lane.b32.xlu0 %v367, %s408
    %v410 = vpop.permute.xlu0 %409
    %s412 = sor.u32 256, 88
    %413 = vbcast.lane.b32.xlu0 %v367, %s412
    %v414 = vpop.permute.xlu0 %413
    %s416 = sor.u32 256, 96
    %417 = vbcast.lane.b32.xlu0 %v367, %s416
    %v418 = vpop.permute.xlu0 %417
    %s420 = sor.u32 256, 104
    %421 = vbcast.lane.b32.xlu0 %v367, %s420
    %v422 = vpop.permute.xlu0 %421
    %s424 = sor.u32 256, 112
    %425 = vbcast.lane.b32.xlu0 %v367, %s424
    %v426 = vpop.permute.xlu0 %425
    %s428 = sor.u32 256, 120
    %429 = vbcast.lane.b32.xlu0 %v367, %s428
    %v430 = vpop.permute.xlu0 %429
    %v431 = vlaneseq
    %v432 = vshrl.u32 %v431, 7
    %v433 = vsub.s32 1, %v432
    %v434 = vrot.slane %v22, %v433
    %436 = vbcast.lane.b32.xlu0 %v434, 256
    %v437 = vpop.permute.xlu0 %436
    %s439 = sor.u32 256, 8
    %440 = vbcast.lane.b32.xlu0 %v434, %s439
    %v441 = vpop.permute.xlu0 %440
    %s443 = sor.u32 256, 16
    %444 = vbcast.lane.b32.xlu0 %v434, %s443
    %v445 = vpop.permute.xlu0 %444
    %s447 = sor.u32 256, 24
    %448 = vbcast.lane.b32.xlu0 %v434, %s447
    %v449 = vpop.permute.xlu0 %448
    %s451 = sor.u32 256, 32
    %452 = vbcast.lane.b32.xlu0 %v434, %s451
    %v453 = vpop.permute.xlu0 %452
    %s455 = sor.u32 256, 40
    %456 = vbcast.lane.b32.xlu0 %v434, %s455
    %v457 = vpop.permute.xlu0 %456
    %s459 = sor.u32 256, 48
    %460 = vbcast.lane.b32.xlu0 %v434, %s459
    %v461 = vpop.permute.xlu0 %460
    %s463 = sor.u32 256, 56
    %464 = vbcast.lane.b32.xlu0 %v434, %s463
    %v465 = vpop.permute.xlu0 %464
    %s467 = sor.u32 256, 64
    %468 = vbcast.lane.b32.xlu0 %v434, %s467
    %v469 = vpop.permute.xlu0 %468
    %s471 = sor.u32 256, 72
    %472 = vbcast.lane.b32.xlu0 %v434, %s471
    %v473 = vpop.permute.xlu0 %472
    %s475 = sor.u32 256, 80
    %476 = vbcast.lane.b32.xlu0 %v434, %s475
    %v477 = vpop.permute.xlu0 %476
    %s479 = sor.u32 256, 88
    %480 = vbcast.lane.b32.xlu0 %v434, %s479
    %v481 = vpop.permute.xlu0 %480
    %s483 = sor.u32 256, 96
    %484 = vbcast.lane.b32.xlu0 %v434, %s483
    %v485 = vpop.permute.xlu0 %484
    %s487 = sor.u32 256, 104
    %488 = vbcast.lane.b32.xlu0 %v434, %s487
    %v489 = vpop.permute.xlu0 %488
    %s491 = sor.u32 256, 112
    %492 = vbcast.lane.b32.xlu0 %v434, %s491
    %v493 = vpop.permute.xlu0 %492
    %s495 = sor.u32 256, 120
    %496 = vbcast.lane.b32.xlu0 %v434, %s495
    %v497 = vpop.permute.xlu0 %496
    %v498 = vlaneseq
    %v499 = vshrl.u32 %v498, 7
    %v500 = vsub.s32 1, %v499
    %v501 = vrot.slane %v26, %v500
    %503 = vbcast.lane.b32.xlu0 %v501, 256
    %v504 = vpop.permute.xlu0 %503
    %s506 = sor.u32 256, 8
    %507 = vbcast.lane.b32.xlu0 %v501, %s506
    %v508 = vpop.permute.xlu0 %507
    %s510 = sor.u32 256, 16
    %511 = vbcast.lane.b32.xlu0 %v501, %s510
    %v512 = vpop.permute.xlu0 %511
    %s514 = sor.u32 256, 24
    %515 = vbcast.lane.b32.xlu0 %v501, %s514
    %v516 = vpop.permute.xlu0 %515
    %s518 = sor.u32 256, 32
    %519 = vbcast.lane.b32.xlu0 %v501, %s518
    %v520 = vpop.permute.xlu0 %519
    %s522 = sor.u32 256, 40
    %523 = vbcast.lane.b32.xlu0 %v501, %s522
    %v524 = vpop.permute.xlu0 %523
    %s526 = sor.u32 256, 48
    %527 = vbcast.lane.b32.xlu0 %v501, %s526
    %v528 = vpop.permute.xlu0 %527
    %s530 = sor.u32 256, 56
    %531 = vbcast.lane.b32.xlu0 %v501, %s530
    %v532 = vpop.permute.xlu0 %531
    %s534 = sor.u32 256, 64
    %535 = vbcast.lane.b32.xlu0 %v501, %s534
    %v536 = vpop.permute.xlu0 %535
    %s538 = sor.u32 256, 72
    %539 = vbcast.lane.b32.xlu0 %v501, %s538
    %v540 = vpop.permute.xlu0 %539
    %s542 = sor.u32 256, 80
    %543 = vbcast.lane.b32.xlu0 %v501, %s542
    %v544 = vpop.permute.xlu0 %543
    %s546 = sor.u32 256, 88
    %547 = vbcast.lane.b32.xlu0 %v501, %s546
    %v548 = vpop.permute.xlu0 %547
    %s550 = sor.u32 256, 96
    %551 = vbcast.lane.b32.xlu0 %v501, %s550
    %v552 = vpop.permute.xlu0 %551
    %s554 = sor.u32 256, 104
    %555 = vbcast.lane.b32.xlu0 %v501, %s554
    %v556 = vpop.permute.xlu0 %555
    %s558 = sor.u32 256, 112
    %559 = vbcast.lane.b32.xlu0 %v501, %s558
    %v560 = vpop.permute.xlu0 %559
    %s562 = sor.u32 256, 120
    %563 = vbcast.lane.b32.xlu0 %v501, %s562
    %v564 = vpop.permute.xlu0 %563
    %v565 = vlaneseq
    %v566 = vshrl.u32 %v565, 7
    %v567 = vsub.s32 2, %v566
    %v568 = vrot.slane %v21, %v567
    %570 = vbcast.lane.b32.xlu0 %v568, 256
    %v571 = vpop.permute.xlu0 %570
    %s573 = sor.u32 256, 8
    %574 = vbcast.lane.b32.xlu0 %v568, %s573
    %v575 = vpop.permute.xlu0 %574
    %s577 = sor.u32 256, 16
    %578 = vbcast.lane.b32.xlu0 %v568, %s577
    %v579 = vpop.permute.xlu0 %578
    %s581 = sor.u32 256, 24
    %582 = vbcast.lane.b32.xlu0 %v568, %s581
    %v583 = vpop.permute.xlu0 %582
    %s585 = sor.u32 256, 32
    %586 = vbcast.lane.b32.xlu0 %v568, %s585
    %v587 = vpop.permute.xlu0 %586
    %s589 = sor.u32 256, 40
    %590 = vbcast.lane.b32.xlu0 %v568, %s589
    %v591 = vpop.permute.xlu0 %590
    %s593 = sor.u32 256, 48
    %594 = vbcast.lane.b32.xlu0 %v568, %s593
    %v595 = vpop.permute.xlu0 %594
    %s597 = sor.u32 256, 56
    %598 = vbcast.lane.b32.xlu0 %v568, %s597
    %v599 = vpop.permute.xlu0 %598
    %s601 = sor.u32 256, 64
    %602 = vbcast.lane.b32.xlu0 %v568, %s601
    %v603 = vpop.permute.xlu0 %602
    %s605 = sor.u32 256, 72
    %606 = vbcast.lane.b32.xlu0 %v568, %s605
    %v607 = vpop.permute.xlu0 %606
    %s609 = sor.u32 256, 80
    %610 = vbcast.lane.b32.xlu0 %v568, %s609
    %v611 = vpop.permute.xlu0 %610
    %s613 = sor.u32 256, 88
    %614 = vbcast.lane.b32.xlu0 %v568, %s613
    %v615 = vpop.permute.xlu0 %614
    %s617 = sor.u32 256, 96
    %618 = vbcast.lane.b32.xlu0 %v568, %s617
    %v619 = vpop.permute.xlu0 %618
    %s621 = sor.u32 256, 104
    %622 = vbcast.lane.b32.xlu0 %v568, %s621
    %v623 = vpop.permute.xlu0 %622
    %s625 = sor.u32 256, 112
    %626 = vbcast.lane.b32.xlu0 %v568, %s625
    %v627 = vpop.permute.xlu0 %626
    %s629 = sor.u32 256, 120
    %630 = vbcast.lane.b32.xlu0 %v568, %s629
    %v631 = vpop.permute.xlu0 %630
    %v632 = vlaneseq
    %v633 = vshrl.u32 %v632, 7
    %v634 = vsub.s32 2, %v633
    %v635 = vrot.slane %v25, %v634
    %637 = vbcast.lane.b32.xlu0 %v635, 256
    %v638 = vpop.permute.xlu0 %637
    %s640 = sor.u32 256, 8
    %641 = vbcast.lane.b32.xlu0 %v635, %s640
    %v642 = vpop.permute.xlu0 %641
    %s644 = sor.u32 256, 16
    %645 = vbcast.lane.b32.xlu0 %v635, %s644
    %v646 = vpop.permute.xlu0 %645
    %s648 = sor.u32 256, 24
    %649 = vbcast.lane.b32.xlu0 %v635, %s648
    %v650 = vpop.permute.xlu0 %649
    %s652 = sor.u32 256, 32
    %653 = vbcast.lane.b32.xlu0 %v635, %s652
    %v654 = vpop.permute.xlu0 %653
    %s656 = sor.u32 256, 40
    %657 = vbcast.lane.b32.xlu0 %v635, %s656
    %v658 = vpop.permute.xlu0 %657
    %s660 = sor.u32 256, 48
    %661 = vbcast.lane.b32.xlu0 %v635, %s660
    %v662 = vpop.permute.xlu0 %661
    %s664 = sor.u32 256, 56
    %665 = vbcast.lane.b32.xlu0 %v635, %s664
    %v666 = vpop.permute.xlu0 %665
    %s668 = sor.u32 256, 64
    %669 = vbcast.lane.b32.xlu0 %v635, %s668
    %v670 = vpop.permute.xlu0 %669
    %s672 = sor.u32 256, 72
    %673 = vbcast.lane.b32.xlu0 %v635, %s672
    %v674 = vpop.permute.xlu0 %673
    %s676 = sor.u32 256, 80
    %677 = vbcast.lane.b32.xlu0 %v635, %s676
    %v678 = vpop.permute.xlu0 %677
    %s680 = sor.u32 256, 88
    %681 = vbcast.lane.b32.xlu0 %v635, %s680
    %v682 = vpop.permute.xlu0 %681
    %s684 = sor.u32 256, 96
    %685 = vbcast.lane.b32.xlu0 %v635, %s684
    %v686 = vpop.permute.xlu0 %685
    %s688 = sor.u32 256, 104
    %689 = vbcast.lane.b32.xlu0 %v635, %s688
    %v690 = vpop.permute.xlu0 %689
    %s692 = sor.u32 256, 112
    %693 = vbcast.lane.b32.xlu0 %v635, %s692
    %v694 = vpop.permute.xlu0 %693
    %s696 = sor.u32 256, 120
    %697 = vbcast.lane.b32.xlu0 %v635, %s696
    %v698 = vpop.permute.xlu0 %697
    %v699 = vlaneseq
    %v700 = vshrl.u32 %v699, 7
    %v701 = vsub.s32 2, %v700
    %v702 = vrot.slane %v22, %v701
    %704 = vbcast.lane.b32.xlu0 %v702, 256
    %v705 = vpop.permute.xlu0 %704
    %s707 = sor.u32 256, 8
    %708 = vbcast.lane.b32.xlu0 %v702, %s707
    %v709 = vpop.permute.xlu0 %708
    %s711 = sor.u32 256, 16
    %712 = vbcast.lane.b32.xlu0 %v702, %s711
    %v713 = vpop.permute.xlu0 %712
    %s715 = sor.u32 256, 24
    %716 = vbcast.lane.b32.xlu0 %v702, %s715
    %v717 = vpop.permute.xlu0 %716
    %s719 = sor.u32 256, 32
    %720 = vbcast.lane.b32.xlu0 %v702, %s719
    %v721 = vpop.permute.xlu0 %720
    %s723 = sor.u32 256, 40
    %724 = vbcast.lane.b32.xlu0 %v702, %s723
    %v725 = vpop.permute.xlu0 %724
    %s727 = sor.u32 256, 48
    %728 = vbcast.lane.b32.xlu0 %v702, %s727
    %v729 = vpop.permute.xlu0 %728
    %s731 = sor.u32 256, 56
    %732 = vbcast.lane.b32.xlu0 %v702, %s731
    %v733 = vpop.permute.xlu0 %732
    %s735 = sor.u32 256, 64
    %736 = vbcast.lane.b32.xlu0 %v702, %s735
    %v737 = vpop.permute.xlu0 %736
    %s739 = sor.u32 256, 72
    %740 = vbcast.lane.b32.xlu0 %v702, %s739
    %v741 = vpop.permute.xlu0 %740
    %s743 = sor.u32 256, 80
    %744 = vbcast.lane.b32.xlu0 %v702, %s743
    %v745 = vpop.permute.xlu0 %744
    %s747 = sor.u32 256, 88
    %748 = vbcast.lane.b32.xlu0 %v702, %s747
    %v749 = vpop.permute.xlu0 %748
    %s751 = sor.u32 256, 96
    %752 = vbcast.lane.b32.xlu0 %v702, %s751
    %v753 = vpop.permute.xlu0 %752
    %s755 = sor.u32 256, 104
    %756 = vbcast.lane.b32.xlu0 %v702, %s755
    %v757 = vpop.permute.xlu0 %756
    %s759 = sor.u32 256, 112
    %760 = vbcast.lane.b32.xlu0 %v702, %s759
    %v761 = vpop.permute.xlu0 %760
    %s763 = sor.u32 256, 120
    %764 = vbcast.lane.b32.xlu0 %v702, %s763
    %v765 = vpop.permute.xlu0 %764
    %v766 = vlaneseq
    %v767 = vshrl.u32 %v766, 7
    %v768 = vsub.s32 2, %v767
    %v769 = vrot.slane %v26, %v768
    %771 = vbcast.lane.b32.xlu0 %v769, 256
    %v772 = vpop.permute.xlu0 %771
    %s774 = sor.u32 256, 8
    %775 = vbcast.lane.b32.xlu0 %v769, %s774
    %v776 = vpop.permute.xlu0 %775
    %s778 = sor.u32 256, 16
    %779 = vbcast.lane.b32.xlu0 %v769, %s778
    %v780 = vpop.permute.xlu0 %779
    %s782 = sor.u32 256, 24
    %783 = vbcast.lane.b32.xlu0 %v769, %s782
    %v784 = vpop.permute.xlu0 %783
    %s786 = sor.u32 256, 32
    %787 = vbcast.lane.b32.xlu0 %v769, %s786
    %v788 = vpop.permute.xlu0 %787
    %s790 = sor.u32 256, 40
    %791 = vbcast.lane.b32.xlu0 %v769, %s790
    %v792 = vpop.permute.xlu0 %791
    %s794 = sor.u32 256, 48
    %795 = vbcast.lane.b32.xlu0 %v769, %s794
    %v796 = vpop.permute.xlu0 %795
    %s798 = sor.u32 256, 56
    %799 = vbcast.lane.b32.xlu0 %v769, %s798
    %v800 = vpop.permute.xlu0 %799
    %s802 = sor.u32 256, 64
    %803 = vbcast.lane.b32.xlu0 %v769, %s802
    %v804 = vpop.permute.xlu0 %803
    %s806 = sor.u32 256, 72
    %807 = vbcast.lane.b32.xlu0 %v769, %s806
    %v808 = vpop.permute.xlu0 %807
    %s810 = sor.u32 256, 80
    %811 = vbcast.lane.b32.xlu0 %v769, %s810
    %v812 = vpop.permute.xlu0 %811
    %s814 = sor.u32 256, 88
    %815 = vbcast.lane.b32.xlu0 %v769, %s814
    %v816 = vpop.permute.xlu0 %815
    %s818 = sor.u32 256, 96
    %819 = vbcast.lane.b32.xlu0 %v769, %s818
    %v820 = vpop.permute.xlu0 %819
    %s822 = sor.u32 256, 104
    %823 = vbcast.lane.b32.xlu0 %v769, %s822
    %v824 = vpop.permute.xlu0 %823
    %s826 = sor.u32 256, 112
    %827 = vbcast.lane.b32.xlu0 %v769, %s826
    %v828 = vpop.permute.xlu0 %827
    %s830 = sor.u32 256, 120
    %831 = vbcast.lane.b32.xlu0 %v769, %s830
    %v832 = vpop.permute.xlu0 %831
    %v833 = vlaneseq
    %v834 = vshrl.u32 %v833, 7
    %v835 = vsub.s32 3, %v834
    %v836 = vrot.slane %v21, %v835
    %838 = vbcast.lane.b32.xlu0 %v836, 256
    %v839 = vpop.permute.xlu0 %838
    %s841 = sor.u32 256, 8
    %842 = vbcast.lane.b32.xlu0 %v836, %s841
    %v843 = vpop.permute.xlu0 %842
    %s845 = sor.u32 256, 16
    %846 = vbcast.lane.b32.xlu0 %v836, %s845
    %v847 = vpop.permute.xlu0 %846
    %s849 = sor.u32 256, 24
    %850 = vbcast.lane.b32.xlu0 %v836, %s849
    %v851 = vpop.permute.xlu0 %850
    %s853 = sor.u32 256, 32
    %854 = vbcast.lane.b32.xlu0 %v836, %s853
    %v855 = vpop.permute.xlu0 %854
    %s857 = sor.u32 256, 40
    %858 = vbcast.lane.b32.xlu0 %v836, %s857
    %v859 = vpop.permute.xlu0 %858
    %s861 = sor.u32 256, 48
    %862 = vbcast.lane.b32.xlu0 %v836, %s861
    %v863 = vpop.permute.xlu0 %862
    %s865 = sor.u32 256, 56
    %866 = vbcast.lane.b32.xlu0 %v836, %s865
    %v867 = vpop.permute.xlu0 %866
    %s869 = sor.u32 256, 64
    %870 = vbcast.lane.b32.xlu0 %v836, %s869
    %v871 = vpop.permute.xlu0 %870
    %s873 = sor.u32 256, 72
    %874 = vbcast.lane.b32.xlu0 %v836, %s873
    %v875 = vpop.permute.xlu0 %874
    %s877 = sor.u32 256, 80
    %878 = vbcast.lane.b32.xlu0 %v836, %s877
    %v879 = vpop.permute.xlu0 %878
    %s881 = sor.u32 256, 88
    %882 = vbcast.lane.b32.xlu0 %v836, %s881
    %v883 = vpop.permute.xlu0 %882
    %s885 = sor.u32 256, 96
    %886 = vbcast.lane.b32.xlu0 %v836, %s885
    %v887 = vpop.permute.xlu0 %886
    %s889 = sor.u32 256, 104
    %890 = vbcast.lane.b32.xlu0 %v836, %s889
    %v891 = vpop.permute.xlu0 %890
    %s893 = sor.u32 256, 112
    %894 = vbcast.lane.b32.xlu0 %v836, %s893
    %v895 = vpop.permute.xlu0 %894
    %s897 = sor.u32 256, 120
    %898 = vbcast.lane.b32.xlu0 %v836, %s897
    %v899 = vpop.permute.xlu0 %898
    %v900 = vlaneseq
    %v901 = vshrl.u32 %v900, 7
    %v902 = vsub.s32 3, %v901
    %v903 = vrot.slane %v25, %v902
    %905 = vbcast.lane.b32.xlu0 %v903, 256
    %v906 = vpop.permute.xlu0 %905
    %s908 = sor.u32 256, 8
    %909 = vbcast.lane.b32.xlu0 %v903, %s908
    %v910 = vpop.permute.xlu0 %909
    %s912 = sor.u32 256, 16
    %913 = vbcast.lane.b32.xlu0 %v903, %s912
    %v914 = vpop.permute.xlu0 %913
    %s916 = sor.u32 256, 24
    %917 = vbcast.lane.b32.xlu0 %v903, %s916
    %v918 = vpop.permute.xlu0 %917
    %s920 = sor.u32 256, 32
    %921 = vbcast.lane.b32.xlu0 %v903, %s920
    %v922 = vpop.permute.xlu0 %921
    %s924 = sor.u32 256, 40
    %925 = vbcast.lane.b32.xlu0 %v903, %s924
    %v926 = vpop.permute.xlu0 %925
    %s928 = sor.u32 256, 48
    %929 = vbcast.lane.b32.xlu0 %v903, %s928
    %v930 = vpop.permute.xlu0 %929
    %s932 = sor.u32 256, 56
    %933 = vbcast.lane.b32.xlu0 %v903, %s932
    %v934 = vpop.permute.xlu0 %933
    %s936 = sor.u32 256, 64
    %937 = vbcast.lane.b32.xlu0 %v903, %s936
    %v938 = vpop.permute.xlu0 %937
    %s940 = sor.u32 256, 72
    %941 = vbcast.lane.b32.xlu0 %v903, %s940
    %v942 = vpop.permute.xlu0 %941
    %s944 = sor.u32 256, 80
    %945 = vbcast.lane.b32.xlu0 %v903, %s944
    %v946 = vpop.permute.xlu0 %945
    %s948 = sor.u32 256, 88
    %949 = vbcast.lane.b32.xlu0 %v903, %s948
    %v950 = vpop.permute.xlu0 %949
    %s952 = sor.u32 256, 96
    %953 = vbcast.lane.b32.xlu0 %v903, %s952
    %v954 = vpop.permute.xlu0 %953
    %s956 = sor.u32 256, 104
    %957 = vbcast.lane.b32.xlu0 %v903, %s956
    %v958 = vpop.permute.xlu0 %957
    %s960 = sor.u32 256, 112
    %961 = vbcast.lane.b32.xlu0 %v903, %s960
    %v962 = vpop.permute.xlu0 %961
    %s964 = sor.u32 256, 120
    %965 = vbcast.lane.b32.xlu0 %v903, %s964
    %v966 = vpop.permute.xlu0 %965
    %v967 = vlaneseq
    %v968 = vshrl.u32 %v967, 7
    %v969 = vsub.s32 3, %v968
    %v970 = vrot.slane %v22, %v969
    %972 = vbcast.lane.b32.xlu0 %v970, 256
    %v973 = vpop.permute.xlu0 %972
    %s975 = sor.u32 256, 8
    %976 = vbcast.lane.b32.xlu0 %v970, %s975
    %v977 = vpop.permute.xlu0 %976
    %s979 = sor.u32 256, 16
    %980 = vbcast.lane.b32.xlu0 %v970, %s979
    %v981 = vpop.permute.xlu0 %980
    %s983 = sor.u32 256, 24
    %984 = vbcast.lane.b32.xlu0 %v970, %s983
    %v985 = vpop.permute.xlu0 %984
    %s987 = sor.u32 256, 32
    %988 = vbcast.lane.b32.xlu0 %v970, %s987
    %v989 = vpop.permute.xlu0 %988
    %s991 = sor.u32 256, 40
    %992 = vbcast.lane.b32.xlu0 %v970, %s991
    %v993 = vpop.permute.xlu0 %992
    %s995 = sor.u32 256, 48
    %996 = vbcast.lane.b32.xlu0 %v970, %s995
    %v997 = vpop.permute.xlu0 %996
    %s999 = sor.u32 256, 56
    %1000 = vbcast.lane.b32.xlu0 %v970, %s999
    %v1001 = vpop.permute.xlu0 %1000
    %s1003 = sor.u32 256, 64
    %1004 = vbcast.lane.b32.xlu0 %v970, %s1003
    %v1005 = vpop.permute.xlu0 %1004
    %s1007 = sor.u32 256, 72
    %1008 = vbcast.lane.b32.xlu0 %v970, %s1007
    %v1009 = vpop.permute.xlu0 %1008
    %s1011 = sor.u32 256, 80
    %1012 = vbcast.lane.b32.xlu0 %v970, %s1011
    %v1013 = vpop.permute.xlu0 %1012
    %s1015 = sor.u32 256, 88
    %1016 = vbcast.lane.b32.xlu0 %v970, %s1015
    %v1017 = vpop.permute.xlu0 %1016
    %s1019 = sor.u32 256, 96
    %1020 = vbcast.lane.b32.xlu0 %v970, %s1019
    %v1021 = vpop.permute.xlu0 %1020
    %s1023 = sor.u32 256, 104
    %1024 = vbcast.lane.b32.xlu0 %v970, %s1023
    %v1025 = vpop.permute.xlu0 %1024
    %s1027 = sor.u32 256, 112
    %1028 = vbcast.lane.b32.xlu0 %v970, %s1027
    %v1029 = vpop.permute.xlu0 %1028
    %s1031 = sor.u32 256, 120
    %1032 = vbcast.lane.b32.xlu0 %v970, %s1031
    %v1033 = vpop.permute.xlu0 %1032
    %v1034 = vlaneseq
    %v1035 = vshrl.u32 %v1034, 7
    %v1036 = vsub.s32 3, %v1035
    %v1037 = vrot.slane %v26, %v1036
    %1039 = vbcast.lane.b32.xlu0 %v1037, 256
    %v1040 = vpop.permute.xlu0 %1039
    %s1042 = sor.u32 256, 8
    %1043 = vbcast.lane.b32.xlu0 %v1037, %s1042
    %v1044 = vpop.permute.xlu0 %1043
    %s1046 = sor.u32 256, 16
    %1047 = vbcast.lane.b32.xlu0 %v1037, %s1046
    %v1048 = vpop.permute.xlu0 %1047
    %s1050 = sor.u32 256, 24
    %1051 = vbcast.lane.b32.xlu0 %v1037, %s1050
    %v1052 = vpop.permute.xlu0 %1051
    %s1054 = sor.u32 256, 32
    %1055 = vbcast.lane.b32.xlu0 %v1037, %s1054
    %v1056 = vpop.permute.xlu0 %1055
    %s1058 = sor.u32 256, 40
    %1059 = vbcast.lane.b32.xlu0 %v1037, %s1058
    %v1060 = vpop.permute.xlu0 %1059
    %s1062 = sor.u32 256, 48
    %1063 = vbcast.lane.b32.xlu0 %v1037, %s1062
    %v1064 = vpop.permute.xlu0 %1063
    %s1066 = sor.u32 256, 56
    %1067 = vbcast.lane.b32.xlu0 %v1037, %s1066
    %v1068 = vpop.permute.xlu0 %1067
    %s1070 = sor.u32 256, 64
    %1071 = vbcast.lane.b32.xlu0 %v1037, %s1070
    %v1072 = vpop.permute.xlu0 %1071
    %s1074 = sor.u32 256, 72
    %1075 = vbcast.lane.b32.xlu0 %v1037, %s1074
    %v1076 = vpop.permute.xlu0 %1075
    %s1078 = sor.u32 256, 80
    %1079 = vbcast.lane.b32.xlu0 %v1037, %s1078
    %v1080 = vpop.permute.xlu0 %1079
    %s1082 = sor.u32 256, 88
    %1083 = vbcast.lane.b32.xlu0 %v1037, %s1082
    %v1084 = vpop.permute.xlu0 %1083
    %s1086 = sor.u32 256, 96
    %1087 = vbcast.lane.b32.xlu0 %v1037, %s1086
    %v1088 = vpop.permute.xlu0 %1087
    %s1090 = sor.u32 256, 104
    %1091 = vbcast.lane.b32.xlu0 %v1037, %s1090
    %v1092 = vpop.permute.xlu0 %1091
    %s1094 = sor.u32 256, 112
    %1095 = vbcast.lane.b32.xlu0 %v1037, %s1094
    %v1096 = vpop.permute.xlu0 %1095
    %s1098 = sor.u32 256, 120
    %1099 = vbcast.lane.b32.xlu0 %v1037, %s1098
    %v1100 = vpop.permute.xlu0 %1099
    %v1101 = vcombine.low %v35, %v571
    %v1102 = vcombine.high %v35, %v571
    %v1104 = vunpack.c.l.s4 1983009808
    %v1105 = vunpack.c.0.s8 %v1104
    %v1106 = vlaneseq
    %v1107 = vshrl.u32 %v1106, 7
    %v1108 = vsub.s32 %v1105, %v1107
    %v1109 = vrot.slane %v1101, %v1108
    %v1111 = vunpack.c.l.s4 1983009808
    %v1112 = vunpack.c.0.s8 %v1111
    %v1113 = vlaneseq
    %v1114 = vshrl.u32 %v1113, 7
    %v1115 = vsub.s32 %v1112, %v1114
    %v1116 = vrot.slane %v1102, %v1115
    %v1117 = vcombine.low %v303, %v839
    %v1118 = vcombine.high %v303, %v839
    %v1120 = vunpack.c.l.s4 1983009808
    %v1121 = vunpack.c.0.s8 %v1120
    %v1122 = vlaneseq
    %v1123 = vshrl.u32 %v1122, 7
    %v1124 = vsub.s32 %v1121, %v1123
    %v1125 = vrot.slane %v1117, %v1124
    %v1127 = vunpack.c.l.s4 1983009808
    %v1128 = vunpack.c.0.s8 %v1127
    %v1129 = vlaneseq
    %v1130 = vshrl.u32 %v1129, 7
    %v1131 = vsub.s32 %v1128, %v1130
    %v1132 = vrot.slane %v1118, %v1131
    %v1133 = vcombine.low %v1109, %v1125
    %v1134 = vcombine.high %v1109, %v1125
    %v1136 = vunpack.c.l.s4 1934713408
    %v1137 = vunpack.c.0.s8 %v1136
    %v1138 = vlaneseq
    %v1139 = vshrl.u32 %v1138, 7
    %v1140 = vsub.s32 %v1137, %v1139
    %v1141 = vrot.slane %v1133, %v1140
    %v1143 = vunpack.c.l.s4 1934713408
    %v1144 = vunpack.c.0.s8 %v1143
    %v1145 = vlaneseq
    %v1146 = vshrl.u32 %v1145, 7
    %v1147 = vsub.s32 %v1144, %v1146
    %v1148 = vrot.slane %v1134, %v1147
    %v1149 = vcombine.low %v1116, %v1132
    %v1150 = vcombine.high %v1116, %v1132
    %v1152 = vunpack.c.l.s4 1934713408
    %v1153 = vunpack.c.0.s8 %v1152
    %v1154 = vlaneseq
    %v1155 = vshrl.u32 %v1154, 7
    %v1156 = vsub.s32 %v1153, %v1155
    %v1157 = vrot.slane %v1149, %v1156
    %v1159 = vunpack.c.l.s4 1934713408
    %v1160 = vunpack.c.0.s8 %v1159
    %v1161 = vlaneseq
    %v1162 = vshrl.u32 %v1161, 7
    %v1163 = vsub.s32 %v1160, %v1162
    %v1164 = vrot.slane %v1150, %v1163
    %v1165 = vcombine.high %v1141, 0.0
    %v1166 = vcombine.high %v1148, 0.0
    %v1167 = vcombine.high %v1157, 0.0
    %v1168 = vcombine.high %v1164, 0.0
    %v1169 = vcombine.low %v39, %v575
    %v1170 = vcombine.high %v39, %v575
    %v1172 = vunpack.c.l.s4 1983009808
    %v1173 = vunpack.c.0.s8 %v1172
    %v1174 = vlaneseq
    %v1175 = vshrl.u32 %v1174, 7
    %v1176 = vsub.s32 %v1173, %v1175
    %v1177 = vrot.slane %v1169, %v1176
    %v1179 = vunpack.c.l.s4 1983009808
    %v1180 = vunpack.c.0.s8 %v1179
    %v1181 = vlaneseq
    %v1182 = vshrl.u32 %v1181, 7
    %v1183 = vsub.s32 %v1180, %v1182
    %v1184 = vrot.slane %v1170, %v1183
    %v1185 = vcombine.low %v307, %v843
    %v1186 = vcombine.high %v307, %v843
    %v1188 = vunpack.c.l.s4 1983009808
    %v1189 = vunpack.c.0.s8 %v1188
    %v1190 = vlaneseq
    %v1191 = vshrl.u32 %v1190, 7
    %v1192 = vsub.s32 %v1189, %v1191
    %v1193 = vrot.slane %v1185, %v1192
    %v1195 = vunpack.c.l.s4 1983009808
    %v1196 = vunpack.c.0.s8 %v1195
    %v1197 = vlaneseq
    %v1198 = vshrl.u32 %v1197, 7
    %v1199 = vsub.s32 %v1196, %v1198
    %v1200 = vrot.slane %v1186, %v1199
    %v1201 = vcombine.low %v1177, %v1193
    %v1202 = vcombine.high %v1177, %v1193
    %v1204 = vunpack.c.l.s4 1934713408
    %v1205 = vunpack.c.0.s8 %v1204
    %v1206 = vlaneseq
    %v1207 = vshrl.u32 %v1206, 7
    %v1208 = vsub.s32 %v1205, %v1207
    %v1209 = vrot.slane %v1201, %v1208
    %v1211 = vunpack.c.l.s4 1934713408
    %v1212 = vunpack.c.0.s8 %v1211
    %v1213 = vlaneseq
    %v1214 = vshrl.u32 %v1213, 7
    %v1215 = vsub.s32 %v1212, %v1214
    %v1216 = vrot.slane %v1202, %v1215
    %v1217 = vcombine.low %v1184, %v1200
    %v1218 = vcombine.high %v1184, %v1200
    %v1220 = vunpack.c.l.s4 1934713408
    %v1221 = vunpack.c.0.s8 %v1220
    %v1222 = vlaneseq
    %v1223 = vshrl.u32 %v1222, 7
    %v1224 = vsub.s32 %v1221, %v1223
    %v1225 = vrot.slane %v1217, %v1224
    %v1227 = vunpack.c.l.s4 1934713408
    %v1228 = vunpack.c.0.s8 %v1227
    %v1229 = vlaneseq
    %v1230 = vshrl.u32 %v1229, 7
    %v1231 = vsub.s32 %v1228, %v1230
    %v1232 = vrot.slane %v1218, %v1231
    %v1233 = vcombine.high %v1209, 0.0
    %v1234 = vcombine.high %v1216, 0.0
    %v1235 = vcombine.high %v1225, 0.0
    %v1236 = vcombine.high %v1232, 0.0
    %v1237 = vcombine.low %v43, %v579
    %v1238 = vcombine.high %v43, %v579
    %v1240 = vunpack.c.l.s4 1983009808
    %v1241 = vunpack.c.0.s8 %v1240
    %v1242 = vlaneseq
    %v1243 = vshrl.u32 %v1242, 7
    %v1244 = vsub.s32 %v1241, %v1243
    %v1245 = vrot.slane %v1237, %v1244
    %v1247 = vunpack.c.l.s4 1983009808
    %v1248 = vunpack.c.0.s8 %v1247
    %v1249 = vlaneseq
    %v1250 = vshrl.u32 %v1249, 7
    %v1251 = vsub.s32 %v1248, %v1250
    %v1252 = vrot.slane %v1238, %v1251
    %v1253 = vcombine.low %v311, %v847
    %v1254 = vcombine.high %v311, %v847
    %v1256 = vunpack.c.l.s4 1983009808
    %v1257 = vunpack.c.0.s8 %v1256
    %v1258 = vlaneseq
    %v1259 = vshrl.u32 %v1258, 7
    %v1260 = vsub.s32 %v1257, %v1259
    %v1261 = vrot.slane %v1253, %v1260
    %v1263 = vunpack.c.l.s4 1983009808
    %v1264 = vunpack.c.0.s8 %v1263
    %v1265 = vlaneseq
    %v1266 = vshrl.u32 %v1265, 7
    %v1267 = vsub.s32 %v1264, %v1266
    %v1268 = vrot.slane %v1254, %v1267
    %v1269 = vcombine.low %v1245, %v1261
    %v1270 = vcombine.high %v1245, %v1261
    %v1272 = vunpack.c.l.s4 1934713408
    %v1273 = vunpack.c.0.s8 %v1272
    %v1274 = vlaneseq
    %v1275 = vshrl.u32 %v1274, 7
    %v1276 = vsub.s32 %v1273, %v1275
    %v1277 = vrot.slane %v1269, %v1276
    %v1279 = vunpack.c.l.s4 1934713408
    %v1280 = vunpack.c.0.s8 %v1279
    %v1281 = vlaneseq
    %v1282 = vshrl.u32 %v1281, 7
    %v1283 = vsub.s32 %v1280, %v1282
    %v1284 = vrot.slane %v1270, %v1283
    %v1285 = vcombine.low %v1252, %v1268
    %v1286 = vcombine.high %v1252, %v1268
    %v1288 = vunpack.c.l.s4 1934713408
    %v1289 = vunpack.c.0.s8 %v1288
    %v1290 = vlaneseq
    %v1291 = vshrl.u32 %v1290, 7
    %v1292 = vsub.s32 %v1289, %v1291
    %v1293 = vrot.slane %v1285, %v1292
    %v1295 = vunpack.c.l.s4 1934713408
    %v1296 = vunpack.c.0.s8 %v1295
    %v1297 = vlaneseq
    %v1298 = vshrl.u32 %v1297, 7
    %v1299 = vsub.s32 %v1296, %v1298
    %v1300 = vrot.slane %v1286, %v1299
    %v1301 = vcombine.high %v1277, 0.0
    %v1302 = vcombine.high %v1284, 0.0
    %v1303 = vcombine.high %v1293, 0.0
    %v1304 = vcombine.high %v1300, 0.0
    %v1305 = vcombine.low %v47, %v583
    %v1306 = vcombine.high %v47, %v583
    %v1308 = vunpack.c.l.s4 1983009808
    %v1309 = vunpack.c.0.s8 %v1308
    %v1310 = vlaneseq
    %v1311 = vshrl.u32 %v1310, 7
    %v1312 = vsub.s32 %v1309, %v1311
    %v1313 = vrot.slane %v1305, %v1312
    %v1315 = vunpack.c.l.s4 1983009808
    %v1316 = vunpack.c.0.s8 %v1315
    %v1317 = vlaneseq
    %v1318 = vshrl.u32 %v1317, 7
    %v1319 = vsub.s32 %v1316, %v1318
    %v1320 = vrot.slane %v1306, %v1319
    %v1321 = vcombine.low %v315, %v851
    %v1322 = vcombine.high %v315, %v851
    %v1324 = vunpack.c.l.s4 1983009808
    %v1325 = vunpack.c.0.s8 %v1324
    %v1326 = vlaneseq
    %v1327 = vshrl.u32 %v1326, 7
    %v1328 = vsub.s32 %v1325, %v1327
    %v1329 = vrot.slane %v1321, %v1328
    %v1331 = vunpack.c.l.s4 1983009808
    %v1332 = vunpack.c.0.s8 %v1331
    %v1333 = vlaneseq
    %v1334 = vshrl.u32 %v1333, 7
    %v1335 = vsub.s32 %v1332, %v1334
    %v1336 = vrot.slane %v1322, %v1335
    %v1337 = vcombine.low %v1313, %v1329
    %v1338 = vcombine.high %v1313, %v1329
    %v1340 = vunpack.c.l.s4 1934713408
    %v1341 = vunpack.c.0.s8 %v1340
    %v1342 = vlaneseq
    %v1343 = vshrl.u32 %v1342, 7
    %v1344 = vsub.s32 %v1341, %v1343
    %v1345 = vrot.slane %v1337, %v1344
    %v1347 = vunpack.c.l.s4 1934713408
    %v1348 = vunpack.c.0.s8 %v1347
    %v1349 = vlaneseq
    %v1350 = vshrl.u32 %v1349, 7
    %v1351 = vsub.s32 %v1348, %v1350
    %v1352 = vrot.slane %v1338, %v1351
    %v1353 = vcombine.low %v1320, %v1336
    %v1354 = vcombine.high %v1320, %v1336
    %v1356 = vunpack.c.l.s4 1934713408
    %v1357 = vunpack.c.0.s8 %v1356
    %v1358 = vlaneseq
    %v1359 = vshrl.u32 %v1358, 7
    %v1360 = vsub.s32 %v1357, %v1359
    %v1361 = vrot.slane %v1353, %v1360
    %v1363 = vunpack.c.l.s4 1934713408
    %v1364 = vunpack.c.0.s8 %v1363
    %v1365 = vlaneseq
    %v1366 = vshrl.u32 %v1365, 7
    %v1367 = vsub.s32 %v1364, %v1366
    %v1368 = vrot.slane %v1354, %v1367
    %v1369 = vcombine.high %v1345, 0.0
    %v1370 = vcombine.high %v1352, 0.0
    %v1371 = vcombine.high %v1361, 0.0
    %v1372 = vcombine.high %v1368, 0.0
    %v1373 = vcombine.low %v51, %v587
    %v1374 = vcombine.high %v51, %v587
    %v1376 = vunpack.c.l.s4 1983009808
    %v1377 = vunpack.c.0.s8 %v1376
    %v1378 = vlaneseq
    %v1379 = vshrl.u32 %v1378, 7
    %v1380 = vsub.s32 %v1377, %v1379
    %v1381 = vrot.slane %v1373, %v1380
    %v1383 = vunpack.c.l.s4 1983009808
    %v1384 = vunpack.c.0.s8 %v1383
    %v1385 = vlaneseq
    %v1386 = vshrl.u32 %v1385, 7
    %v1387 = vsub.s32 %v1384, %v1386
    %v1388 = vrot.slane %v1374, %v1387
    %v1389 = vcombine.low %v319, %v855
    %v1390 = vcombine.high %v319, %v855
    %v1392 = vunpack.c.l.s4 1983009808
    %v1393 = vunpack.c.0.s8 %v1392
    %v1394 = vlaneseq
    %v1395 = vshrl.u32 %v1394, 7
    %v1396 = vsub.s32 %v1393, %v1395
    %v1397 = vrot.slane %v1389, %v1396
    %v1399 = vunpack.c.l.s4 1983009808
    %v1400 = vunpack.c.0.s8 %v1399
    %v1401 = vlaneseq
    %v1402 = vshrl.u32 %v1401, 7
    %v1403 = vsub.s32 %v1400, %v1402
    %v1404 = vrot.slane %v1390, %v1403
    %v1405 = vcombine.low %v1381, %v1397
    %v1406 = vcombine.high %v1381, %v1397
    %v1408 = vunpack.c.l.s4 1934713408
    %v1409 = vunpack.c.0.s8 %v1408
    %v1410 = vlaneseq
    %v1411 = vshrl.u32 %v1410, 7
    %v1412 = vsub.s32 %v1409, %v1411
    %v1413 = vrot.slane %v1405, %v1412
    %v1415 = vunpack.c.l.s4 1934713408
    %v1416 = vunpack.c.0.s8 %v1415
    %v1417 = vlaneseq
    %v1418 = vshrl.u32 %v1417, 7
    %v1419 = vsub.s32 %v1416, %v1418
    %v1420 = vrot.slane %v1406, %v1419
    %v1421 = vcombine.low %v1388, %v1404
    %v1422 = vcombine.high %v1388, %v1404
    %v1424 = vunpack.c.l.s4 1934713408
    %v1425 = vunpack.c.0.s8 %v1424
    %v1426 = vlaneseq
    %v1427 = vshrl.u32 %v1426, 7
    %v1428 = vsub.s32 %v1425, %v1427
    %v1429 = vrot.slane %v1421, %v1428
    %v1431 = vunpack.c.l.s4 1934713408
    %v1432 = vunpack.c.0.s8 %v1431
    %v1433 = vlaneseq
    %v1434 = vshrl.u32 %v1433, 7
    %v1435 = vsub.s32 %v1432, %v1434
    %v1436 = vrot.slane %v1422, %v1435
    %v1437 = vcombine.high %v1413, 0.0
    %v1438 = vcombine.high %v1420, 0.0
    %v1439 = vcombine.high %v1429, 0.0
    %v1440 = vcombine.high %v1436, 0.0
    %v1441 = vcombine.low %v55, %v591
    %v1442 = vcombine.high %v55, %v591
    %v1444 = vunpack.c.l.s4 1983009808
    %v1445 = vunpack.c.0.s8 %v1444
    %v1446 = vlaneseq
    %v1447 = vshrl.u32 %v1446, 7
    %v1448 = vsub.s32 %v1445, %v1447
    %v1449 = vrot.slane %v1441, %v1448
    %v1451 = vunpack.c.l.s4 1983009808
    %v1452 = vunpack.c.0.s8 %v1451
    %v1453 = vlaneseq
    %v1454 = vshrl.u32 %v1453, 7
    %v1455 = vsub.s32 %v1452, %v1454
    %v1456 = vrot.slane %v1442, %v1455
    %v1457 = vcombine.low %v323, %v859
    %v1458 = vcombine.high %v323, %v859
    %v1460 = vunpack.c.l.s4 1983009808
    %v1461 = vunpack.c.0.s8 %v1460
    %v1462 = vlaneseq
    %v1463 = vshrl.u32 %v1462, 7
    %v1464 = vsub.s32 %v1461, %v1463
    %v1465 = vrot.slane %v1457, %v1464
    %v1467 = vunpack.c.l.s4 1983009808
    %v1468 = vunpack.c.0.s8 %v1467
    %v1469 = vlaneseq
    %v1470 = vshrl.u32 %v1469, 7
    %v1471 = vsub.s32 %v1468, %v1470
    %v1472 = vrot.slane %v1458, %v1471
    %v1473 = vcombine.low %v1449, %v1465
    %v1474 = vcombine.high %v1449, %v1465
    %v1476 = vunpack.c.l.s4 1934713408
    %v1477 = vunpack.c.0.s8 %v1476
    %v1478 = vlaneseq
    %v1479 = vshrl.u32 %v1478, 7
    %v1480 = vsub.s32 %v1477, %v1479
    %v1481 = vrot.slane %v1473, %v1480
    %v1483 = vunpack.c.l.s4 1934713408
    %v1484 = vunpack.c.0.s8 %v1483
    %v1485 = vlaneseq
    %v1486 = vshrl.u32 %v1485, 7
    %v1487 = vsub.s32 %v1484, %v1486
    %v1488 = vrot.slane %v1474, %v1487
    %v1489 = vcombine.low %v1456, %v1472
    %v1490 = vcombine.high %v1456, %v1472
    %v1492 = vunpack.c.l.s4 1934713408
    %v1493 = vunpack.c.0.s8 %v1492
    %v1494 = vlaneseq
    %v1495 = vshrl.u32 %v1494, 7
    %v1496 = vsub.s32 %v1493, %v1495
    %v1497 = vrot.slane %v1489, %v1496
    %v1499 = vunpack.c.l.s4 1934713408
    %v1500 = vunpack.c.0.s8 %v1499
    %v1501 = vlaneseq
    %v1502 = vshrl.u32 %v1501, 7
    %v1503 = vsub.s32 %v1500, %v1502
    %v1504 = vrot.slane %v1490, %v1503
    %v1505 = vcombine.high %v1481, 0.0
    %v1506 = vcombine.high %v1488, 0.0
    %v1507 = vcombine.high %v1497, 0.0
    %v1508 = vcombine.high %v1504, 0.0
    %v1509 = vcombine.low %v59, %v595
    %v1510 = vcombine.high %v59, %v595
    %v1512 = vunpack.c.l.s4 1983009808
    %v1513 = vunpack.c.0.s8 %v1512
    %v1514 = vlaneseq
    %v1515 = vshrl.u32 %v1514, 7
    %v1516 = vsub.s32 %v1513, %v1515
    %v1517 = vrot.slane %v1509, %v1516
    %v1519 = vunpack.c.l.s4 1983009808
    %v1520 = vunpack.c.0.s8 %v1519
    %v1521 = vlaneseq
    %v1522 = vshrl.u32 %v1521, 7
    %v1523 = vsub.s32 %v1520, %v1522
    %v1524 = vrot.slane %v1510, %v1523
    %v1525 = vcombine.low %v327, %v863
    %v1526 = vcombine.high %v327, %v863
    %v1528 = vunpack.c.l.s4 1983009808
    %v1529 = vunpack.c.0.s8 %v1528
    %v1530 = vlaneseq
    %v1531 = vshrl.u32 %v1530, 7
    %v1532 = vsub.s32 %v1529, %v1531
    %v1533 = vrot.slane %v1525, %v1532
    %v1535 = vunpack.c.l.s4 1983009808
    %v1536 = vunpack.c.0.s8 %v1535
    %v1537 = vlaneseq
    %v1538 = vshrl.u32 %v1537, 7
    %v1539 = vsub.s32 %v1536, %v1538
    %v1540 = vrot.slane %v1526, %v1539
    %v1541 = vcombine.low %v1517, %v1533
    %v1542 = vcombine.high %v1517, %v1533
    %v1544 = vunpack.c.l.s4 1934713408
    %v1545 = vunpack.c.0.s8 %v1544
    %v1546 = vlaneseq
    %v1547 = vshrl.u32 %v1546, 7
    %v1548 = vsub.s32 %v1545, %v1547
    %v1549 = vrot.slane %v1541, %v1548
    %v1551 = vunpack.c.l.s4 1934713408
    %v1552 = vunpack.c.0.s8 %v1551
    %v1553 = vlaneseq
    %v1554 = vshrl.u32 %v1553, 7
    %v1555 = vsub.s32 %v1552, %v1554
    %v1556 = vrot.slane %v1542, %v1555
    %v1557 = vcombine.low %v1524, %v1540
    %v1558 = vcombine.high %v1524, %v1540
    %v1560 = vunpack.c.l.s4 1934713408
    %v1561 = vunpack.c.0.s8 %v1560
    %v1562 = vlaneseq
    %v1563 = vshrl.u32 %v1562, 7
    %v1564 = vsub.s32 %v1561, %v1563
    %v1565 = vrot.slane %v1557, %v1564
    %v1567 = vunpack.c.l.s4 1934713408
    %v1568 = vunpack.c.0.s8 %v1567
    %v1569 = vlaneseq
    %v1570 = vshrl.u32 %v1569, 7
    %v1571 = vsub.s32 %v1568, %v1570
    %v1572 = vrot.slane %v1558, %v1571
    %v1573 = vcombine.high %v1549, 0.0
    %v1574 = vcombine.high %v1556, 0.0
    %v1575 = vcombine.high %v1565, 0.0
    %v1576 = vcombine.high %v1572, 0.0
    %v1577 = vcombine.low %v63, %v599
    %v1578 = vcombine.high %v63, %v599
    %v1580 = vunpack.c.l.s4 1983009808
    %v1581 = vunpack.c.0.s8 %v1580
    %v1582 = vlaneseq
    %v1583 = vshrl.u32 %v1582, 7
    %v1584 = vsub.s32 %v1581, %v1583
    %v1585 = vrot.slane %v1577, %v1584
    %v1587 = vunpack.c.l.s4 1983009808
    %v1588 = vunpack.c.0.s8 %v1587
    %v1589 = vlaneseq
    %v1590 = vshrl.u32 %v1589, 7
    %v1591 = vsub.s32 %v1588, %v1590
    %v1592 = vrot.slane %v1578, %v1591
    %v1593 = vcombine.low %v331, %v867
    %v1594 = vcombine.high %v331, %v867
    %v1596 = vunpack.c.l.s4 1983009808
    %v1597 = vunpack.c.0.s8 %v1596
    %v1598 = vlaneseq
    %v1599 = vshrl.u32 %v1598, 7
    %v1600 = vsub.s32 %v1597, %v1599
    %v1601 = vrot.slane %v1593, %v1600
    %v1603 = vunpack.c.l.s4 1983009808
    %v1604 = vunpack.c.0.s8 %v1603
    %v1605 = vlaneseq
    %v1606 = vshrl.u32 %v1605, 7
    %v1607 = vsub.s32 %v1604, %v1606
    %v1608 = vrot.slane %v1594, %v1607
    %v1609 = vcombine.low %v1585, %v1601
    %v1610 = vcombine.high %v1585, %v1601
    %v1612 = vunpack.c.l.s4 1934713408
    %v1613 = vunpack.c.0.s8 %v1612
    %v1614 = vlaneseq
    %v1615 = vshrl.u32 %v1614, 7
    %v1616 = vsub.s32 %v1613, %v1615
    %v1617 = vrot.slane %v1609, %v1616
    %v1619 = vunpack.c.l.s4 1934713408
    %v1620 = vunpack.c.0.s8 %v1619
    %v1621 = vlaneseq
    %v1622 = vshrl.u32 %v1621, 7
    %v1623 = vsub.s32 %v1620, %v1622
    %v1624 = vrot.slane %v1610, %v1623
    %v1625 = vcombine.low %v1592, %v1608
    %v1626 = vcombine.high %v1592, %v1608
    %v1628 = vunpack.c.l.s4 1934713408
    %v1629 = vunpack.c.0.s8 %v1628
    %v1630 = vlaneseq
    %v1631 = vshrl.u32 %v1630, 7
    %v1632 = vsub.s32 %v1629, %v1631
    %v1633 = vrot.slane %v1625, %v1632
    %v1635 = vunpack.c.l.s4 1934713408
    %v1636 = vunpack.c.0.s8 %v1635
    %v1637 = vlaneseq
    %v1638 = vshrl.u32 %v1637, 7
    %v1639 = vsub.s32 %v1636, %v1638
    %v1640 = vrot.slane %v1626, %v1639
    %v1641 = vcombine.high %v1617, 0.0
    %v1642 = vcombine.high %v1624, 0.0
    %v1643 = vcombine.high %v1633, 0.0
    %v1644 = vcombine.high %v1640, 0.0
    %v1645 = vcombine.low %v67, %v603
    %v1646 = vcombine.high %v67, %v603
    %v1648 = vunpack.c.l.s4 1983009808
    %v1649 = vunpack.c.0.s8 %v1648
    %v1650 = vlaneseq
    %v1651 = vshrl.u32 %v1650, 7
    %v1652 = vsub.s32 %v1649, %v1651
    %v1653 = vrot.slane %v1645, %v1652
    %v1655 = vunpack.c.l.s4 1983009808
    %v1656 = vunpack.c.0.s8 %v1655
    %v1657 = vlaneseq
    %v1658 = vshrl.u32 %v1657, 7
    %v1659 = vsub.s32 %v1656, %v1658
    %v1660 = vrot.slane %v1646, %v1659
    %v1661 = vcombine.low %v335, %v871
    %v1662 = vcombine.high %v335, %v871
    %v1664 = vunpack.c.l.s4 1983009808
    %v1665 = vunpack.c.0.s8 %v1664
    %v1666 = vlaneseq
    %v1667 = vshrl.u32 %v1666, 7
    %v1668 = vsub.s32 %v1665, %v1667
    %v1669 = vrot.slane %v1661, %v1668
    %v1671 = vunpack.c.l.s4 1983009808
    %v1672 = vunpack.c.0.s8 %v1671
    %v1673 = vlaneseq
    %v1674 = vshrl.u32 %v1673, 7
    %v1675 = vsub.s32 %v1672, %v1674
    %v1676 = vrot.slane %v1662, %v1675
    %v1677 = vcombine.low %v1653, %v1669
    %v1678 = vcombine.high %v1653, %v1669
    %v1680 = vunpack.c.l.s4 1934713408
    %v1681 = vunpack.c.0.s8 %v1680
    %v1682 = vlaneseq
    %v1683 = vshrl.u32 %v1682, 7
    %v1684 = vsub.s32 %v1681, %v1683
    %v1685 = vrot.slane %v1677, %v1684
    %v1687 = vunpack.c.l.s4 1934713408
    %v1688 = vunpack.c.0.s8 %v1687
    %v1689 = vlaneseq
    %v1690 = vshrl.u32 %v1689, 7
    %v1691 = vsub.s32 %v1688, %v1690
    %v1692 = vrot.slane %v1678, %v1691
    %v1693 = vcombine.low %v1660, %v1676
    %v1694 = vcombine.high %v1660, %v1676
    %v1696 = vunpack.c.l.s4 1934713408
    %v1697 = vunpack.c.0.s8 %v1696
    %v1698 = vlaneseq
    %v1699 = vshrl.u32 %v1698, 7
    %v1700 = vsub.s32 %v1697, %v1699
    %v1701 = vrot.slane %v1693, %v1700
    %v1703 = vunpack.c.l.s4 1934713408
    %v1704 = vunpack.c.0.s8 %v1703
    %v1705 = vlaneseq
    %v1706 = vshrl.u32 %v1705, 7
    %v1707 = vsub.s32 %v1704, %v1706
    %v1708 = vrot.slane %v1694, %v1707
    %v1709 = vcombine.high %v1685, 0.0
    %v1710 = vcombine.high %v1692, 0.0
    %v1711 = vcombine.high %v1701, 0.0
    %v1712 = vcombine.high %v1708, 0.0
    %v1713 = vcombine.low %v71, %v607
    %v1714 = vcombine.high %v71, %v607
    %v1716 = vunpack.c.l.s4 1983009808
    %v1717 = vunpack.c.0.s8 %v1716
    %v1718 = vlaneseq
    %v1719 = vshrl.u32 %v1718, 7
    %v1720 = vsub.s32 %v1717, %v1719
    %v1721 = vrot.slane %v1713, %v1720
    %v1723 = vunpack.c.l.s4 1983009808
    %v1724 = vunpack.c.0.s8 %v1723
    %v1725 = vlaneseq
    %v1726 = vshrl.u32 %v1725, 7
    %v1727 = vsub.s32 %v1724, %v1726
    %v1728 = vrot.slane %v1714, %v1727
    %v1729 = vcombine.low %v339, %v875
    %v1730 = vcombine.high %v339, %v875
    %v1732 = vunpack.c.l.s4 1983009808
    %v1733 = vunpack.c.0.s8 %v1732
    %v1734 = vlaneseq
    %v1735 = vshrl.u32 %v1734, 7
    %v1736 = vsub.s32 %v1733, %v1735
    %v1737 = vrot.slane %v1729, %v1736
    %v1739 = vunpack.c.l.s4 1983009808
    %v1740 = vunpack.c.0.s8 %v1739
    %v1741 = vlaneseq
    %v1742 = vshrl.u32 %v1741, 7
    %v1743 = vsub.s32 %v1740, %v1742
    %v1744 = vrot.slane %v1730, %v1743
    %v1745 = vcombine.low %v1721, %v1737
    %v1746 = vcombine.high %v1721, %v1737
    %v1748 = vunpack.c.l.s4 1934713408
    %v1749 = vunpack.c.0.s8 %v1748
    %v1750 = vlaneseq
    %v1751 = vshrl.u32 %v1750, 7
    %v1752 = vsub.s32 %v1749, %v1751
    %v1753 = vrot.slane %v1745, %v1752
    %v1755 = vunpack.c.l.s4 1934713408
    %v1756 = vunpack.c.0.s8 %v1755
    %v1757 = vlaneseq
    %v1758 = vshrl.u32 %v1757, 7
    %v1759 = vsub.s32 %v1756, %v1758
    %v1760 = vrot.slane %v1746, %v1759
    %v1761 = vcombine.low %v1728, %v1744
    %v1762 = vcombine.high %v1728, %v1744
    %v1764 = vunpack.c.l.s4 1934713408
    %v1765 = vunpack.c.0.s8 %v1764
    %v1766 = vlaneseq
    %v1767 = vshrl.u32 %v1766, 7
    %v1768 = vsub.s32 %v1765, %v1767
    %v1769 = vrot.slane %v1761, %v1768
    %v1771 = vunpack.c.l.s4 1934713408
    %v1772 = vunpack.c.0.s8 %v1771
    %v1773 = vlaneseq
    %v1774 = vshrl.u32 %v1773, 7
    %v1775 = vsub.s32 %v1772, %v1774
    %v1776 = vrot.slane %v1762, %v1775
    %v1777 = vcombine.high %v1753, 0.0
    %v1778 = vcombine.high %v1760, 0.0
    %v1779 = vcombine.high %v1769, 0.0
    %v1780 = vcombine.high %v1776, 0.0
    %v1781 = vcombine.low %v75, %v611
    %v1782 = vcombine.high %v75, %v611
    %v1784 = vunpack.c.l.s4 1983009808
    %v1785 = vunpack.c.0.s8 %v1784
    %v1786 = vlaneseq
    %v1787 = vshrl.u32 %v1786, 7
    %v1788 = vsub.s32 %v1785, %v1787
    %v1789 = vrot.slane %v1781, %v1788
    %v1791 = vunpack.c.l.s4 1983009808
    %v1792 = vunpack.c.0.s8 %v1791
    %v1793 = vlaneseq
    %v1794 = vshrl.u32 %v1793, 7
    %v1795 = vsub.s32 %v1792, %v1794
    %v1796 = vrot.slane %v1782, %v1795
    %v1797 = vcombine.low %v343, %v879
    %v1798 = vcombine.high %v343, %v879
    %v1800 = vunpack.c.l.s4 1983009808
    %v1801 = vunpack.c.0.s8 %v1800
    %v1802 = vlaneseq
    %v1803 = vshrl.u32 %v1802, 7
    %v1804 = vsub.s32 %v1801, %v1803
    %v1805 = vrot.slane %v1797, %v1804
    %v1807 = vunpack.c.l.s4 1983009808
    %v1808 = vunpack.c.0.s8 %v1807
    %v1809 = vlaneseq
    %v1810 = vshrl.u32 %v1809, 7
    %v1811 = vsub.s32 %v1808, %v1810
    %v1812 = vrot.slane %v1798, %v1811
    %v1813 = vcombine.low %v1789, %v1805
    %v1814 = vcombine.high %v1789, %v1805
    %v1816 = vunpack.c.l.s4 1934713408
    %v1817 = vunpack.c.0.s8 %v1816
    %v1818 = vlaneseq
    %v1819 = vshrl.u32 %v1818, 7
    %v1820 = vsub.s32 %v1817, %v1819
    %v1821 = vrot.slane %v1813, %v1820
    %v1823 = vunpack.c.l.s4 1934713408
    %v1824 = vunpack.c.0.s8 %v1823
    %v1825 = vlaneseq
    %v1826 = vshrl.u32 %v1825, 7
    %v1827 = vsub.s32 %v1824, %v1826
    %v1828 = vrot.slane %v1814, %v1827
    %v1829 = vcombine.low %v1796, %v1812
    %v1830 = vcombine.high %v1796, %v1812
    %v1832 = vunpack.c.l.s4 1934713408
    %v1833 = vunpack.c.0.s8 %v1832
    %v1834 = vlaneseq
    %v1835 = vshrl.u32 %v1834, 7
    %v1836 = vsub.s32 %v1833, %v1835
    %v1837 = vrot.slane %v1829, %v1836
    %v1839 = vunpack.c.l.s4 1934713408
    %v1840 = vunpack.c.0.s8 %v1839
    %v1841 = vlaneseq
    %v1842 = vshrl.u32 %v1841, 7
    %v1843 = vsub.s32 %v1840, %v1842
    %v1844 = vrot.slane %v1830, %v1843
    %v1845 = vcombine.high %v1821, 0.0
    %v1846 = vcombine.high %v1828, 0.0
    %v1847 = vcombine.high %v1837, 0.0
    %v1848 = vcombine.high %v1844, 0.0
    %v1849 = vcombine.low %v79, %v615
    %v1850 = vcombine.high %v79, %v615
    %v1852 = vunpack.c.l.s4 1983009808
    %v1853 = vunpack.c.0.s8 %v1852
    %v1854 = vlaneseq
    %v1855 = vshrl.u32 %v1854, 7
    %v1856 = vsub.s32 %v1853, %v1855
    %v1857 = vrot.slane %v1849, %v1856
    %v1859 = vunpack.c.l.s4 1983009808
    %v1860 = vunpack.c.0.s8 %v1859
    %v1861 = vlaneseq
    %v1862 = vshrl.u32 %v1861, 7
    %v1863 = vsub.s32 %v1860, %v1862
    %v1864 = vrot.slane %v1850, %v1863
    %v1865 = vcombine.low %v347, %v883
    %v1866 = vcombine.high %v347, %v883
    %v1868 = vunpack.c.l.s4 1983009808
    %v1869 = vunpack.c.0.s8 %v1868
    %v1870 = vlaneseq
    %v1871 = vshrl.u32 %v1870, 7
    %v1872 = vsub.s32 %v1869, %v1871
    %v1873 = vrot.slane %v1865, %v1872
    %v1875 = vunpack.c.l.s4 1983009808
    %v1876 = vunpack.c.0.s8 %v1875
    %v1877 = vlaneseq
    %v1878 = vshrl.u32 %v1877, 7
    %v1879 = vsub.s32 %v1876, %v1878
    %v1880 = vrot.slane %v1866, %v1879
    %v1881 = vcombine.low %v1857, %v1873
    %v1882 = vcombine.high %v1857, %v1873
    %v1884 = vunpack.c.l.s4 1934713408
    %v1885 = vunpack.c.0.s8 %v1884
    %v1886 = vlaneseq
    %v1887 = vshrl.u32 %v1886, 7
    %v1888 = vsub.s32 %v1885, %v1887
    %v1889 = vrot.slane %v1881, %v1888
    %v1891 = vunpack.c.l.s4 1934713408
    %v1892 = vunpack.c.0.s8 %v1891
    %v1893 = vlaneseq
    %v1894 = vshrl.u32 %v1893, 7
    %v1895 = vsub.s32 %v1892, %v1894
    %v1896 = vrot.slane %v1882, %v1895
    %v1897 = vcombine.low %v1864, %v1880
    %v1898 = vcombine.high %v1864, %v1880
    %v1900 = vunpack.c.l.s4 1934713408
    %v1901 = vunpack.c.0.s8 %v1900
    %v1902 = vlaneseq
    %v1903 = vshrl.u32 %v1902, 7
    %v1904 = vsub.s32 %v1901, %v1903
    %v1905 = vrot.slane %v1897, %v1904
    %v1907 = vunpack.c.l.s4 1934713408
    %v1908 = vunpack.c.0.s8 %v1907
    %v1909 = vlaneseq
    %v1910 = vshrl.u32 %v1909, 7
    %v1911 = vsub.s32 %v1908, %v1910
    %v1912 = vrot.slane %v1898, %v1911
    %v1913 = vcombine.high %v1889, 0.0
    %v1914 = vcombine.high %v1896, 0.0
    %v1915 = vcombine.high %v1905, 0.0
    %v1916 = vcombine.high %v1912, 0.0
    %v1917 = vcombine.low %v83, %v619
    %v1918 = vcombine.high %v83, %v619
    %v1920 = vunpack.c.l.s4 1983009808
    %v1921 = vunpack.c.0.s8 %v1920
    %v1922 = vlaneseq
    %v1923 = vshrl.u32 %v1922, 7
    %v1924 = vsub.s32 %v1921, %v1923
    %v1925 = vrot.slane %v1917, %v1924
    %v1927 = vunpack.c.l.s4 1983009808
    %v1928 = vunpack.c.0.s8 %v1927
    %v1929 = vlaneseq
    %v1930 = vshrl.u32 %v1929, 7
    %v1931 = vsub.s32 %v1928, %v1930
    %v1932 = vrot.slane %v1918, %v1931
    %v1933 = vcombine.low %v351, %v887
    %v1934 = vcombine.high %v351, %v887
    %v1936 = vunpack.c.l.s4 1983009808
    %v1937 = vunpack.c.0.s8 %v1936
    %v1938 = vlaneseq
    %v1939 = vshrl.u32 %v1938, 7
    %v1940 = vsub.s32 %v1937, %v1939
    %v1941 = vrot.slane %v1933, %v1940
    %v1943 = vunpack.c.l.s4 1983009808
    %v1944 = vunpack.c.0.s8 %v1943
    %v1945 = vlaneseq
    %v1946 = vshrl.u32 %v1945, 7
    %v1947 = vsub.s32 %v1944, %v1946
    %v1948 = vrot.slane %v1934, %v1947
    %v1949 = vcombine.low %v1925, %v1941
    %v1950 = vcombine.high %v1925, %v1941
    %v1952 = vunpack.c.l.s4 1934713408
    %v1953 = vunpack.c.0.s8 %v1952
    %v1954 = vlaneseq
    %v1955 = vshrl.u32 %v1954, 7
    %v1956 = vsub.s32 %v1953, %v1955
    %v1957 = vrot.slane %v1949, %v1956
    %v1959 = vunpack.c.l.s4 1934713408
    %v1960 = vunpack.c.0.s8 %v1959
    %v1961 = vlaneseq
    %v1962 = vshrl.u32 %v1961, 7
    %v1963 = vsub.s32 %v1960, %v1962
    %v1964 = vrot.slane %v1950, %v1963
    %v1965 = vcombine.low %v1932, %v1948
    %v1966 = vcombine.high %v1932, %v1948
    %v1968 = vunpack.c.l.s4 1934713408
    %v1969 = vunpack.c.0.s8 %v1968
    %v1970 = vlaneseq
    %v1971 = vshrl.u32 %v1970, 7
    %v1972 = vsub.s32 %v1969, %v1971
    %v1973 = vrot.slane %v1965, %v1972
    %v1975 = vunpack.c.l.s4 1934713408
    %v1976 = vunpack.c.0.s8 %v1975
    %v1977 = vlaneseq
    %v1978 = vshrl.u32 %v1977, 7
    %v1979 = vsub.s32 %v1976, %v1978
    %v1980 = vrot.slane %v1966, %v1979
    %v1981 = vcombine.high %v1957, 0.0
    %v1982 = vcombine.high %v1964, 0.0
    %v1983 = vcombine.high %v1973, 0.0
    %v1984 = vcombine.high %v1980, 0.0
    %v1985 = vcombine.low %v87, %v623
    %v1986 = vcombine.high %v87, %v623
    %v1988 = vunpack.c.l.s4 1983009808
    %v1989 = vunpack.c.0.s8 %v1988
    %v1990 = vlaneseq
    %v1991 = vshrl.u32 %v1990, 7
    %v1992 = vsub.s32 %v1989, %v1991
    %v1993 = vrot.slane %v1985, %v1992
    %v1995 = vunpack.c.l.s4 1983009808
    %v1996 = vunpack.c.0.s8 %v1995
    %v1997 = vlaneseq
    %v1998 = vshrl.u32 %v1997, 7
    %v1999 = vsub.s32 %v1996, %v1998
    %v2000 = vrot.slane %v1986, %v1999
    %v2001 = vcombine.low %v355, %v891
    %v2002 = vcombine.high %v355, %v891
    %v2004 = vunpack.c.l.s4 1983009808
    %v2005 = vunpack.c.0.s8 %v2004
    %v2006 = vlaneseq
    %v2007 = vshrl.u32 %v2006, 7
    %v2008 = vsub.s32 %v2005, %v2007
    %v2009 = vrot.slane %v2001, %v2008
    %v2011 = vunpack.c.l.s4 1983009808
    %v2012 = vunpack.c.0.s8 %v2011
    %v2013 = vlaneseq
    %v2014 = vshrl.u32 %v2013, 7
    %v2015 = vsub.s32 %v2012, %v2014
    %v2016 = vrot.slane %v2002, %v2015
    %v2017 = vcombine.low %v1993, %v2009
    %v2018 = vcombine.high %v1993, %v2009
    %v2020 = vunpack.c.l.s4 1934713408
    %v2021 = vunpack.c.0.s8 %v2020
    %v2022 = vlaneseq
    %v2023 = vshrl.u32 %v2022, 7
    %v2024 = vsub.s32 %v2021, %v2023
    %v2025 = vrot.slane %v2017, %v2024
    %v2027 = vunpack.c.l.s4 1934713408
    %v2028 = vunpack.c.0.s8 %v2027
    %v2029 = vlaneseq
    %v2030 = vshrl.u32 %v2029, 7
    %v2031 = vsub.s32 %v2028, %v2030
    %v2032 = vrot.slane %v2018, %v2031
    %v2033 = vcombine.low %v2000, %v2016
    %v2034 = vcombine.high %v2000, %v2016
    %v2036 = vunpack.c.l.s4 1934713408
    %v2037 = vunpack.c.0.s8 %v2036
    %v2038 = vlaneseq
    %v2039 = vshrl.u32 %v2038, 7
    %v2040 = vsub.s32 %v2037, %v2039
    %v2041 = vrot.slane %v2033, %v2040
    %v2043 = vunpack.c.l.s4 1934713408
    %v2044 = vunpack.c.0.s8 %v2043
    %v2045 = vlaneseq
    %v2046 = vshrl.u32 %v2045, 7
    %v2047 = vsub.s32 %v2044, %v2046
    %v2048 = vrot.slane %v2034, %v2047
    %v2049 = vcombine.high %v2025, 0.0
    %v2050 = vcombine.high %v2032, 0.0
    %v2051 = vcombine.high %v2041, 0.0
    %v2052 = vcombine.high %v2048, 0.0
    %v2053 = vcombine.low %v91, %v627
    %v2054 = vcombine.high %v91, %v627
    %v2056 = vunpack.c.l.s4 1983009808
    %v2057 = vunpack.c.0.s8 %v2056
    %v2058 = vlaneseq
    %v2059 = vshrl.u32 %v2058, 7
    %v2060 = vsub.s32 %v2057, %v2059
    %v2061 = vrot.slane %v2053, %v2060
    %v2063 = vunpack.c.l.s4 1983009808
    %v2064 = vunpack.c.0.s8 %v2063
    %v2065 = vlaneseq
    %v2066 = vshrl.u32 %v2065, 7
    %v2067 = vsub.s32 %v2064, %v2066
    %v2068 = vrot.slane %v2054, %v2067
    %v2069 = vcombine.low %v359, %v895
    %v2070 = vcombine.high %v359, %v895
    %v2072 = vunpack.c.l.s4 1983009808
    %v2073 = vunpack.c.0.s8 %v2072
    %v2074 = vlaneseq
    %v2075 = vshrl.u32 %v2074, 7
    %v2076 = vsub.s32 %v2073, %v2075
    %v2077 = vrot.slane %v2069, %v2076
    %v2079 = vunpack.c.l.s4 1983009808
    %v2080 = vunpack.c.0.s8 %v2079
    %v2081 = vlaneseq
    %v2082 = vshrl.u32 %v2081, 7
    %v2083 = vsub.s32 %v2080, %v2082
    %v2084 = vrot.slane %v2070, %v2083
    %v2085 = vcombine.low %v2061, %v2077
    %v2086 = vcombine.high %v2061, %v2077
    %v2088 = vunpack.c.l.s4 1934713408
    %v2089 = vunpack.c.0.s8 %v2088
    %v2090 = vlaneseq
    %v2091 = vshrl.u32 %v2090, 7
    %v2092 = vsub.s32 %v2089, %v2091
    %v2093 = vrot.slane %v2085, %v2092
    %v2095 = vunpack.c.l.s4 1934713408
    %v2096 = vunpack.c.0.s8 %v2095
    %v2097 = vlaneseq
    %v2098 = vshrl.u32 %v2097, 7
    %v2099 = vsub.s32 %v2096, %v2098
    %v2100 = vrot.slane %v2086, %v2099
    %v2101 = vcombine.low %v2068, %v2084
    %v2102 = vcombine.high %v2068, %v2084
    %v2104 = vunpack.c.l.s4 1934713408
    %v2105 = vunpack.c.0.s8 %v2104
    %v2106 = vlaneseq
    %v2107 = vshrl.u32 %v2106, 7
    %v2108 = vsub.s32 %v2105, %v2107
    %v2109 = vrot.slane %v2101, %v2108
    %v2111 = vunpack.c.l.s4 1934713408
    %v2112 = vunpack.c.0.s8 %v2111
    %v2113 = vlaneseq
    %v2114 = vshrl.u32 %v2113, 7
    %v2115 = vsub.s32 %v2112, %v2114
    %v2116 = vrot.slane %v2102, %v2115
    %v2117 = vcombine.high %v2093, 0.0
    %v2118 = vcombine.high %v2100, 0.0
    %v2119 = vcombine.high %v2109, 0.0
    %v2120 = vcombine.high %v2116, 0.0
    %v2121 = vcombine.low %v95, %v631
    %v2122 = vcombine.high %v95, %v631
    %v2124 = vunpack.c.l.s4 1983009808
    %v2125 = vunpack.c.0.s8 %v2124
    %v2126 = vlaneseq
    %v2127 = vshrl.u32 %v2126, 7
    %v2128 = vsub.s32 %v2125, %v2127
    %v2129 = vrot.slane %v2121, %v2128
    %v2131 = vunpack.c.l.s4 1983009808
    %v2132 = vunpack.c.0.s8 %v2131
    %v2133 = vlaneseq
    %v2134 = vshrl.u32 %v2133, 7
    %v2135 = vsub.s32 %v2132, %v2134
    %v2136 = vrot.slane %v2122, %v2135
    %v2137 = vcombine.low %v363, %v899
    %v2138 = vcombine.high %v363, %v899
    %v2140 = vunpack.c.l.s4 1983009808
    %v2141 = vunpack.c.0.s8 %v2140
    %v2142 = vlaneseq
    %v2143 = vshrl.u32 %v2142, 7
    %v2144 = vsub.s32 %v2141, %v2143
    %v2145 = vrot.slane %v2137, %v2144
    %v2147 = vunpack.c.l.s4 1983009808
    %v2148 = vunpack.c.0.s8 %v2147
    %v2149 = vlaneseq
    %v2150 = vshrl.u32 %v2149, 7
    %v2151 = vsub.s32 %v2148, %v2150
    %v2152 = vrot.slane %v2138, %v2151
    %v2153 = vcombine.low %v2129, %v2145
    %v2154 = vcombine.high %v2129, %v2145
    %v2156 = vunpack.c.l.s4 1934713408
    %v2157 = vunpack.c.0.s8 %v2156
    %v2158 = vlaneseq
    %v2159 = vshrl.u32 %v2158, 7
    %v2160 = vsub.s32 %v2157, %v2159
    %v2161 = vrot.slane %v2153, %v2160
    %v2163 = vunpack.c.l.s4 1934713408
    %v2164 = vunpack.c.0.s8 %v2163
    %v2165 = vlaneseq
    %v2166 = vshrl.u32 %v2165, 7
    %v2167 = vsub.s32 %v2164, %v2166
    %v2168 = vrot.slane %v2154, %v2167
    %v2169 = vcombine.low %v2136, %v2152
    %v2170 = vcombine.high %v2136, %v2152
    %v2172 = vunpack.c.l.s4 1934713408
    %v2173 = vunpack.c.0.s8 %v2172
    %v2174 = vlaneseq
    %v2175 = vshrl.u32 %v2174, 7
    %v2176 = vsub.s32 %v2173, %v2175
    %v2177 = vrot.slane %v2169, %v2176
    %v2179 = vunpack.c.l.s4 1934713408
    %v2180 = vunpack.c.0.s8 %v2179
    %v2181 = vlaneseq
    %v2182 = vshrl.u32 %v2181, 7
    %v2183 = vsub.s32 %v2180, %v2182
    %v2184 = vrot.slane %v2170, %v2183
    %v2185 = vcombine.high %v2161, 0.0
    %v2186 = vcombine.high %v2168, 0.0
    %v2187 = vcombine.high %v2177, 0.0
    %v2188 = vcombine.high %v2184, 0.0
    %v2189 = vcombine.low %v102, %v638
    %v2190 = vcombine.high %v102, %v638
    %v2192 = vunpack.c.l.s4 1983009808
    %v2193 = vunpack.c.0.s8 %v2192
    %v2194 = vlaneseq
    %v2195 = vshrl.u32 %v2194, 7
    %v2196 = vsub.s32 %v2193, %v2195
    %v2197 = vrot.slane %v2189, %v2196
    %v2199 = vunpack.c.l.s4 1983009808
    %v2200 = vunpack.c.0.s8 %v2199
    %v2201 = vlaneseq
    %v2202 = vshrl.u32 %v2201, 7
    %v2203 = vsub.s32 %v2200, %v2202
    %v2204 = vrot.slane %v2190, %v2203
    %v2205 = vcombine.low %v370, %v906
    %v2206 = vcombine.high %v370, %v906
    %v2208 = vunpack.c.l.s4 1983009808
    %v2209 = vunpack.c.0.s8 %v2208
    %v2210 = vlaneseq
    %v2211 = vshrl.u32 %v2210, 7
    %v2212 = vsub.s32 %v2209, %v2211
    %v2213 = vrot.slane %v2205, %v2212
    %v2215 = vunpack.c.l.s4 1983009808
    %v2216 = vunpack.c.0.s8 %v2215
    %v2217 = vlaneseq
    %v2218 = vshrl.u32 %v2217, 7
    %v2219 = vsub.s32 %v2216, %v2218
    %v2220 = vrot.slane %v2206, %v2219
    %v2221 = vcombine.low %v2197, %v2213
    %v2222 = vcombine.high %v2197, %v2213
    %v2224 = vunpack.c.l.s4 1934713408
    %v2225 = vunpack.c.0.s8 %v2224
    %v2226 = vlaneseq
    %v2227 = vshrl.u32 %v2226, 7
    %v2228 = vsub.s32 %v2225, %v2227
    %v2229 = vrot.slane %v2221, %v2228
    %v2231 = vunpack.c.l.s4 1934713408
    %v2232 = vunpack.c.0.s8 %v2231
    %v2233 = vlaneseq
    %v2234 = vshrl.u32 %v2233, 7
    %v2235 = vsub.s32 %v2232, %v2234
    %v2236 = vrot.slane %v2222, %v2235
    %v2237 = vcombine.low %v2204, %v2220
    %v2238 = vcombine.high %v2204, %v2220
    %v2240 = vunpack.c.l.s4 1934713408
    %v2241 = vunpack.c.0.s8 %v2240
    %v2242 = vlaneseq
    %v2243 = vshrl.u32 %v2242, 7
    %v2244 = vsub.s32 %v2241, %v2243
    %v2245 = vrot.slane %v2237, %v2244
    %v2247 = vunpack.c.l.s4 1934713408
    %v2248 = vunpack.c.0.s8 %v2247
    %v2249 = vlaneseq
    %v2250 = vshrl.u32 %v2249, 7
    %v2251 = vsub.s32 %v2248, %v2250
    %v2252 = vrot.slane %v2238, %v2251
    %v2253 = vcombine.high %v2229, 0.0
    %v2254 = vcombine.high %v2236, 0.0
    %v2255 = vcombine.high %v2245, 0.0
    %v2256 = vcombine.high %v2252, 0.0
    %v2257 = vcombine.low %v106, %v642
    %v2258 = vcombine.high %v106, %v642
    %v2260 = vunpack.c.l.s4 1983009808
    %v2261 = vunpack.c.0.s8 %v2260
    %v2262 = vlaneseq
    %v2263 = vshrl.u32 %v2262, 7
    %v2264 = vsub.s32 %v2261, %v2263
    %v2265 = vrot.slane %v2257, %v2264
    %v2267 = vunpack.c.l.s4 1983009808
    %v2268 = vunpack.c.0.s8 %v2267
    %v2269 = vlaneseq
    %v2270 = vshrl.u32 %v2269, 7
    %v2271 = vsub.s32 %v2268, %v2270
    %v2272 = vrot.slane %v2258, %v2271
    %v2273 = vcombine.low %v374, %v910
    %v2274 = vcombine.high %v374, %v910
    %v2276 = vunpack.c.l.s4 1983009808
    %v2277 = vunpack.c.0.s8 %v2276
    %v2278 = vlaneseq
    %v2279 = vshrl.u32 %v2278, 7
    %v2280 = vsub.s32 %v2277, %v2279
    %v2281 = vrot.slane %v2273, %v2280
    %v2283 = vunpack.c.l.s4 1983009808
    %v2284 = vunpack.c.0.s8 %v2283
    %v2285 = vlaneseq
    %v2286 = vshrl.u32 %v2285, 7
    %v2287 = vsub.s32 %v2284, %v2286
    %v2288 = vrot.slane %v2274, %v2287
    %v2289 = vcombine.low %v2265, %v2281
    %v2290 = vcombine.high %v2265, %v2281
    %v2292 = vunpack.c.l.s4 1934713408
    %v2293 = vunpack.c.0.s8 %v2292
    %v2294 = vlaneseq
    %v2295 = vshrl.u32 %v2294, 7
    %v2296 = vsub.s32 %v2293, %v2295
    %v2297 = vrot.slane %v2289, %v2296
    %v2299 = vunpack.c.l.s4 1934713408
    %v2300 = vunpack.c.0.s8 %v2299
    %v2301 = vlaneseq
    %v2302 = vshrl.u32 %v2301, 7
    %v2303 = vsub.s32 %v2300, %v2302
    %v2304 = vrot.slane %v2290, %v2303
    %v2305 = vcombine.low %v2272, %v2288
    %v2306 = vcombine.high %v2272, %v2288
    %v2308 = vunpack.c.l.s4 1934713408
    %v2309 = vunpack.c.0.s8 %v2308
    %v2310 = vlaneseq
    %v2311 = vshrl.u32 %v2310, 7
    %v2312 = vsub.s32 %v2309, %v2311
    %v2313 = vrot.slane %v2305, %v2312
    %v2315 = vunpack.c.l.s4 1934713408
    %v2316 = vunpack.c.0.s8 %v2315
    %v2317 = vlaneseq
    %v2318 = vshrl.u32 %v2317, 7
    %v2319 = vsub.s32 %v2316, %v2318
    %v2320 = vrot.slane %v2306, %v2319
    %v2321 = vcombine.high %v2297, 0.0
    %v2322 = vcombine.high %v2304, 0.0
    %v2323 = vcombine.high %v2313, 0.0
    %v2324 = vcombine.high %v2320, 0.0
    %v2325 = vcombine.low %v110, %v646
    %v2326 = vcombine.high %v110, %v646
    %v2328 = vunpack.c.l.s4 1983009808
    %v2329 = vunpack.c.0.s8 %v2328
    %v2330 = vlaneseq
    %v2331 = vshrl.u32 %v2330, 7
    %v2332 = vsub.s32 %v2329, %v2331
    %v2333 = vrot.slane %v2325, %v2332
    %v2335 = vunpack.c.l.s4 1983009808
    %v2336 = vunpack.c.0.s8 %v2335
    %v2337 = vlaneseq
    %v2338 = vshrl.u32 %v2337, 7
    %v2339 = vsub.s32 %v2336, %v2338
    %v2340 = vrot.slane %v2326, %v2339
    %v2341 = vcombine.low %v378, %v914
    %v2342 = vcombine.high %v378, %v914
    %v2344 = vunpack.c.l.s4 1983009808
    %v2345 = vunpack.c.0.s8 %v2344
    %v2346 = vlaneseq
    %v2347 = vshrl.u32 %v2346, 7
    %v2348 = vsub.s32 %v2345, %v2347
    %v2349 = vrot.slane %v2341, %v2348
    %v2351 = vunpack.c.l.s4 1983009808
    %v2352 = vunpack.c.0.s8 %v2351
    %v2353 = vlaneseq
    %v2354 = vshrl.u32 %v2353, 7
    %v2355 = vsub.s32 %v2352, %v2354
    %v2356 = vrot.slane %v2342, %v2355
    %v2357 = vcombine.low %v2333, %v2349
    %v2358 = vcombine.high %v2333, %v2349
    %v2360 = vunpack.c.l.s4 1934713408
    %v2361 = vunpack.c.0.s8 %v2360
    %v2362 = vlaneseq
    %v2363 = vshrl.u32 %v2362, 7
    %v2364 = vsub.s32 %v2361, %v2363
    %v2365 = vrot.slane %v2357, %v2364
    %v2367 = vunpack.c.l.s4 1934713408
    %v2368 = vunpack.c.0.s8 %v2367
    %v2369 = vlaneseq
    %v2370 = vshrl.u32 %v2369, 7
    %v2371 = vsub.s32 %v2368, %v2370
    %v2372 = vrot.slane %v2358, %v2371
    %v2373 = vcombine.low %v2340, %v2356
    %v2374 = vcombine.high %v2340, %v2356
    %v2376 = vunpack.c.l.s4 1934713408
    %v2377 = vunpack.c.0.s8 %v2376
    %v2378 = vlaneseq
    %v2379 = vshrl.u32 %v2378, 7
    %v2380 = vsub.s32 %v2377, %v2379
    %v2381 = vrot.slane %v2373, %v2380
    %v2383 = vunpack.c.l.s4 1934713408
    %v2384 = vunpack.c.0.s8 %v2383
    %v2385 = vlaneseq
    %v2386 = vshrl.u32 %v2385, 7
    %v2387 = vsub.s32 %v2384, %v2386
    %v2388 = vrot.slane %v2374, %v2387
    %v2389 = vcombine.high %v2365, 0.0
    %v2390 = vcombine.high %v2372, 0.0
    %v2391 = vcombine.high %v2381, 0.0
    %v2392 = vcombine.high %v2388, 0.0
    %v2393 = vcombine.low %v114, %v650
    %v2394 = vcombine.high %v114, %v650
    %v2396 = vunpack.c.l.s4 1983009808
    %v2397 = vunpack.c.0.s8 %v2396
    %v2398 = vlaneseq
    %v2399 = vshrl.u32 %v2398, 7
    %v2400 = vsub.s32 %v2397, %v2399
    %v2401 = vrot.slane %v2393, %v2400
    %v2403 = vunpack.c.l.s4 1983009808
    %v2404 = vunpack.c.0.s8 %v2403
    %v2405 = vlaneseq
    %v2406 = vshrl.u32 %v2405, 7
    %v2407 = vsub.s32 %v2404, %v2406
    %v2408 = vrot.slane %v2394, %v2407
    %v2409 = vcombine.low %v382, %v918
    %v2410 = vcombine.high %v382, %v918
    %v2412 = vunpack.c.l.s4 1983009808
    %v2413 = vunpack.c.0.s8 %v2412
    %v2414 = vlaneseq
    %v2415 = vshrl.u32 %v2414, 7
    %v2416 = vsub.s32 %v2413, %v2415
    %v2417 = vrot.slane %v2409, %v2416
    %v2419 = vunpack.c.l.s4 1983009808
    %v2420 = vunpack.c.0.s8 %v2419
    %v2421 = vlaneseq
    %v2422 = vshrl.u32 %v2421, 7
    %v2423 = vsub.s32 %v2420, %v2422
    %v2424 = vrot.slane %v2410, %v2423
    %v2425 = vcombine.low %v2401, %v2417
    %v2426 = vcombine.high %v2401, %v2417
    %v2428 = vunpack.c.l.s4 1934713408
    %v2429 = vunpack.c.0.s8 %v2428
    %v2430 = vlaneseq
    %v2431 = vshrl.u32 %v2430, 7
    %v2432 = vsub.s32 %v2429, %v2431
    %v2433 = vrot.slane %v2425, %v2432
    %v2435 = vunpack.c.l.s4 1934713408
    %v2436 = vunpack.c.0.s8 %v2435
    %v2437 = vlaneseq
    %v2438 = vshrl.u32 %v2437, 7
    %v2439 = vsub.s32 %v2436, %v2438
    %v2440 = vrot.slane %v2426, %v2439
    %v2441 = vcombine.low %v2408, %v2424
    %v2442 = vcombine.high %v2408, %v2424
    %v2444 = vunpack.c.l.s4 1934713408
    %v2445 = vunpack.c.0.s8 %v2444
    %v2446 = vlaneseq
    %v2447 = vshrl.u32 %v2446, 7
    %v2448 = vsub.s32 %v2445, %v2447
    %v2449 = vrot.slane %v2441, %v2448
    %v2451 = vunpack.c.l.s4 1934713408
    %v2452 = vunpack.c.0.s8 %v2451
    %v2453 = vlaneseq
    %v2454 = vshrl.u32 %v2453, 7
    %v2455 = vsub.s32 %v2452, %v2454
    %v2456 = vrot.slane %v2442, %v2455
    %v2457 = vcombine.high %v2433, 0.0
    %v2458 = vcombine.high %v2440, 0.0
    %v2459 = vcombine.high %v2449, 0.0
    %v2460 = vcombine.high %v2456, 0.0
    %v2461 = vcombine.low %v118, %v654
    %v2462 = vcombine.high %v118, %v654
    %v2464 = vunpack.c.l.s4 1983009808
    %v2465 = vunpack.c.0.s8 %v2464
    %v2466 = vlaneseq
    %v2467 = vshrl.u32 %v2466, 7
    %v2468 = vsub.s32 %v2465, %v2467
    %v2469 = vrot.slane %v2461, %v2468
    %v2471 = vunpack.c.l.s4 1983009808
    %v2472 = vunpack.c.0.s8 %v2471
    %v2473 = vlaneseq
    %v2474 = vshrl.u32 %v2473, 7
    %v2475 = vsub.s32 %v2472, %v2474
    %v2476 = vrot.slane %v2462, %v2475
    %v2477 = vcombine.low %v386, %v922
    %v2478 = vcombine.high %v386, %v922
    %v2480 = vunpack.c.l.s4 1983009808
    %v2481 = vunpack.c.0.s8 %v2480
    %v2482 = vlaneseq
    %v2483 = vshrl.u32 %v2482, 7
    %v2484 = vsub.s32 %v2481, %v2483
    %v2485 = vrot.slane %v2477, %v2484
    %v2487 = vunpack.c.l.s4 1983009808
    %v2488 = vunpack.c.0.s8 %v2487
    %v2489 = vlaneseq
    %v2490 = vshrl.u32 %v2489, 7
    %v2491 = vsub.s32 %v2488, %v2490
    %v2492 = vrot.slane %v2478, %v2491
    %v2493 = vcombine.low %v2469, %v2485
    %v2494 = vcombine.high %v2469, %v2485
    %v2496 = vunpack.c.l.s4 1934713408
    %v2497 = vunpack.c.0.s8 %v2496
    %v2498 = vlaneseq
    %v2499 = vshrl.u32 %v2498, 7
    %v2500 = vsub.s32 %v2497, %v2499
    %v2501 = vrot.slane %v2493, %v2500
    %v2503 = vunpack.c.l.s4 1934713408
    %v2504 = vunpack.c.0.s8 %v2503
    %v2505 = vlaneseq
    %v2506 = vshrl.u32 %v2505, 7
    %v2507 = vsub.s32 %v2504, %v2506
    %v2508 = vrot.slane %v2494, %v2507
    %v2509 = vcombine.low %v2476, %v2492
    %v2510 = vcombine.high %v2476, %v2492
    %v2512 = vunpack.c.l.s4 1934713408
    %v2513 = vunpack.c.0.s8 %v2512
    %v2514 = vlaneseq
    %v2515 = vshrl.u32 %v2514, 7
    %v2516 = vsub.s32 %v2513, %v2515
    %v2517 = vrot.slane %v2509, %v2516
    %v2519 = vunpack.c.l.s4 1934713408
    %v2520 = vunpack.c.0.s8 %v2519
    %v2521 = vlaneseq
    %v2522 = vshrl.u32 %v2521, 7
    %v2523 = vsub.s32 %v2520, %v2522
    %v2524 = vrot.slane %v2510, %v2523
    %v2525 = vcombine.high %v2501, 0.0
    %v2526 = vcombine.high %v2508, 0.0
    %v2527 = vcombine.high %v2517, 0.0
    %v2528 = vcombine.high %v2524, 0.0
    %v2529 = vcombine.low %v122, %v658
    %v2530 = vcombine.high %v122, %v658
    %v2532 = vunpack.c.l.s4 1983009808
    %v2533 = vunpack.c.0.s8 %v2532
    %v2534 = vlaneseq
    %v2535 = vshrl.u32 %v2534, 7
    %v2536 = vsub.s32 %v2533, %v2535
    %v2537 = vrot.slane %v2529, %v2536
    %v2539 = vunpack.c.l.s4 1983009808
    %v2540 = vunpack.c.0.s8 %v2539
    %v2541 = vlaneseq
    %v2542 = vshrl.u32 %v2541, 7
    %v2543 = vsub.s32 %v2540, %v2542
    %v2544 = vrot.slane %v2530, %v2543
    %v2545 = vcombine.low %v390, %v926
    %v2546 = vcombine.high %v390, %v926
    %v2548 = vunpack.c.l.s4 1983009808
    %v2549 = vunpack.c.0.s8 %v2548
    %v2550 = vlaneseq
    %v2551 = vshrl.u32 %v2550, 7
    %v2552 = vsub.s32 %v2549, %v2551
    %v2553 = vrot.slane %v2545, %v2552
    %v2555 = vunpack.c.l.s4 1983009808
    %v2556 = vunpack.c.0.s8 %v2555
    %v2557 = vlaneseq
    %v2558 = vshrl.u32 %v2557, 7
    %v2559 = vsub.s32 %v2556, %v2558
    %v2560 = vrot.slane %v2546, %v2559
    %v2561 = vcombine.low %v2537, %v2553
    %v2562 = vcombine.high %v2537, %v2553
    %v2564 = vunpack.c.l.s4 1934713408
    %v2565 = vunpack.c.0.s8 %v2564
    %v2566 = vlaneseq
    %v2567 = vshrl.u32 %v2566, 7
    %v2568 = vsub.s32 %v2565, %v2567
    %v2569 = vrot.slane %v2561, %v2568
    %v2571 = vunpack.c.l.s4 1934713408
    %v2572 = vunpack.c.0.s8 %v2571
    %v2573 = vlaneseq
    %v2574 = vshrl.u32 %v2573, 7
    %v2575 = vsub.s32 %v2572, %v2574
    %v2576 = vrot.slane %v2562, %v2575
    %v2577 = vcombine.low %v2544, %v2560
    %v2578 = vcombine.high %v2544, %v2560
    %v2580 = vunpack.c.l.s4 1934713408
    %v2581 = vunpack.c.0.s8 %v2580
    %v2582 = vlaneseq
    %v2583 = vshrl.u32 %v2582, 7
    %v2584 = vsub.s32 %v2581, %v2583
    %v2585 = vrot.slane %v2577, %v2584
    %v2587 = vunpack.c.l.s4 1934713408
    %v2588 = vunpack.c.0.s8 %v2587
    %v2589 = vlaneseq
    %v2590 = vshrl.u32 %v2589, 7
    %v2591 = vsub.s32 %v2588, %v2590
    %v2592 = vrot.slane %v2578, %v2591
    %v2593 = vcombine.high %v2569, 0.0
    %v2594 = vcombine.high %v2576, 0.0
    %v2595 = vcombine.high %v2585, 0.0
    %v2596 = vcombine.high %v2592, 0.0
    %v2597 = vcombine.low %v126, %v662
    %v2598 = vcombine.high %v126, %v662
    %v2600 = vunpack.c.l.s4 1983009808
    %v2601 = vunpack.c.0.s8 %v2600
    %v2602 = vlaneseq
    %v2603 = vshrl.u32 %v2602, 7
    %v2604 = vsub.s32 %v2601, %v2603
    %v2605 = vrot.slane %v2597, %v2604
    %v2607 = vunpack.c.l.s4 1983009808
    %v2608 = vunpack.c.0.s8 %v2607
    %v2609 = vlaneseq
    %v2610 = vshrl.u32 %v2609, 7
    %v2611 = vsub.s32 %v2608, %v2610
    %v2612 = vrot.slane %v2598, %v2611
    %v2613 = vcombine.low %v394, %v930
    %v2614 = vcombine.high %v394, %v930
    %v2616 = vunpack.c.l.s4 1983009808
    %v2617 = vunpack.c.0.s8 %v2616
    %v2618 = vlaneseq
    %v2619 = vshrl.u32 %v2618, 7
    %v2620 = vsub.s32 %v2617, %v2619
    %v2621 = vrot.slane %v2613, %v2620
    %v2623 = vunpack.c.l.s4 1983009808
    %v2624 = vunpack.c.0.s8 %v2623
    %v2625 = vlaneseq
    %v2626 = vshrl.u32 %v2625, 7
    %v2627 = vsub.s32 %v2624, %v2626
    %v2628 = vrot.slane %v2614, %v2627
    %v2629 = vcombine.low %v2605, %v2621
    %v2630 = vcombine.high %v2605, %v2621
    %v2632 = vunpack.c.l.s4 1934713408
    %v2633 = vunpack.c.0.s8 %v2632
    %v2634 = vlaneseq
    %v2635 = vshrl.u32 %v2634, 7
    %v2636 = vsub.s32 %v2633, %v2635
    %v2637 = vrot.slane %v2629, %v2636
    %v2639 = vunpack.c.l.s4 1934713408
    %v2640 = vunpack.c.0.s8 %v2639
    %v2641 = vlaneseq
    %v2642 = vshrl.u32 %v2641, 7
    %v2643 = vsub.s32 %v2640, %v2642
    %v2644 = vrot.slane %v2630, %v2643
    %v2645 = vcombine.low %v2612, %v2628
    %v2646 = vcombine.high %v2612, %v2628
    %v2648 = vunpack.c.l.s4 1934713408
    %v2649 = vunpack.c.0.s8 %v2648
    %v2650 = vlaneseq
    %v2651 = vshrl.u32 %v2650, 7
    %v2652 = vsub.s32 %v2649, %v2651
    %v2653 = vrot.slane %v2645, %v2652
    %v2655 = vunpack.c.l.s4 1934713408
    %v2656 = vunpack.c.0.s8 %v2655
    %v2657 = vlaneseq
    %v2658 = vshrl.u32 %v2657, 7
    %v2659 = vsub.s32 %v2656, %v2658
    %v2660 = vrot.slane %v2646, %v2659
    %v2661 = vcombine.high %v2637, 0.0
    %v2662 = vcombine.high %v2644, 0.0
    %v2663 = vcombine.high %v2653, 0.0
    %v2664 = vcombine.high %v2660, 0.0
    %v2665 = vcombine.low %v130, %v666
    %v2666 = vcombine.high %v130, %v666
    %v2668 = vunpack.c.l.s4 1983009808
    %v2669 = vunpack.c.0.s8 %v2668
    %v2670 = vlaneseq
    %v2671 = vshrl.u32 %v2670, 7
    %v2672 = vsub.s32 %v2669, %v2671
    %v2673 = vrot.slane %v2665, %v2672
    %v2675 = vunpack.c.l.s4 1983009808
    %v2676 = vunpack.c.0.s8 %v2675
    %v2677 = vlaneseq
    %v2678 = vshrl.u32 %v2677, 7
    %v2679 = vsub.s32 %v2676, %v2678
    %v2680 = vrot.slane %v2666, %v2679
    %v2681 = vcombine.low %v398, %v934
    %v2682 = vcombine.high %v398, %v934
    %v2684 = vunpack.c.l.s4 1983009808
    %v2685 = vunpack.c.0.s8 %v2684
    %v2686 = vlaneseq
    %v2687 = vshrl.u32 %v2686, 7
    %v2688 = vsub.s32 %v2685, %v2687
    %v2689 = vrot.slane %v2681, %v2688
    %v2691 = vunpack.c.l.s4 1983009808
    %v2692 = vunpack.c.0.s8 %v2691
    %v2693 = vlaneseq
    %v2694 = vshrl.u32 %v2693, 7
    %v2695 = vsub.s32 %v2692, %v2694
    %v2696 = vrot.slane %v2682, %v2695
    %v2697 = vcombine.low %v2673, %v2689
    %v2698 = vcombine.high %v2673, %v2689
    %v2700 = vunpack.c.l.s4 1934713408
    %v2701 = vunpack.c.0.s8 %v2700
    %v2702 = vlaneseq
    %v2703 = vshrl.u32 %v2702, 7
    %v2704 = vsub.s32 %v2701, %v2703
    %v2705 = vrot.slane %v2697, %v2704
    %v2707 = vunpack.c.l.s4 1934713408
    %v2708 = vunpack.c.0.s8 %v2707
    %v2709 = vlaneseq
    %v2710 = vshrl.u32 %v2709, 7
    %v2711 = vsub.s32 %v2708, %v2710
    %v2712 = vrot.slane %v2698, %v2711
    %v2713 = vcombine.low %v2680, %v2696
    %v2714 = vcombine.high %v2680, %v2696
    %v2716 = vunpack.c.l.s4 1934713408
    %v2717 = vunpack.c.0.s8 %v2716
    %v2718 = vlaneseq
    %v2719 = vshrl.u32 %v2718, 7
    %v2720 = vsub.s32 %v2717, %v2719
    %v2721 = vrot.slane %v2713, %v2720
    %v2723 = vunpack.c.l.s4 1934713408
    %v2724 = vunpack.c.0.s8 %v2723
    %v2725 = vlaneseq
    %v2726 = vshrl.u32 %v2725, 7
    %v2727 = vsub.s32 %v2724, %v2726
    %v2728 = vrot.slane %v2714, %v2727
    %v2729 = vcombine.high %v2705, 0.0
    %v2730 = vcombine.high %v2712, 0.0
    %v2731 = vcombine.high %v2721, 0.0
    %v2732 = vcombine.high %v2728, 0.0
    %v2733 = vcombine.low %v134, %v670
    %v2734 = vcombine.high %v134, %v670
    %v2736 = vunpack.c.l.s4 1983009808
    %v2737 = vunpack.c.0.s8 %v2736
    %v2738 = vlaneseq
    %v2739 = vshrl.u32 %v2738, 7
    %v2740 = vsub.s32 %v2737, %v2739
    %v2741 = vrot.slane %v2733, %v2740
    %v2743 = vunpack.c.l.s4 1983009808
    %v2744 = vunpack.c.0.s8 %v2743
    %v2745 = vlaneseq
    %v2746 = vshrl.u32 %v2745, 7
    %v2747 = vsub.s32 %v2744, %v2746
    %v2748 = vrot.slane %v2734, %v2747
    %v2749 = vcombine.low %v402, %v938
    %v2750 = vcombine.high %v402, %v938
    %v2752 = vunpack.c.l.s4 1983009808
    %v2753 = vunpack.c.0.s8 %v2752
    %v2754 = vlaneseq
    %v2755 = vshrl.u32 %v2754, 7
    %v2756 = vsub.s32 %v2753, %v2755
    %v2757 = vrot.slane %v2749, %v2756
    %v2759 = vunpack.c.l.s4 1983009808
    %v2760 = vunpack.c.0.s8 %v2759
    %v2761 = vlaneseq
    %v2762 = vshrl.u32 %v2761, 7
    %v2763 = vsub.s32 %v2760, %v2762
    %v2764 = vrot.slane %v2750, %v2763
    %v2765 = vcombine.low %v2741, %v2757
    %v2766 = vcombine.high %v2741, %v2757
    %v2768 = vunpack.c.l.s4 1934713408
    %v2769 = vunpack.c.0.s8 %v2768
    %v2770 = vlaneseq
    %v2771 = vshrl.u32 %v2770, 7
    %v2772 = vsub.s32 %v2769, %v2771
    %v2773 = vrot.slane %v2765, %v2772
    %v2775 = vunpack.c.l.s4 1934713408
    %v2776 = vunpack.c.0.s8 %v2775
    %v2777 = vlaneseq
    %v2778 = vshrl.u32 %v2777, 7
    %v2779 = vsub.s32 %v2776, %v2778
    %v2780 = vrot.slane %v2766, %v2779
    %v2781 = vcombine.low %v2748, %v2764
    %v2782 = vcombine.high %v2748, %v2764
    %v2784 = vunpack.c.l.s4 1934713408
    %v2785 = vunpack.c.0.s8 %v2784
    %v2786 = vlaneseq
    %v2787 = vshrl.u32 %v2786, 7
    %v2788 = vsub.s32 %v2785, %v2787
    %v2789 = vrot.slane %v2781, %v2788
    %v2791 = vunpack.c.l.s4 1934713408
    %v2792 = vunpack.c.0.s8 %v2791
    %v2793 = vlaneseq
    %v2794 = vshrl.u32 %v2793, 7
    %v2795 = vsub.s32 %v2792, %v2794
    %v2796 = vrot.slane %v2782, %v2795
    %v2797 = vcombine.high %v2773, 0.0
    %v2798 = vcombine.high %v2780, 0.0
    %v2799 = vcombine.high %v2789, 0.0
    %v2800 = vcombine.high %v2796, 0.0
    %v2801 = vcombine.low %v138, %v674
    %v2802 = vcombine.high %v138, %v674
    %v2804 = vunpack.c.l.s4 1983009808
    %v2805 = vunpack.c.0.s8 %v2804
    %v2806 = vlaneseq
    %v2807 = vshrl.u32 %v2806, 7
    %v2808 = vsub.s32 %v2805, %v2807
    %v2809 = vrot.slane %v2801, %v2808
    %v2811 = vunpack.c.l.s4 1983009808
    %v2812 = vunpack.c.0.s8 %v2811
    %v2813 = vlaneseq
    %v2814 = vshrl.u32 %v2813, 7
    %v2815 = vsub.s32 %v2812, %v2814
    %v2816 = vrot.slane %v2802, %v2815
    %v2817 = vcombine.low %v406, %v942
    %v2818 = vcombine.high %v406, %v942
    %v2820 = vunpack.c.l.s4 1983009808
    %v2821 = vunpack.c.0.s8 %v2820
    %v2822 = vlaneseq
    %v2823 = vshrl.u32 %v2822, 7
    %v2824 = vsub.s32 %v2821, %v2823
    %v2825 = vrot.slane %v2817, %v2824
    %v2827 = vunpack.c.l.s4 1983009808
    %v2828 = vunpack.c.0.s8 %v2827
    %v2829 = vlaneseq
    %v2830 = vshrl.u32 %v2829, 7
    %v2831 = vsub.s32 %v2828, %v2830
    %v2832 = vrot.slane %v2818, %v2831
    %v2833 = vcombine.low %v2809, %v2825
    %v2834 = vcombine.high %v2809, %v2825
    %v2836 = vunpack.c.l.s4 1934713408
    %v2837 = vunpack.c.0.s8 %v2836
    %v2838 = vlaneseq
    %v2839 = vshrl.u32 %v2838, 7
    %v2840 = vsub.s32 %v2837, %v2839
    %v2841 = vrot.slane %v2833, %v2840
    %v2843 = vunpack.c.l.s4 1934713408
    %v2844 = vunpack.c.0.s8 %v2843
    %v2845 = vlaneseq
    %v2846 = vshrl.u32 %v2845, 7
    %v2847 = vsub.s32 %v2844, %v2846
    %v2848 = vrot.slane %v2834, %v2847
    %v2849 = vcombine.low %v2816, %v2832
    %v2850 = vcombine.high %v2816, %v2832
    %v2852 = vunpack.c.l.s4 1934713408
    %v2853 = vunpack.c.0.s8 %v2852
    %v2854 = vlaneseq
    %v2855 = vshrl.u32 %v2854, 7
    %v2856 = vsub.s32 %v2853, %v2855
    %v2857 = vrot.slane %v2849, %v2856
    %v2859 = vunpack.c.l.s4 1934713408
    %v2860 = vunpack.c.0.s8 %v2859
    %v2861 = vlaneseq
    %v2862 = vshrl.u32 %v2861, 7
    %v2863 = vsub.s32 %v2860, %v2862
    %v2864 = vrot.slane %v2850, %v2863
    %v2865 = vcombine.high %v2841, 0.0
    %v2866 = vcombine.high %v2848, 0.0
    %v2867 = vcombine.high %v2857, 0.0
    %v2868 = vcombine.high %v2864, 0.0
    %v2869 = vcombine.low %v142, %v678
    %v2870 = vcombine.high %v142, %v678
    %v2872 = vunpack.c.l.s4 1983009808
    %v2873 = vunpack.c.0.s8 %v2872
    %v2874 = vlaneseq
    %v2875 = vshrl.u32 %v2874, 7
    %v2876 = vsub.s32 %v2873, %v2875
    %v2877 = vrot.slane %v2869, %v2876
    %v2879 = vunpack.c.l.s4 1983009808
    %v2880 = vunpack.c.0.s8 %v2879
    %v2881 = vlaneseq
    %v2882 = vshrl.u32 %v2881, 7
    %v2883 = vsub.s32 %v2880, %v2882
    %v2884 = vrot.slane %v2870, %v2883
    %v2885 = vcombine.low %v410, %v946
    %v2886 = vcombine.high %v410, %v946
    %v2888 = vunpack.c.l.s4 1983009808
    %v2889 = vunpack.c.0.s8 %v2888
    %v2890 = vlaneseq
    %v2891 = vshrl.u32 %v2890, 7
    %v2892 = vsub.s32 %v2889, %v2891
    %v2893 = vrot.slane %v2885, %v2892
    %v2895 = vunpack.c.l.s4 1983009808
    %v2896 = vunpack.c.0.s8 %v2895
    %v2897 = vlaneseq
    %v2898 = vshrl.u32 %v2897, 7
    %v2899 = vsub.s32 %v2896, %v2898
    %v2900 = vrot.slane %v2886, %v2899
    %v2901 = vcombine.low %v2877, %v2893
    %v2902 = vcombine.high %v2877, %v2893
    %v2904 = vunpack.c.l.s4 1934713408
    %v2905 = vunpack.c.0.s8 %v2904
    %v2906 = vlaneseq
    %v2907 = vshrl.u32 %v2906, 7
    %v2908 = vsub.s32 %v2905, %v2907
    %v2909 = vrot.slane %v2901, %v2908
    %v2911 = vunpack.c.l.s4 1934713408
    %v2912 = vunpack.c.0.s8 %v2911
    %v2913 = vlaneseq
    %v2914 = vshrl.u32 %v2913, 7
    %v2915 = vsub.s32 %v2912, %v2914
    %v2916 = vrot.slane %v2902, %v2915
    %v2917 = vcombine.low %v2884, %v2900
    %v2918 = vcombine.high %v2884, %v2900
    %v2920 = vunpack.c.l.s4 1934713408
    %v2921 = vunpack.c.0.s8 %v2920
    %v2922 = vlaneseq
    %v2923 = vshrl.u32 %v2922, 7
    %v2924 = vsub.s32 %v2921, %v2923
    %v2925 = vrot.slane %v2917, %v2924
    %v2927 = vunpack.c.l.s4 1934713408
    %v2928 = vunpack.c.0.s8 %v2927
    %v2929 = vlaneseq
    %v2930 = vshrl.u32 %v2929, 7
    %v2931 = vsub.s32 %v2928, %v2930
    %v2932 = vrot.slane %v2918, %v2931
    %v2933 = vcombine.high %v2909, 0.0
    %v2934 = vcombine.high %v2916, 0.0
    %v2935 = vcombine.high %v2925, 0.0
    %v2936 = vcombine.high %v2932, 0.0
    %v2937 = vcombine.low %v146, %v682
    %v2938 = vcombine.high %v146, %v682
    %v2940 = vunpack.c.l.s4 1983009808
    %v2941 = vunpack.c.0.s8 %v2940
    %v2942 = vlaneseq
    %v2943 = vshrl.u32 %v2942, 7
    %v2944 = vsub.s32 %v2941, %v2943
    %v2945 = vrot.slane %v2937, %v2944
    %v2947 = vunpack.c.l.s4 1983009808
    %v2948 = vunpack.c.0.s8 %v2947
    %v2949 = vlaneseq
    %v2950 = vshrl.u32 %v2949, 7
    %v2951 = vsub.s32 %v2948, %v2950
    %v2952 = vrot.slane %v2938, %v2951
    %v2953 = vcombine.low %v414, %v950
    %v2954 = vcombine.high %v414, %v950
    %v2956 = vunpack.c.l.s4 1983009808
    %v2957 = vunpack.c.0.s8 %v2956
    %v2958 = vlaneseq
    %v2959 = vshrl.u32 %v2958, 7
    %v2960 = vsub.s32 %v2957, %v2959
    %v2961 = vrot.slane %v2953, %v2960
    %v2963 = vunpack.c.l.s4 1983009808
    %v2964 = vunpack.c.0.s8 %v2963
    %v2965 = vlaneseq
    %v2966 = vshrl.u32 %v2965, 7
    %v2967 = vsub.s32 %v2964, %v2966
    %v2968 = vrot.slane %v2954, %v2967
    %v2969 = vcombine.low %v2945, %v2961
    %v2970 = vcombine.high %v2945, %v2961
    %v2972 = vunpack.c.l.s4 1934713408
    %v2973 = vunpack.c.0.s8 %v2972
    %v2974 = vlaneseq
    %v2975 = vshrl.u32 %v2974, 7
    %v2976 = vsub.s32 %v2973, %v2975
    %v2977 = vrot.slane %v2969, %v2976
    %v2979 = vunpack.c.l.s4 1934713408
    %v2980 = vunpack.c.0.s8 %v2979
    %v2981 = vlaneseq
    %v2982 = vshrl.u32 %v2981, 7
    %v2983 = vsub.s32 %v2980, %v2982
    %v2984 = vrot.slane %v2970, %v2983
    %v2985 = vcombine.low %v2952, %v2968
    %v2986 = vcombine.high %v2952, %v2968
    %v2988 = vunpack.c.l.s4 1934713408
    %v2989 = vunpack.c.0.s8 %v2988
    %v2990 = vlaneseq
    %v2991 = vshrl.u32 %v2990, 7
    %v2992 = vsub.s32 %v2989, %v2991
    %v2993 = vrot.slane %v2985, %v2992
    %v2995 = vunpack.c.l.s4 1934713408
    %v2996 = vunpack.c.0.s8 %v2995
    %v2997 = vlaneseq
    %v2998 = vshrl.u32 %v2997, 7
    %v2999 = vsub.s32 %v2996, %v2998
    %v3000 = vrot.slane %v2986, %v2999
    %v3001 = vcombine.high %v2977, 0.0
    %v3002 = vcombine.high %v2984, 0.0
    %v3003 = vcombine.high %v2993, 0.0
    %v3004 = vcombine.high %v3000, 0.0
    %v3005 = vcombine.low %v150, %v686
    %v3006 = vcombine.high %v150, %v686
    %v3008 = vunpack.c.l.s4 1983009808
    %v3009 = vunpack.c.0.s8 %v3008
    %v3010 = vlaneseq
    %v3011 = vshrl.u32 %v3010, 7
    %v3012 = vsub.s32 %v3009, %v3011
    %v3013 = vrot.slane %v3005, %v3012
    %v3015 = vunpack.c.l.s4 1983009808
    %v3016 = vunpack.c.0.s8 %v3015
    %v3017 = vlaneseq
    %v3018 = vshrl.u32 %v3017, 7
    %v3019 = vsub.s32 %v3016, %v3018
    %v3020 = vrot.slane %v3006, %v3019
    %v3021 = vcombine.low %v418, %v954
    %v3022 = vcombine.high %v418, %v954
    %v3024 = vunpack.c.l.s4 1983009808
    %v3025 = vunpack.c.0.s8 %v3024
    %v3026 = vlaneseq
    %v3027 = vshrl.u32 %v3026, 7
    %v3028 = vsub.s32 %v3025, %v3027
    %v3029 = vrot.slane %v3021, %v3028
    %v3031 = vunpack.c.l.s4 1983009808
    %v3032 = vunpack.c.0.s8 %v3031
    %v3033 = vlaneseq
    %v3034 = vshrl.u32 %v3033, 7
    %v3035 = vsub.s32 %v3032, %v3034
    %v3036 = vrot.slane %v3022, %v3035
    %v3037 = vcombine.low %v3013, %v3029
    %v3038 = vcombine.high %v3013, %v3029
    %v3040 = vunpack.c.l.s4 1934713408
    %v3041 = vunpack.c.0.s8 %v3040
    %v3042 = vlaneseq
    %v3043 = vshrl.u32 %v3042, 7
    %v3044 = vsub.s32 %v3041, %v3043
    %v3045 = vrot.slane %v3037, %v3044
    %v3047 = vunpack.c.l.s4 1934713408
    %v3048 = vunpack.c.0.s8 %v3047
    %v3049 = vlaneseq
    %v3050 = vshrl.u32 %v3049, 7
    %v3051 = vsub.s32 %v3048, %v3050
    %v3052 = vrot.slane %v3038, %v3051
    %v3053 = vcombine.low %v3020, %v3036
    %v3054 = vcombine.high %v3020, %v3036
    %v3056 = vunpack.c.l.s4 1934713408
    %v3057 = vunpack.c.0.s8 %v3056
    %v3058 = vlaneseq
    %v3059 = vshrl.u32 %v3058, 7
    %v3060 = vsub.s32 %v3057, %v3059
    %v3061 = vrot.slane %v3053, %v3060
    %v3063 = vunpack.c.l.s4 1934713408
    %v3064 = vunpack.c.0.s8 %v3063
    %v3065 = vlaneseq
    %v3066 = vshrl.u32 %v3065, 7
    %v3067 = vsub.s32 %v3064, %v3066
    %v3068 = vrot.slane %v3054, %v3067
    %v3069 = vcombine.high %v3045, 0.0
    %v3070 = vcombine.high %v3052, 0.0
    %v3071 = vcombine.high %v3061, 0.0
    %v3072 = vcombine.high %v3068, 0.0
    %v3073 = vcombine.low %v154, %v690
    %v3074 = vcombine.high %v154, %v690
    %v3076 = vunpack.c.l.s4 1983009808
    %v3077 = vunpack.c.0.s8 %v3076
    %v3078 = vlaneseq
    %v3079 = vshrl.u32 %v3078, 7
    %v3080 = vsub.s32 %v3077, %v3079
    %v3081 = vrot.slane %v3073, %v3080
    %v3083 = vunpack.c.l.s4 1983009808
    %v3084 = vunpack.c.0.s8 %v3083
    %v3085 = vlaneseq
    %v3086 = vshrl.u32 %v3085, 7
    %v3087 = vsub.s32 %v3084, %v3086
    %v3088 = vrot.slane %v3074, %v3087
    %v3089 = vcombine.low %v422, %v958
    %v3090 = vcombine.high %v422, %v958
    %v3092 = vunpack.c.l.s4 1983009808
    %v3093 = vunpack.c.0.s8 %v3092
    %v3094 = vlaneseq
    %v3095 = vshrl.u32 %v3094, 7
    %v3096 = vsub.s32 %v3093, %v3095
    %v3097 = vrot.slane %v3089, %v3096
    %v3099 = vunpack.c.l.s4 1983009808
    %v3100 = vunpack.c.0.s8 %v3099
    %v3101 = vlaneseq
    %v3102 = vshrl.u32 %v3101, 7
    %v3103 = vsub.s32 %v3100, %v3102
    %v3104 = vrot.slane %v3090, %v3103
    %v3105 = vcombine.low %v3081, %v3097
    %v3106 = vcombine.high %v3081, %v3097
    %v3108 = vunpack.c.l.s4 1934713408
    %v3109 = vunpack.c.0.s8 %v3108
    %v3110 = vlaneseq
    %v3111 = vshrl.u32 %v3110, 7
    %v3112 = vsub.s32 %v3109, %v3111
    %v3113 = vrot.slane %v3105, %v3112
    %v3115 = vunpack.c.l.s4 1934713408
    %v3116 = vunpack.c.0.s8 %v3115
    %v3117 = vlaneseq
    %v3118 = vshrl.u32 %v3117, 7
    %v3119 = vsub.s32 %v3116, %v3118
    %v3120 = vrot.slane %v3106, %v3119
    %v3121 = vcombine.low %v3088, %v3104
    %v3122 = vcombine.high %v3088, %v3104
    %v3124 = vunpack.c.l.s4 1934713408
    %v3125 = vunpack.c.0.s8 %v3124
    %v3126 = vlaneseq
    %v3127 = vshrl.u32 %v3126, 7
    %v3128 = vsub.s32 %v3125, %v3127
    %v3129 = vrot.slane %v3121, %v3128
    %v3131 = vunpack.c.l.s4 1934713408
    %v3132 = vunpack.c.0.s8 %v3131
    %v3133 = vlaneseq
    %v3134 = vshrl.u32 %v3133, 7
    %v3135 = vsub.s32 %v3132, %v3134
    %v3136 = vrot.slane %v3122, %v3135
    %v3137 = vcombine.high %v3113, 0.0
    %v3138 = vcombine.high %v3120, 0.0
    %v3139 = vcombine.high %v3129, 0.0
    %v3140 = vcombine.high %v3136, 0.0
    %v3141 = vcombine.low %v158, %v694
    %v3142 = vcombine.high %v158, %v694
    %v3144 = vunpack.c.l.s4 1983009808
    %v3145 = vunpack.c.0.s8 %v3144
    %v3146 = vlaneseq
    %v3147 = vshrl.u32 %v3146, 7
    %v3148 = vsub.s32 %v3145, %v3147
    %v3149 = vrot.slane %v3141, %v3148
    %v3151 = vunpack.c.l.s4 1983009808
    %v3152 = vunpack.c.0.s8 %v3151
    %v3153 = vlaneseq
    %v3154 = vshrl.u32 %v3153, 7
    %v3155 = vsub.s32 %v3152, %v3154
    %v3156 = vrot.slane %v3142, %v3155
    %v3157 = vcombine.low %v426, %v962
    %v3158 = vcombine.high %v426, %v962
    %v3160 = vunpack.c.l.s4 1983009808
    %v3161 = vunpack.c.0.s8 %v3160
    %v3162 = vlaneseq
    %v3163 = vshrl.u32 %v3162, 7
    %v3164 = vsub.s32 %v3161, %v3163
    %v3165 = vrot.slane %v3157, %v3164
    %v3167 = vunpack.c.l.s4 1983009808
    %v3168 = vunpack.c.0.s8 %v3167
    %v3169 = vlaneseq
    %v3170 = vshrl.u32 %v3169, 7
    %v3171 = vsub.s32 %v3168, %v3170
    %v3172 = vrot.slane %v3158, %v3171
    %v3173 = vcombine.low %v3149, %v3165
    %v3174 = vcombine.high %v3149, %v3165
    %v3176 = vunpack.c.l.s4 1934713408
    %v3177 = vunpack.c.0.s8 %v3176
    %v3178 = vlaneseq
    %v3179 = vshrl.u32 %v3178, 7
    %v3180 = vsub.s32 %v3177, %v3179
    %v3181 = vrot.slane %v3173, %v3180
    %v3183 = vunpack.c.l.s4 1934713408
    %v3184 = vunpack.c.0.s8 %v3183
    %v3185 = vlaneseq
    %v3186 = vshrl.u32 %v3185, 7
    %v3187 = vsub.s32 %v3184, %v3186
    %v3188 = vrot.slane %v3174, %v3187
    %v3189 = vcombine.low %v3156, %v3172
    %v3190 = vcombine.high %v3156, %v3172
    %v3192 = vunpack.c.l.s4 1934713408
    %v3193 = vunpack.c.0.s8 %v3192
    %v3194 = vlaneseq
    %v3195 = vshrl.u32 %v3194, 7
    %v3196 = vsub.s32 %v3193, %v3195
    %v3197 = vrot.slane %v3189, %v3196
    %v3199 = vunpack.c.l.s4 1934713408
    %v3200 = vunpack.c.0.s8 %v3199
    %v3201 = vlaneseq
    %v3202 = vshrl.u32 %v3201, 7
    %v3203 = vsub.s32 %v3200, %v3202
    %v3204 = vrot.slane %v3190, %v3203
    %v3205 = vcombine.high %v3181, 0.0
    %v3206 = vcombine.high %v3188, 0.0
    %v3207 = vcombine.high %v3197, 0.0
    %v3208 = vcombine.high %v3204, 0.0
    %v3209 = vcombine.low %v162, %v698
    %v3210 = vcombine.high %v162, %v698
    %v3212 = vunpack.c.l.s4 1983009808
    %v3213 = vunpack.c.0.s8 %v3212
    %v3214 = vlaneseq
    %v3215 = vshrl.u32 %v3214, 7
    %v3216 = vsub.s32 %v3213, %v3215
    %v3217 = vrot.slane %v3209, %v3216
    %v3219 = vunpack.c.l.s4 1983009808
    %v3220 = vunpack.c.0.s8 %v3219
    %v3221 = vlaneseq
    %v3222 = vshrl.u32 %v3221, 7
    %v3223 = vsub.s32 %v3220, %v3222
    %v3224 = vrot.slane %v3210, %v3223
    %v3225 = vcombine.low %v430, %v966
    %v3226 = vcombine.high %v430, %v966
    %v3228 = vunpack.c.l.s4 1983009808
    %v3229 = vunpack.c.0.s8 %v3228
    %v3230 = vlaneseq
    %v3231 = vshrl.u32 %v3230, 7
    %v3232 = vsub.s32 %v3229, %v3231
    %v3233 = vrot.slane %v3225, %v3232
    %v3235 = vunpack.c.l.s4 1983009808
    %v3236 = vunpack.c.0.s8 %v3235
    %v3237 = vlaneseq
    %v3238 = vshrl.u32 %v3237, 7
    %v3239 = vsub.s32 %v3236, %v3238
    %v3240 = vrot.slane %v3226, %v3239
    %v3241 = vcombine.low %v3217, %v3233
    %v3242 = vcombine.high %v3217, %v3233
    %v3244 = vunpack.c.l.s4 1934713408
    %v3245 = vunpack.c.0.s8 %v3244
    %v3246 = vlaneseq
    %v3247 = vshrl.u32 %v3246, 7
    %v3248 = vsub.s32 %v3245, %v3247
    %v3249 = vrot.slane %v3241, %v3248
    %v3251 = vunpack.c.l.s4 1934713408
    %v3252 = vunpack.c.0.s8 %v3251
    %v3253 = vlaneseq
    %v3254 = vshrl.u32 %v3253, 7
    %v3255 = vsub.s32 %v3252, %v3254
    %v3256 = vrot.slane %v3242, %v3255
    %v3257 = vcombine.low %v3224, %v3240
    %v3258 = vcombine.high %v3224, %v3240
    %v3260 = vunpack.c.l.s4 1934713408
    %v3261 = vunpack.c.0.s8 %v3260
    %v3262 = vlaneseq
    %v3263 = vshrl.u32 %v3262, 7
    %v3264 = vsub.s32 %v3261, %v3263
    %v3265 = vrot.slane %v3257, %v3264
    %v3267 = vunpack.c.l.s4 1934713408
    %v3268 = vunpack.c.0.s8 %v3267
    %v3269 = vlaneseq
    %v3270 = vshrl.u32 %v3269, 7
    %v3271 = vsub.s32 %v3268, %v3270
    %v3272 = vrot.slane %v3258, %v3271
    %v3273 = vcombine.high %v3249, 0.0
    %v3274 = vcombine.high %v3256, 0.0
    %v3275 = vcombine.high %v3265, 0.0
    %v3276 = vcombine.high %v3272, 0.0
    %v3277 = vcombine.low %v169, %v705
    %v3278 = vcombine.high %v169, %v705
    %v3280 = vunpack.c.l.s4 1983009808
    %v3281 = vunpack.c.0.s8 %v3280
    %v3282 = vlaneseq
    %v3283 = vshrl.u32 %v3282, 7
    %v3284 = vsub.s32 %v3281, %v3283
    %v3285 = vrot.slane %v3277, %v3284
    %v3287 = vunpack.c.l.s4 1983009808
    %v3288 = vunpack.c.0.s8 %v3287
    %v3289 = vlaneseq
    %v3290 = vshrl.u32 %v3289, 7
    %v3291 = vsub.s32 %v3288, %v3290
    %v3292 = vrot.slane %v3278, %v3291
    %v3293 = vcombine.low %v437, %v973
    %v3294 = vcombine.high %v437, %v973
    %v3296 = vunpack.c.l.s4 1983009808
    %v3297 = vunpack.c.0.s8 %v3296
    %v3298 = vlaneseq
    %v3299 = vshrl.u32 %v3298, 7
    %v3300 = vsub.s32 %v3297, %v3299
    %v3301 = vrot.slane %v3293, %v3300
    %v3303 = vunpack.c.l.s4 1983009808
    %v3304 = vunpack.c.0.s8 %v3303
    %v3305 = vlaneseq
    %v3306 = vshrl.u32 %v3305, 7
    %v3307 = vsub.s32 %v3304, %v3306
    %v3308 = vrot.slane %v3294, %v3307
    %v3309 = vcombine.low %v3285, %v3301
    %v3310 = vcombine.high %v3285, %v3301
    %v3312 = vunpack.c.l.s4 1934713408
    %v3313 = vunpack.c.0.s8 %v3312
    %v3314 = vlaneseq
    %v3315 = vshrl.u32 %v3314, 7
    %v3316 = vsub.s32 %v3313, %v3315
    %v3317 = vrot.slane %v3309, %v3316
    %v3319 = vunpack.c.l.s4 1934713408
    %v3320 = vunpack.c.0.s8 %v3319
    %v3321 = vlaneseq
    %v3322 = vshrl.u32 %v3321, 7
    %v3323 = vsub.s32 %v3320, %v3322
    %v3324 = vrot.slane %v3310, %v3323
    %v3325 = vcombine.low %v3292, %v3308
    %v3326 = vcombine.high %v3292, %v3308
    %v3328 = vunpack.c.l.s4 1934713408
    %v3329 = vunpack.c.0.s8 %v3328
    %v3330 = vlaneseq
    %v3331 = vshrl.u32 %v3330, 7
    %v3332 = vsub.s32 %v3329, %v3331
    %v3333 = vrot.slane %v3325, %v3332
    %v3335 = vunpack.c.l.s4 1934713408
    %v3336 = vunpack.c.0.s8 %v3335
    %v3337 = vlaneseq
    %v3338 = vshrl.u32 %v3337, 7
    %v3339 = vsub.s32 %v3336, %v3338
    %v3340 = vrot.slane %v3326, %v3339
    %v3341 = vcombine.high %v3317, 0.0
    %v3342 = vcombine.high %v3324, 0.0
    %v3343 = vcombine.high %v3333, 0.0
    %v3344 = vcombine.high %v3340, 0.0
    %v3345 = vcombine.low %v173, %v709
    %v3346 = vcombine.high %v173, %v709
    %v3348 = vunpack.c.l.s4 1983009808
    %v3349 = vunpack.c.0.s8 %v3348
    %v3350 = vlaneseq
    %v3351 = vshrl.u32 %v3350, 7
    %v3352 = vsub.s32 %v3349, %v3351
    %v3353 = vrot.slane %v3345, %v3352
    %v3355 = vunpack.c.l.s4 1983009808
    %v3356 = vunpack.c.0.s8 %v3355
    %v3357 = vlaneseq
    %v3358 = vshrl.u32 %v3357, 7
    %v3359 = vsub.s32 %v3356, %v3358
    %v3360 = vrot.slane %v3346, %v3359
    %v3361 = vcombine.low %v441, %v977
    %v3362 = vcombine.high %v441, %v977
    %v3364 = vunpack.c.l.s4 1983009808
    %v3365 = vunpack.c.0.s8 %v3364
    %v3366 = vlaneseq
    %v3367 = vshrl.u32 %v3366, 7
    %v3368 = vsub.s32 %v3365, %v3367
    %v3369 = vrot.slane %v3361, %v3368
    %v3371 = vunpack.c.l.s4 1983009808
    %v3372 = vunpack.c.0.s8 %v3371
    %v3373 = vlaneseq
    %v3374 = vshrl.u32 %v3373, 7
    %v3375 = vsub.s32 %v3372, %v3374
    %v3376 = vrot.slane %v3362, %v3375
    %v3377 = vcombine.low %v3353, %v3369
    %v3378 = vcombine.high %v3353, %v3369
    %v3380 = vunpack.c.l.s4 1934713408
    %v3381 = vunpack.c.0.s8 %v3380
    %v3382 = vlaneseq
    %v3383 = vshrl.u32 %v3382, 7
    %v3384 = vsub.s32 %v3381, %v3383
    %v3385 = vrot.slane %v3377, %v3384
    %v3387 = vunpack.c.l.s4 1934713408
    %v3388 = vunpack.c.0.s8 %v3387
    %v3389 = vlaneseq
    %v3390 = vshrl.u32 %v3389, 7
    %v3391 = vsub.s32 %v3388, %v3390
    %v3392 = vrot.slane %v3378, %v3391
    %v3393 = vcombine.low %v3360, %v3376
    %v3394 = vcombine.high %v3360, %v3376
    %v3396 = vunpack.c.l.s4 1934713408
    %v3397 = vunpack.c.0.s8 %v3396
    %v3398 = vlaneseq
    %v3399 = vshrl.u32 %v3398, 7
    %v3400 = vsub.s32 %v3397, %v3399
    %v3401 = vrot.slane %v3393, %v3400
    %v3403 = vunpack.c.l.s4 1934713408
    %v3404 = vunpack.c.0.s8 %v3403
    %v3405 = vlaneseq
    %v3406 = vshrl.u32 %v3405, 7
    %v3407 = vsub.s32 %v3404, %v3406
    %v3408 = vrot.slane %v3394, %v3407
    %v3409 = vcombine.high %v3385, 0.0
    %v3410 = vcombine.high %v3392, 0.0
    %v3411 = vcombine.high %v3401, 0.0
    %v3412 = vcombine.high %v3408, 0.0
    %v3413 = vcombine.low %v177, %v713
    %v3414 = vcombine.high %v177, %v713
    %v3416 = vunpack.c.l.s4 1983009808
    %v3417 = vunpack.c.0.s8 %v3416
    %v3418 = vlaneseq
    %v3419 = vshrl.u32 %v3418, 7
    %v3420 = vsub.s32 %v3417, %v3419
    %v3421 = vrot.slane %v3413, %v3420
    %v3423 = vunpack.c.l.s4 1983009808
    %v3424 = vunpack.c.0.s8 %v3423
    %v3425 = vlaneseq
    %v3426 = vshrl.u32 %v3425, 7
    %v3427 = vsub.s32 %v3424, %v3426
    %v3428 = vrot.slane %v3414, %v3427
    %v3429 = vcombine.low %v445, %v981
    %v3430 = vcombine.high %v445, %v981
    %v3432 = vunpack.c.l.s4 1983009808
    %v3433 = vunpack.c.0.s8 %v3432
    %v3434 = vlaneseq
    %v3435 = vshrl.u32 %v3434, 7
    %v3436 = vsub.s32 %v3433, %v3435
    %v3437 = vrot.slane %v3429, %v3436
    %v3439 = vunpack.c.l.s4 1983009808
    %v3440 = vunpack.c.0.s8 %v3439
    %v3441 = vlaneseq
    %v3442 = vshrl.u32 %v3441, 7
    %v3443 = vsub.s32 %v3440, %v3442
    %v3444 = vrot.slane %v3430, %v3443
    %v3445 = vcombine.low %v3421, %v3437
    %v3446 = vcombine.high %v3421, %v3437
    %v3448 = vunpack.c.l.s4 1934713408
    %v3449 = vunpack.c.0.s8 %v3448
    %v3450 = vlaneseq
    %v3451 = vshrl.u32 %v3450, 7
    %v3452 = vsub.s32 %v3449, %v3451
    %v3453 = vrot.slane %v3445, %v3452
    %v3455 = vunpack.c.l.s4 1934713408
    %v3456 = vunpack.c.0.s8 %v3455
    %v3457 = vlaneseq
    %v3458 = vshrl.u32 %v3457, 7
    %v3459 = vsub.s32 %v3456, %v3458
    %v3460 = vrot.slane %v3446, %v3459
    %v3461 = vcombine.low %v3428, %v3444
    %v3462 = vcombine.high %v3428, %v3444
    %v3464 = vunpack.c.l.s4 1934713408
    %v3465 = vunpack.c.0.s8 %v3464
    %v3466 = vlaneseq
    %v3467 = vshrl.u32 %v3466, 7
    %v3468 = vsub.s32 %v3465, %v3467
    %v3469 = vrot.slane %v3461, %v3468
    %v3471 = vunpack.c.l.s4 1934713408
    %v3472 = vunpack.c.0.s8 %v3471
    %v3473 = vlaneseq
    %v3474 = vshrl.u32 %v3473, 7
    %v3475 = vsub.s32 %v3472, %v3474
    %v3476 = vrot.slane %v3462, %v3475
    %v3477 = vcombine.high %v3453, 0.0
    %v3478 = vcombine.high %v3460, 0.0
    %v3479 = vcombine.high %v3469, 0.0
    %v3480 = vcombine.high %v3476, 0.0
    %v3481 = vcombine.low %v181, %v717
    %v3482 = vcombine.high %v181, %v717
    %v3484 = vunpack.c.l.s4 1983009808
    %v3485 = vunpack.c.0.s8 %v3484
    %v3486 = vlaneseq
    %v3487 = vshrl.u32 %v3486, 7
    %v3488 = vsub.s32 %v3485, %v3487
    %v3489 = vrot.slane %v3481, %v3488
    %v3491 = vunpack.c.l.s4 1983009808
    %v3492 = vunpack.c.0.s8 %v3491
    %v3493 = vlaneseq
    %v3494 = vshrl.u32 %v3493, 7
    %v3495 = vsub.s32 %v3492, %v3494
    %v3496 = vrot.slane %v3482, %v3495
    %v3497 = vcombine.low %v449, %v985
    %v3498 = vcombine.high %v449, %v985
    %v3500 = vunpack.c.l.s4 1983009808
    %v3501 = vunpack.c.0.s8 %v3500
    %v3502 = vlaneseq
    %v3503 = vshrl.u32 %v3502, 7
    %v3504 = vsub.s32 %v3501, %v3503
    %v3505 = vrot.slane %v3497, %v3504
    %v3507 = vunpack.c.l.s4 1983009808
    %v3508 = vunpack.c.0.s8 %v3507
    %v3509 = vlaneseq
    %v3510 = vshrl.u32 %v3509, 7
    %v3511 = vsub.s32 %v3508, %v3510
    %v3512 = vrot.slane %v3498, %v3511
    %v3513 = vcombine.low %v3489, %v3505
    %v3514 = vcombine.high %v3489, %v3505
    %v3516 = vunpack.c.l.s4 1934713408
    %v3517 = vunpack.c.0.s8 %v3516
    %v3518 = vlaneseq
    %v3519 = vshrl.u32 %v3518, 7
    %v3520 = vsub.s32 %v3517, %v3519
    %v3521 = vrot.slane %v3513, %v3520
    %v3523 = vunpack.c.l.s4 1934713408
    %v3524 = vunpack.c.0.s8 %v3523
    %v3525 = vlaneseq
    %v3526 = vshrl.u32 %v3525, 7
    %v3527 = vsub.s32 %v3524, %v3526
    %v3528 = vrot.slane %v3514, %v3527
    %v3529 = vcombine.low %v3496, %v3512
    %v3530 = vcombine.high %v3496, %v3512
    %v3532 = vunpack.c.l.s4 1934713408
    %v3533 = vunpack.c.0.s8 %v3532
    %v3534 = vlaneseq
    %v3535 = vshrl.u32 %v3534, 7
    %v3536 = vsub.s32 %v3533, %v3535
    %v3537 = vrot.slane %v3529, %v3536
    %v3539 = vunpack.c.l.s4 1934713408
    %v3540 = vunpack.c.0.s8 %v3539
    %v3541 = vlaneseq
    %v3542 = vshrl.u32 %v3541, 7
    %v3543 = vsub.s32 %v3540, %v3542
    %v3544 = vrot.slane %v3530, %v3543
    %v3545 = vcombine.high %v3521, 0.0
    %v3546 = vcombine.high %v3528, 0.0
    %v3547 = vcombine.high %v3537, 0.0
    %v3548 = vcombine.high %v3544, 0.0
    %v3549 = vcombine.low %v185, %v721
    %v3550 = vcombine.high %v185, %v721
    %v3552 = vunpack.c.l.s4 1983009808
    %v3553 = vunpack.c.0.s8 %v3552
    %v3554 = vlaneseq
    %v3555 = vshrl.u32 %v3554, 7
    %v3556 = vsub.s32 %v3553, %v3555
    %v3557 = vrot.slane %v3549, %v3556
    %v3559 = vunpack.c.l.s4 1983009808
    %v3560 = vunpack.c.0.s8 %v3559
    %v3561 = vlaneseq
    %v3562 = vshrl.u32 %v3561, 7
    %v3563 = vsub.s32 %v3560, %v3562
    %v3564 = vrot.slane %v3550, %v3563
    %v3565 = vcombine.low %v453, %v989
    %v3566 = vcombine.high %v453, %v989
    %v3568 = vunpack.c.l.s4 1983009808
    %v3569 = vunpack.c.0.s8 %v3568
    %v3570 = vlaneseq
    %v3571 = vshrl.u32 %v3570, 7
    %v3572 = vsub.s32 %v3569, %v3571
    %v3573 = vrot.slane %v3565, %v3572
    %v3575 = vunpack.c.l.s4 1983009808
    %v3576 = vunpack.c.0.s8 %v3575
    %v3577 = vlaneseq
    %v3578 = vshrl.u32 %v3577, 7
    %v3579 = vsub.s32 %v3576, %v3578
    %v3580 = vrot.slane %v3566, %v3579
    %v3581 = vcombine.low %v3557, %v3573
    %v3582 = vcombine.high %v3557, %v3573
    %v3584 = vunpack.c.l.s4 1934713408
    %v3585 = vunpack.c.0.s8 %v3584
    %v3586 = vlaneseq
    %v3587 = vshrl.u32 %v3586, 7
    %v3588 = vsub.s32 %v3585, %v3587
    %v3589 = vrot.slane %v3581, %v3588
    %v3591 = vunpack.c.l.s4 1934713408
    %v3592 = vunpack.c.0.s8 %v3591
    %v3593 = vlaneseq
    %v3594 = vshrl.u32 %v3593, 7
    %v3595 = vsub.s32 %v3592, %v3594
    %v3596 = vrot.slane %v3582, %v3595
    %v3597 = vcombine.low %v3564, %v3580
    %v3598 = vcombine.high %v3564, %v3580
    %v3600 = vunpack.c.l.s4 1934713408
    %v3601 = vunpack.c.0.s8 %v3600
    %v3602 = vlaneseq
    %v3603 = vshrl.u32 %v3602, 7
    %v3604 = vsub.s32 %v3601, %v3603
    %v3605 = vrot.slane %v3597, %v3604
    %v3607 = vunpack.c.l.s4 1934713408
    %v3608 = vunpack.c.0.s8 %v3607
    %v3609 = vlaneseq
    %v3610 = vshrl.u32 %v3609, 7
    %v3611 = vsub.s32 %v3608, %v3610
    %v3612 = vrot.slane %v3598, %v3611
    %v3613 = vcombine.high %v3589, 0.0
    %v3614 = vcombine.high %v3596, 0.0
    %v3615 = vcombine.high %v3605, 0.0
    %v3616 = vcombine.high %v3612, 0.0
    %v3617 = vcombine.low %v189, %v725
    %v3618 = vcombine.high %v189, %v725
    %v3620 = vunpack.c.l.s4 1983009808
    %v3621 = vunpack.c.0.s8 %v3620
    %v3622 = vlaneseq
    %v3623 = vshrl.u32 %v3622, 7
    %v3624 = vsub.s32 %v3621, %v3623
    %v3625 = vrot.slane %v3617, %v3624
    %v3627 = vunpack.c.l.s4 1983009808
    %v3628 = vunpack.c.0.s8 %v3627
    %v3629 = vlaneseq
    %v3630 = vshrl.u32 %v3629, 7
    %v3631 = vsub.s32 %v3628, %v3630
    %v3632 = vrot.slane %v3618, %v3631
    %v3633 = vcombine.low %v457, %v993
    %v3634 = vcombine.high %v457, %v993
    %v3636 = vunpack.c.l.s4 1983009808
    %v3637 = vunpack.c.0.s8 %v3636
    %v3638 = vlaneseq
    %v3639 = vshrl.u32 %v3638, 7
    %v3640 = vsub.s32 %v3637, %v3639
    %v3641 = vrot.slane %v3633, %v3640
    %v3643 = vunpack.c.l.s4 1983009808
    %v3644 = vunpack.c.0.s8 %v3643
    %v3645 = vlaneseq
    %v3646 = vshrl.u32 %v3645, 7
    %v3647 = vsub.s32 %v3644, %v3646
    %v3648 = vrot.slane %v3634, %v3647
    %v3649 = vcombine.low %v3625, %v3641
    %v3650 = vcombine.high %v3625, %v3641
    %v3652 = vunpack.c.l.s4 1934713408
    %v3653 = vunpack.c.0.s8 %v3652
    %v3654 = vlaneseq
    %v3655 = vshrl.u32 %v3654, 7
    %v3656 = vsub.s32 %v3653, %v3655
    %v3657 = vrot.slane %v3649, %v3656
    %v3659 = vunpack.c.l.s4 1934713408
    %v3660 = vunpack.c.0.s8 %v3659
    %v3661 = vlaneseq
    %v3662 = vshrl.u32 %v3661, 7
    %v3663 = vsub.s32 %v3660, %v3662
    %v3664 = vrot.slane %v3650, %v3663
    %v3665 = vcombine.low %v3632, %v3648
    %v3666 = vcombine.high %v3632, %v3648
    %v3668 = vunpack.c.l.s4 1934713408
    %v3669 = vunpack.c.0.s8 %v3668
    %v3670 = vlaneseq
    %v3671 = vshrl.u32 %v3670, 7
    %v3672 = vsub.s32 %v3669, %v3671
    %v3673 = vrot.slane %v3665, %v3672
    %v3675 = vunpack.c.l.s4 1934713408
    %v3676 = vunpack.c.0.s8 %v3675
    %v3677 = vlaneseq
    %v3678 = vshrl.u32 %v3677, 7
    %v3679 = vsub.s32 %v3676, %v3678
    %v3680 = vrot.slane %v3666, %v3679
    %v3681 = vcombine.high %v3657, 0.0
    %v3682 = vcombine.high %v3664, 0.0
    %v3683 = vcombine.high %v3673, 0.0
    %v3684 = vcombine.high %v3680, 0.0
    %v3685 = vcombine.low %v193, %v729
    %v3686 = vcombine.high %v193, %v729
    %v3688 = vunpack.c.l.s4 1983009808
    %v3689 = vunpack.c.0.s8 %v3688
    %v3690 = vlaneseq
    %v3691 = vshrl.u32 %v3690, 7
    %v3692 = vsub.s32 %v3689, %v3691
    %v3693 = vrot.slane %v3685, %v3692
    %v3695 = vunpack.c.l.s4 1983009808
    %v3696 = vunpack.c.0.s8 %v3695
    %v3697 = vlaneseq
    %v3698 = vshrl.u32 %v3697, 7
    %v3699 = vsub.s32 %v3696, %v3698
    %v3700 = vrot.slane %v3686, %v3699
    %v3701 = vcombine.low %v461, %v997
    %v3702 = vcombine.high %v461, %v997
    %v3704 = vunpack.c.l.s4 1983009808
    %v3705 = vunpack.c.0.s8 %v3704
    %v3706 = vlaneseq
    %v3707 = vshrl.u32 %v3706, 7
    %v3708 = vsub.s32 %v3705, %v3707
    %v3709 = vrot.slane %v3701, %v3708
    %v3711 = vunpack.c.l.s4 1983009808
    %v3712 = vunpack.c.0.s8 %v3711
    %v3713 = vlaneseq
    %v3714 = vshrl.u32 %v3713, 7
    %v3715 = vsub.s32 %v3712, %v3714
    %v3716 = vrot.slane %v3702, %v3715
    %v3717 = vcombine.low %v3693, %v3709
    %v3718 = vcombine.high %v3693, %v3709
    %v3720 = vunpack.c.l.s4 1934713408
    %v3721 = vunpack.c.0.s8 %v3720
    %v3722 = vlaneseq
    %v3723 = vshrl.u32 %v3722, 7
    %v3724 = vsub.s32 %v3721, %v3723
    %v3725 = vrot.slane %v3717, %v3724
    %v3727 = vunpack.c.l.s4 1934713408
    %v3728 = vunpack.c.0.s8 %v3727
    %v3729 = vlaneseq
    %v3730 = vshrl.u32 %v3729, 7
    %v3731 = vsub.s32 %v3728, %v3730
    %v3732 = vrot.slane %v3718, %v3731
    %v3733 = vcombine.low %v3700, %v3716
    %v3734 = vcombine.high %v3700, %v3716
    %v3736 = vunpack.c.l.s4 1934713408
    %v3737 = vunpack.c.0.s8 %v3736
    %v3738 = vlaneseq
    %v3739 = vshrl.u32 %v3738, 7
    %v3740 = vsub.s32 %v3737, %v3739
    %v3741 = vrot.slane %v3733, %v3740
    %v3743 = vunpack.c.l.s4 1934713408
    %v3744 = vunpack.c.0.s8 %v3743
    %v3745 = vlaneseq
    %v3746 = vshrl.u32 %v3745, 7
    %v3747 = vsub.s32 %v3744, %v3746
    %v3748 = vrot.slane %v3734, %v3747
    %v3749 = vcombine.high %v3725, 0.0
    %v3750 = vcombine.high %v3732, 0.0
    %v3751 = vcombine.high %v3741, 0.0
    %v3752 = vcombine.high %v3748, 0.0
    %v3753 = vcombine.low %v197, %v733
    %v3754 = vcombine.high %v197, %v733
    %v3756 = vunpack.c.l.s4 1983009808
    %v3757 = vunpack.c.0.s8 %v3756
    %v3758 = vlaneseq
    %v3759 = vshrl.u32 %v3758, 7
    %v3760 = vsub.s32 %v3757, %v3759
    %v3761 = vrot.slane %v3753, %v3760
    %v3763 = vunpack.c.l.s4 1983009808
    %v3764 = vunpack.c.0.s8 %v3763
    %v3765 = vlaneseq
    %v3766 = vshrl.u32 %v3765, 7
    %v3767 = vsub.s32 %v3764, %v3766
    %v3768 = vrot.slane %v3754, %v3767
    %v3769 = vcombine.low %v465, %v1001
    %v3770 = vcombine.high %v465, %v1001
    %v3772 = vunpack.c.l.s4 1983009808
    %v3773 = vunpack.c.0.s8 %v3772
    %v3774 = vlaneseq
    %v3775 = vshrl.u32 %v3774, 7
    %v3776 = vsub.s32 %v3773, %v3775
    %v3777 = vrot.slane %v3769, %v3776
    %v3779 = vunpack.c.l.s4 1983009808
    %v3780 = vunpack.c.0.s8 %v3779
    %v3781 = vlaneseq
    %v3782 = vshrl.u32 %v3781, 7
    %v3783 = vsub.s32 %v3780, %v3782
    %v3784 = vrot.slane %v3770, %v3783
    %v3785 = vcombine.low %v3761, %v3777
    %v3786 = vcombine.high %v3761, %v3777
    %v3788 = vunpack.c.l.s4 1934713408
    %v3789 = vunpack.c.0.s8 %v3788
    %v3790 = vlaneseq
    %v3791 = vshrl.u32 %v3790, 7
    %v3792 = vsub.s32 %v3789, %v3791
    %v3793 = vrot.slane %v3785, %v3792
    %v3795 = vunpack.c.l.s4 1934713408
    %v3796 = vunpack.c.0.s8 %v3795
    %v3797 = vlaneseq
    %v3798 = vshrl.u32 %v3797, 7
    %v3799 = vsub.s32 %v3796, %v3798
    %v3800 = vrot.slane %v3786, %v3799
    %v3801 = vcombine.low %v3768, %v3784
    %v3802 = vcombine.high %v3768, %v3784
    %v3804 = vunpack.c.l.s4 1934713408
    %v3805 = vunpack.c.0.s8 %v3804
    %v3806 = vlaneseq
    %v3807 = vshrl.u32 %v3806, 7
    %v3808 = vsub.s32 %v3805, %v3807
    %v3809 = vrot.slane %v3801, %v3808
    %v3811 = vunpack.c.l.s4 1934713408
    %v3812 = vunpack.c.0.s8 %v3811
    %v3813 = vlaneseq
    %v3814 = vshrl.u32 %v3813, 7
    %v3815 = vsub.s32 %v3812, %v3814
    %v3816 = vrot.slane %v3802, %v3815
    %v3817 = vcombine.high %v3793, 0.0
    %v3818 = vcombine.high %v3800, 0.0
    %v3819 = vcombine.high %v3809, 0.0
    %v3820 = vcombine.high %v3816, 0.0
    %v3821 = vcombine.low %v201, %v737
    %v3822 = vcombine.high %v201, %v737
    %v3824 = vunpack.c.l.s4 1983009808
    %v3825 = vunpack.c.0.s8 %v3824
    %v3826 = vlaneseq
    %v3827 = vshrl.u32 %v3826, 7
    %v3828 = vsub.s32 %v3825, %v3827
    %v3829 = vrot.slane %v3821, %v3828
    %v3831 = vunpack.c.l.s4 1983009808
    %v3832 = vunpack.c.0.s8 %v3831
    %v3833 = vlaneseq
    %v3834 = vshrl.u32 %v3833, 7
    %v3835 = vsub.s32 %v3832, %v3834
    %v3836 = vrot.slane %v3822, %v3835
    %v3837 = vcombine.low %v469, %v1005
    %v3838 = vcombine.high %v469, %v1005
    %v3840 = vunpack.c.l.s4 1983009808
    %v3841 = vunpack.c.0.s8 %v3840
    %v3842 = vlaneseq
    %v3843 = vshrl.u32 %v3842, 7
    %v3844 = vsub.s32 %v3841, %v3843
    %v3845 = vrot.slane %v3837, %v3844
    %v3847 = vunpack.c.l.s4 1983009808
    %v3848 = vunpack.c.0.s8 %v3847
    %v3849 = vlaneseq
    %v3850 = vshrl.u32 %v3849, 7
    %v3851 = vsub.s32 %v3848, %v3850
    %v3852 = vrot.slane %v3838, %v3851
    %v3853 = vcombine.low %v3829, %v3845
    %v3854 = vcombine.high %v3829, %v3845
    %v3856 = vunpack.c.l.s4 1934713408
    %v3857 = vunpack.c.0.s8 %v3856
    %v3858 = vlaneseq
    %v3859 = vshrl.u32 %v3858, 7
    %v3860 = vsub.s32 %v3857, %v3859
    %v3861 = vrot.slane %v3853, %v3860
    %v3863 = vunpack.c.l.s4 1934713408
    %v3864 = vunpack.c.0.s8 %v3863
    %v3865 = vlaneseq
    %v3866 = vshrl.u32 %v3865, 7
    %v3867 = vsub.s32 %v3864, %v3866
    %v3868 = vrot.slane %v3854, %v3867
    %v3869 = vcombine.low %v3836, %v3852
    %v3870 = vcombine.high %v3836, %v3852
    %v3872 = vunpack.c.l.s4 1934713408
    %v3873 = vunpack.c.0.s8 %v3872
    %v3874 = vlaneseq
    %v3875 = vshrl.u32 %v3874, 7
    %v3876 = vsub.s32 %v3873, %v3875
    %v3877 = vrot.slane %v3869, %v3876
    %v3879 = vunpack.c.l.s4 1934713408
    %v3880 = vunpack.c.0.s8 %v3879
    %v3881 = vlaneseq
    %v3882 = vshrl.u32 %v3881, 7
    %v3883 = vsub.s32 %v3880, %v3882
    %v3884 = vrot.slane %v3870, %v3883
    %v3885 = vcombine.high %v3861, 0.0
    %v3886 = vcombine.high %v3868, 0.0
    %v3887 = vcombine.high %v3877, 0.0
    %v3888 = vcombine.high %v3884, 0.0
    %v3889 = vcombine.low %v205, %v741
    %v3890 = vcombine.high %v205, %v741
    %v3892 = vunpack.c.l.s4 1983009808
    %v3893 = vunpack.c.0.s8 %v3892
    %v3894 = vlaneseq
    %v3895 = vshrl.u32 %v3894, 7
    %v3896 = vsub.s32 %v3893, %v3895
    %v3897 = vrot.slane %v3889, %v3896
    %v3899 = vunpack.c.l.s4 1983009808
    %v3900 = vunpack.c.0.s8 %v3899
    %v3901 = vlaneseq
    %v3902 = vshrl.u32 %v3901, 7
    %v3903 = vsub.s32 %v3900, %v3902
    %v3904 = vrot.slane %v3890, %v3903
    %v3905 = vcombine.low %v473, %v1009
    %v3906 = vcombine.high %v473, %v1009
    %v3908 = vunpack.c.l.s4 1983009808
    %v3909 = vunpack.c.0.s8 %v3908
    %v3910 = vlaneseq
    %v3911 = vshrl.u32 %v3910, 7
    %v3912 = vsub.s32 %v3909, %v3911
    %v3913 = vrot.slane %v3905, %v3912
    %v3915 = vunpack.c.l.s4 1983009808
    %v3916 = vunpack.c.0.s8 %v3915
    %v3917 = vlaneseq
    %v3918 = vshrl.u32 %v3917, 7
    %v3919 = vsub.s32 %v3916, %v3918
    %v3920 = vrot.slane %v3906, %v3919
    %v3921 = vcombine.low %v3897, %v3913
    %v3922 = vcombine.high %v3897, %v3913
    %v3924 = vunpack.c.l.s4 1934713408
    %v3925 = vunpack.c.0.s8 %v3924
    %v3926 = vlaneseq
    %v3927 = vshrl.u32 %v3926, 7
    %v3928 = vsub.s32 %v3925, %v3927
    %v3929 = vrot.slane %v3921, %v3928
    %v3931 = vunpack.c.l.s4 1934713408
    %v3932 = vunpack.c.0.s8 %v3931
    %v3933 = vlaneseq
    %v3934 = vshrl.u32 %v3933, 7
    %v3935 = vsub.s32 %v3932, %v3934
    %v3936 = vrot.slane %v3922, %v3935
    %v3937 = vcombine.low %v3904, %v3920
    %v3938 = vcombine.high %v3904, %v3920
    %v3940 = vunpack.c.l.s4 1934713408
    %v3941 = vunpack.c.0.s8 %v3940
    %v3942 = vlaneseq
    %v3943 = vshrl.u32 %v3942, 7
    %v3944 = vsub.s32 %v3941, %v3943
    %v3945 = vrot.slane %v3937, %v3944
    %v3947 = vunpack.c.l.s4 1934713408
    %v3948 = vunpack.c.0.s8 %v3947
    %v3949 = vlaneseq
    %v3950 = vshrl.u32 %v3949, 7
    %v3951 = vsub.s32 %v3948, %v3950
    %v3952 = vrot.slane %v3938, %v3951
    %v3953 = vcombine.high %v3929, 0.0
    %v3954 = vcombine.high %v3936, 0.0
    %v3955 = vcombine.high %v3945, 0.0
    %v3956 = vcombine.high %v3952, 0.0
    %v3957 = vcombine.low %v209, %v745
    %v3958 = vcombine.high %v209, %v745
    %v3960 = vunpack.c.l.s4 1983009808
    %v3961 = vunpack.c.0.s8 %v3960
    %v3962 = vlaneseq
    %v3963 = vshrl.u32 %v3962, 7
    %v3964 = vsub.s32 %v3961, %v3963
    %v3965 = vrot.slane %v3957, %v3964
    %v3967 = vunpack.c.l.s4 1983009808
    %v3968 = vunpack.c.0.s8 %v3967
    %v3969 = vlaneseq
    %v3970 = vshrl.u32 %v3969, 7
    %v3971 = vsub.s32 %v3968, %v3970
    %v3972 = vrot.slane %v3958, %v3971
    %v3973 = vcombine.low %v477, %v1013
    %v3974 = vcombine.high %v477, %v1013
    %v3976 = vunpack.c.l.s4 1983009808
    %v3977 = vunpack.c.0.s8 %v3976
    %v3978 = vlaneseq
    %v3979 = vshrl.u32 %v3978, 7
    %v3980 = vsub.s32 %v3977, %v3979
    %v3981 = vrot.slane %v3973, %v3980
    %v3983 = vunpack.c.l.s4 1983009808
    %v3984 = vunpack.c.0.s8 %v3983
    %v3985 = vlaneseq
    %v3986 = vshrl.u32 %v3985, 7
    %v3987 = vsub.s32 %v3984, %v3986
    %v3988 = vrot.slane %v3974, %v3987
    %v3989 = vcombine.low %v3965, %v3981
    %v3990 = vcombine.high %v3965, %v3981
    %v3992 = vunpack.c.l.s4 1934713408
    %v3993 = vunpack.c.0.s8 %v3992
    %v3994 = vlaneseq
    %v3995 = vshrl.u32 %v3994, 7
    %v3996 = vsub.s32 %v3993, %v3995
    %v3997 = vrot.slane %v3989, %v3996
    %v3999 = vunpack.c.l.s4 1934713408
    %v4000 = vunpack.c.0.s8 %v3999
    %v4001 = vlaneseq
    %v4002 = vshrl.u32 %v4001, 7
    %v4003 = vsub.s32 %v4000, %v4002
    %v4004 = vrot.slane %v3990, %v4003
    %v4005 = vcombine.low %v3972, %v3988
    %v4006 = vcombine.high %v3972, %v3988
    %v4008 = vunpack.c.l.s4 1934713408
    %v4009 = vunpack.c.0.s8 %v4008
    %v4010 = vlaneseq
    %v4011 = vshrl.u32 %v4010, 7
    %v4012 = vsub.s32 %v4009, %v4011
    %v4013 = vrot.slane %v4005, %v4012
    %v4015 = vunpack.c.l.s4 1934713408
    %v4016 = vunpack.c.0.s8 %v4015
    %v4017 = vlaneseq
    %v4018 = vshrl.u32 %v4017, 7
    %v4019 = vsub.s32 %v4016, %v4018
    %v4020 = vrot.slane %v4006, %v4019
    %v4021 = vcombine.high %v3997, 0.0
    %v4022 = vcombine.high %v4004, 0.0
    %v4023 = vcombine.high %v4013, 0.0
    %v4024 = vcombine.high %v4020, 0.0
    %v4025 = vcombine.low %v213, %v749
    %v4026 = vcombine.high %v213, %v749
    %v4028 = vunpack.c.l.s4 1983009808
    %v4029 = vunpack.c.0.s8 %v4028
    %v4030 = vlaneseq
    %v4031 = vshrl.u32 %v4030, 7
    %v4032 = vsub.s32 %v4029, %v4031
    %v4033 = vrot.slane %v4025, %v4032
    %v4035 = vunpack.c.l.s4 1983009808
    %v4036 = vunpack.c.0.s8 %v4035
    %v4037 = vlaneseq
    %v4038 = vshrl.u32 %v4037, 7
    %v4039 = vsub.s32 %v4036, %v4038
    %v4040 = vrot.slane %v4026, %v4039
    %v4041 = vcombine.low %v481, %v1017
    %v4042 = vcombine.high %v481, %v1017
    %v4044 = vunpack.c.l.s4 1983009808
    %v4045 = vunpack.c.0.s8 %v4044
    %v4046 = vlaneseq
    %v4047 = vshrl.u32 %v4046, 7
    %v4048 = vsub.s32 %v4045, %v4047
    %v4049 = vrot.slane %v4041, %v4048
    %v4051 = vunpack.c.l.s4 1983009808
    %v4052 = vunpack.c.0.s8 %v4051
    %v4053 = vlaneseq
    %v4054 = vshrl.u32 %v4053, 7
    %v4055 = vsub.s32 %v4052, %v4054
    %v4056 = vrot.slane %v4042, %v4055
    %v4057 = vcombine.low %v4033, %v4049
    %v4058 = vcombine.high %v4033, %v4049
    %v4060 = vunpack.c.l.s4 1934713408
    %v4061 = vunpack.c.0.s8 %v4060
    %v4062 = vlaneseq
    %v4063 = vshrl.u32 %v4062, 7
    %v4064 = vsub.s32 %v4061, %v4063
    %v4065 = vrot.slane %v4057, %v4064
    %v4067 = vunpack.c.l.s4 1934713408
    %v4068 = vunpack.c.0.s8 %v4067
    %v4069 = vlaneseq
    %v4070 = vshrl.u32 %v4069, 7
    %v4071 = vsub.s32 %v4068, %v4070
    %v4072 = vrot.slane %v4058, %v4071
    %v4073 = vcombine.low %v4040, %v4056
    %v4074 = vcombine.high %v4040, %v4056
    %v4076 = vunpack.c.l.s4 1934713408
    %v4077 = vunpack.c.0.s8 %v4076
    %v4078 = vlaneseq
    %v4079 = vshrl.u32 %v4078, 7
    %v4080 = vsub.s32 %v4077, %v4079
    %v4081 = vrot.slane %v4073, %v4080
    %v4083 = vunpack.c.l.s4 1934713408
    %v4084 = vunpack.c.0.s8 %v4083
    %v4085 = vlaneseq
    %v4086 = vshrl.u32 %v4085, 7
    %v4087 = vsub.s32 %v4084, %v4086
    %v4088 = vrot.slane %v4074, %v4087
    %v4089 = vcombine.high %v4065, 0.0
    %v4090 = vcombine.high %v4072, 0.0
    %v4091 = vcombine.high %v4081, 0.0
    %v4092 = vcombine.high %v4088, 0.0
    %v4093 = vcombine.low %v217, %v753
    %v4094 = vcombine.high %v217, %v753
    %v4096 = vunpack.c.l.s4 1983009808
    %v4097 = vunpack.c.0.s8 %v4096
    %v4098 = vlaneseq
    %v4099 = vshrl.u32 %v4098, 7
    %v4100 = vsub.s32 %v4097, %v4099
    %v4101 = vrot.slane %v4093, %v4100
    %v4103 = vunpack.c.l.s4 1983009808
    %v4104 = vunpack.c.0.s8 %v4103
    %v4105 = vlaneseq
    %v4106 = vshrl.u32 %v4105, 7
    %v4107 = vsub.s32 %v4104, %v4106
    %v4108 = vrot.slane %v4094, %v4107
    %v4109 = vcombine.low %v485, %v1021
    %v4110 = vcombine.high %v485, %v1021
    %v4112 = vunpack.c.l.s4 1983009808
    %v4113 = vunpack.c.0.s8 %v4112
    %v4114 = vlaneseq
    %v4115 = vshrl.u32 %v4114, 7
    %v4116 = vsub.s32 %v4113, %v4115
    %v4117 = vrot.slane %v4109, %v4116
    %v4119 = vunpack.c.l.s4 1983009808
    %v4120 = vunpack.c.0.s8 %v4119
    %v4121 = vlaneseq
    %v4122 = vshrl.u32 %v4121, 7
    %v4123 = vsub.s32 %v4120, %v4122
    %v4124 = vrot.slane %v4110, %v4123
    %v4125 = vcombine.low %v4101, %v4117
    %v4126 = vcombine.high %v4101, %v4117
    %v4128 = vunpack.c.l.s4 1934713408
    %v4129 = vunpack.c.0.s8 %v4128
    %v4130 = vlaneseq
    %v4131 = vshrl.u32 %v4130, 7
    %v4132 = vsub.s32 %v4129, %v4131
    %v4133 = vrot.slane %v4125, %v4132
    %v4135 = vunpack.c.l.s4 1934713408
    %v4136 = vunpack.c.0.s8 %v4135
    %v4137 = vlaneseq
    %v4138 = vshrl.u32 %v4137, 7
    %v4139 = vsub.s32 %v4136, %v4138
    %v4140 = vrot.slane %v4126, %v4139
    %v4141 = vcombine.low %v4108, %v4124
    %v4142 = vcombine.high %v4108, %v4124
    %v4144 = vunpack.c.l.s4 1934713408
    %v4145 = vunpack.c.0.s8 %v4144
    %v4146 = vlaneseq
    %v4147 = vshrl.u32 %v4146, 7
    %v4148 = vsub.s32 %v4145, %v4147
    %v4149 = vrot.slane %v4141, %v4148
    %v4151 = vunpack.c.l.s4 1934713408
    %v4152 = vunpack.c.0.s8 %v4151
    %v4153 = vlaneseq
    %v4154 = vshrl.u32 %v4153, 7
    %v4155 = vsub.s32 %v4152, %v4154
    %v4156 = vrot.slane %v4142, %v4155
    %v4157 = vcombine.high %v4133, 0.0
    %v4158 = vcombine.high %v4140, 0.0
    %v4159 = vcombine.high %v4149, 0.0
    %v4160 = vcombine.high %v4156, 0.0
    %v4161 = vcombine.low %v221, %v757
    %v4162 = vcombine.high %v221, %v757
    %v4164 = vunpack.c.l.s4 1983009808
    %v4165 = vunpack.c.0.s8 %v4164
    %v4166 = vlaneseq
    %v4167 = vshrl.u32 %v4166, 7
    %v4168 = vsub.s32 %v4165, %v4167
    %v4169 = vrot.slane %v4161, %v4168
    %v4171 = vunpack.c.l.s4 1983009808
    %v4172 = vunpack.c.0.s8 %v4171
    %v4173 = vlaneseq
    %v4174 = vshrl.u32 %v4173, 7
    %v4175 = vsub.s32 %v4172, %v4174
    %v4176 = vrot.slane %v4162, %v4175
    %v4177 = vcombine.low %v489, %v1025
    %v4178 = vcombine.high %v489, %v1025
    %v4180 = vunpack.c.l.s4 1983009808
    %v4181 = vunpack.c.0.s8 %v4180
    %v4182 = vlaneseq
    %v4183 = vshrl.u32 %v4182, 7
    %v4184 = vsub.s32 %v4181, %v4183
    %v4185 = vrot.slane %v4177, %v4184
    %v4187 = vunpack.c.l.s4 1983009808
    %v4188 = vunpack.c.0.s8 %v4187
    %v4189 = vlaneseq
    %v4190 = vshrl.u32 %v4189, 7
    %v4191 = vsub.s32 %v4188, %v4190
    %v4192 = vrot.slane %v4178, %v4191
    %v4193 = vcombine.low %v4169, %v4185
    %v4194 = vcombine.high %v4169, %v4185
    %v4196 = vunpack.c.l.s4 1934713408
    %v4197 = vunpack.c.0.s8 %v4196
    %v4198 = vlaneseq
    %v4199 = vshrl.u32 %v4198, 7
    %v4200 = vsub.s32 %v4197, %v4199
    %v4201 = vrot.slane %v4193, %v4200
    %v4203 = vunpack.c.l.s4 1934713408
    %v4204 = vunpack.c.0.s8 %v4203
    %v4205 = vlaneseq
    %v4206 = vshrl.u32 %v4205, 7
    %v4207 = vsub.s32 %v4204, %v4206
    %v4208 = vrot.slane %v4194, %v4207
    %v4209 = vcombine.low %v4176, %v4192
    %v4210 = vcombine.high %v4176, %v4192
    %v4212 = vunpack.c.l.s4 1934713408
    %v4213 = vunpack.c.0.s8 %v4212
    %v4214 = vlaneseq
    %v4215 = vshrl.u32 %v4214, 7
    %v4216 = vsub.s32 %v4213, %v4215
    %v4217 = vrot.slane %v4209, %v4216
    %v4219 = vunpack.c.l.s4 1934713408
    %v4220 = vunpack.c.0.s8 %v4219
    %v4221 = vlaneseq
    %v4222 = vshrl.u32 %v4221, 7
    %v4223 = vsub.s32 %v4220, %v4222
    %v4224 = vrot.slane %v4210, %v4223
    %v4225 = vcombine.high %v4201, 0.0
    %v4226 = vcombine.high %v4208, 0.0
    %v4227 = vcombine.high %v4217, 0.0
    %v4228 = vcombine.high %v4224, 0.0
    %v4229 = vcombine.low %v225, %v761
    %v4230 = vcombine.high %v225, %v761
    %v4232 = vunpack.c.l.s4 1983009808
    %v4233 = vunpack.c.0.s8 %v4232
    %v4234 = vlaneseq
    %v4235 = vshrl.u32 %v4234, 7
    %v4236 = vsub.s32 %v4233, %v4235
    %v4237 = vrot.slane %v4229, %v4236
    %v4239 = vunpack.c.l.s4 1983009808
    %v4240 = vunpack.c.0.s8 %v4239
    %v4241 = vlaneseq
    %v4242 = vshrl.u32 %v4241, 7
    %v4243 = vsub.s32 %v4240, %v4242
    %v4244 = vrot.slane %v4230, %v4243
    %v4245 = vcombine.low %v493, %v1029
    %v4246 = vcombine.high %v493, %v1029
    %v4248 = vunpack.c.l.s4 1983009808
    %v4249 = vunpack.c.0.s8 %v4248
    %v4250 = vlaneseq
    %v4251 = vshrl.u32 %v4250, 7
    %v4252 = vsub.s32 %v4249, %v4251
    %v4253 = vrot.slane %v4245, %v4252
    %v4255 = vunpack.c.l.s4 1983009808
    %v4256 = vunpack.c.0.s8 %v4255
    %v4257 = vlaneseq
    %v4258 = vshrl.u32 %v4257, 7
    %v4259 = vsub.s32 %v4256, %v4258
    %v4260 = vrot.slane %v4246, %v4259
    %v4261 = vcombine.low %v4237, %v4253
    %v4262 = vcombine.high %v4237, %v4253
    %v4264 = vunpack.c.l.s4 1934713408
    %v4265 = vunpack.c.0.s8 %v4264
    %v4266 = vlaneseq
    %v4267 = vshrl.u32 %v4266, 7
    %v4268 = vsub.s32 %v4265, %v4267
    %v4269 = vrot.slane %v4261, %v4268
    %v4271 = vunpack.c.l.s4 1934713408
    %v4272 = vunpack.c.0.s8 %v4271
    %v4273 = vlaneseq
    %v4274 = vshrl.u32 %v4273, 7
    %v4275 = vsub.s32 %v4272, %v4274
    %v4276 = vrot.slane %v4262, %v4275
    %v4277 = vcombine.low %v4244, %v4260
    %v4278 = vcombine.high %v4244, %v4260
    %v4280 = vunpack.c.l.s4 1934713408
    %v4281 = vunpack.c.0.s8 %v4280
    %v4282 = vlaneseq
    %v4283 = vshrl.u32 %v4282, 7
    %v4284 = vsub.s32 %v4281, %v4283
    %v4285 = vrot.slane %v4277, %v4284
    %v4287 = vunpack.c.l.s4 1934713408
    %v4288 = vunpack.c.0.s8 %v4287
    %v4289 = vlaneseq
    %v4290 = vshrl.u32 %v4289, 7
    %v4291 = vsub.s32 %v4288, %v4290
    %v4292 = vrot.slane %v4278, %v4291
    %v4293 = vcombine.high %v4269, 0.0
    %v4294 = vcombine.high %v4276, 0.0
    %v4295 = vcombine.high %v4285, 0.0
    %v4296 = vcombine.high %v4292, 0.0
    %v4297 = vcombine.low %v229, %v765
    %v4298 = vcombine.high %v229, %v765
    %v4300 = vunpack.c.l.s4 1983009808
    %v4301 = vunpack.c.0.s8 %v4300
    %v4302 = vlaneseq
    %v4303 = vshrl.u32 %v4302, 7
    %v4304 = vsub.s32 %v4301, %v4303
    %v4305 = vrot.slane %v4297, %v4304
    %v4307 = vunpack.c.l.s4 1983009808
    %v4308 = vunpack.c.0.s8 %v4307
    %v4309 = vlaneseq
    %v4310 = vshrl.u32 %v4309, 7
    %v4311 = vsub.s32 %v4308, %v4310
    %v4312 = vrot.slane %v4298, %v4311
    %v4313 = vcombine.low %v497, %v1033
    %v4314 = vcombine.high %v497, %v1033
    %v4316 = vunpack.c.l.s4 1983009808
    %v4317 = vunpack.c.0.s8 %v4316
    %v4318 = vlaneseq
    %v4319 = vshrl.u32 %v4318, 7
    %v4320 = vsub.s32 %v4317, %v4319
    %v4321 = vrot.slane %v4313, %v4320
    %v4323 = vunpack.c.l.s4 1983009808
    %v4324 = vunpack.c.0.s8 %v4323
    %v4325 = vlaneseq
    %v4326 = vshrl.u32 %v4325, 7
    %v4327 = vsub.s32 %v4324, %v4326
    %v4328 = vrot.slane %v4314, %v4327
    %v4329 = vcombine.low %v4305, %v4321
    %v4330 = vcombine.high %v4305, %v4321
    %v4332 = vunpack.c.l.s4 1934713408
    %v4333 = vunpack.c.0.s8 %v4332
    %v4334 = vlaneseq
    %v4335 = vshrl.u32 %v4334, 7
    %v4336 = vsub.s32 %v4333, %v4335
    %v4337 = vrot.slane %v4329, %v4336
    %v4339 = vunpack.c.l.s4 1934713408
    %v4340 = vunpack.c.0.s8 %v4339
    %v4341 = vlaneseq
    %v4342 = vshrl.u32 %v4341, 7
    %v4343 = vsub.s32 %v4340, %v4342
    %v4344 = vrot.slane %v4330, %v4343
    %v4345 = vcombine.low %v4312, %v4328
    %v4346 = vcombine.high %v4312, %v4328
    %v4348 = vunpack.c.l.s4 1934713408
    %v4349 = vunpack.c.0.s8 %v4348
    %v4350 = vlaneseq
    %v4351 = vshrl.u32 %v4350, 7
    %v4352 = vsub.s32 %v4349, %v4351
    %v4353 = vrot.slane %v4345, %v4352
    %v4355 = vunpack.c.l.s4 1934713408
    %v4356 = vunpack.c.0.s8 %v4355
    %v4357 = vlaneseq
    %v4358 = vshrl.u32 %v4357, 7
    %v4359 = vsub.s32 %v4356, %v4358
    %v4360 = vrot.slane %v4346, %v4359
    %v4361 = vcombine.high %v4337, 0.0
    %v4362 = vcombine.high %v4344, 0.0
    %v4363 = vcombine.high %v4353, 0.0
    %v4364 = vcombine.high %v4360, 0.0
    %v4365 = vcombine.low %v236, %v772
    %v4366 = vcombine.high %v236, %v772
    %v4368 = vunpack.c.l.s4 1983009808
    %v4369 = vunpack.c.0.s8 %v4368
    %v4370 = vlaneseq
    %v4371 = vshrl.u32 %v4370, 7
    %v4372 = vsub.s32 %v4369, %v4371
    %v4373 = vrot.slane %v4365, %v4372
    %v4375 = vunpack.c.l.s4 1983009808
    %v4376 = vunpack.c.0.s8 %v4375
    %v4377 = vlaneseq
    %v4378 = vshrl.u32 %v4377, 7
    %v4379 = vsub.s32 %v4376, %v4378
    %v4380 = vrot.slane %v4366, %v4379
    %v4381 = vcombine.low %v504, %v1040
    %v4382 = vcombine.high %v504, %v1040
    %v4384 = vunpack.c.l.s4 1983009808
    %v4385 = vunpack.c.0.s8 %v4384
    %v4386 = vlaneseq
    %v4387 = vshrl.u32 %v4386, 7
    %v4388 = vsub.s32 %v4385, %v4387
    %v4389 = vrot.slane %v4381, %v4388
    %v4391 = vunpack.c.l.s4 1983009808
    %v4392 = vunpack.c.0.s8 %v4391
    %v4393 = vlaneseq
    %v4394 = vshrl.u32 %v4393, 7
    %v4395 = vsub.s32 %v4392, %v4394
    %v4396 = vrot.slane %v4382, %v4395
    %v4397 = vcombine.low %v4373, %v4389
    %v4398 = vcombine.high %v4373, %v4389
    %v4400 = vunpack.c.l.s4 1934713408
    %v4401 = vunpack.c.0.s8 %v4400
    %v4402 = vlaneseq
    %v4403 = vshrl.u32 %v4402, 7
    %v4404 = vsub.s32 %v4401, %v4403
    %v4405 = vrot.slane %v4397, %v4404
    %v4407 = vunpack.c.l.s4 1934713408
    %v4408 = vunpack.c.0.s8 %v4407
    %v4409 = vlaneseq
    %v4410 = vshrl.u32 %v4409, 7
    %v4411 = vsub.s32 %v4408, %v4410
    %v4412 = vrot.slane %v4398, %v4411
    %v4413 = vcombine.low %v4380, %v4396
    %v4414 = vcombine.high %v4380, %v4396
    %v4416 = vunpack.c.l.s4 1934713408
    %v4417 = vunpack.c.0.s8 %v4416
    %v4418 = vlaneseq
    %v4419 = vshrl.u32 %v4418, 7
    %v4420 = vsub.s32 %v4417, %v4419
    %v4421 = vrot.slane %v4413, %v4420
    %v4423 = vunpack.c.l.s4 1934713408
    %v4424 = vunpack.c.0.s8 %v4423
    %v4425 = vlaneseq
    %v4426 = vshrl.u32 %v4425, 7
    %v4427 = vsub.s32 %v4424, %v4426
    %v4428 = vrot.slane %v4414, %v4427
    %v4429 = vcombine.high %v4405, 0.0
    %v4430 = vcombine.high %v4412, 0.0
    %v4431 = vcombine.high %v4421, 0.0
    %v4432 = vcombine.high %v4428, 0.0
    %v4433 = vcombine.low %v240, %v776
    %v4434 = vcombine.high %v240, %v776
    %v4436 = vunpack.c.l.s4 1983009808
    %v4437 = vunpack.c.0.s8 %v4436
    %v4438 = vlaneseq
    %v4439 = vshrl.u32 %v4438, 7
    %v4440 = vsub.s32 %v4437, %v4439
    %v4441 = vrot.slane %v4433, %v4440
    %v4443 = vunpack.c.l.s4 1983009808
    %v4444 = vunpack.c.0.s8 %v4443
    %v4445 = vlaneseq
    %v4446 = vshrl.u32 %v4445, 7
    %v4447 = vsub.s32 %v4444, %v4446
    %v4448 = vrot.slane %v4434, %v4447
    %v4449 = vcombine.low %v508, %v1044
    %v4450 = vcombine.high %v508, %v1044
    %v4452 = vunpack.c.l.s4 1983009808
    %v4453 = vunpack.c.0.s8 %v4452
    %v4454 = vlaneseq
    %v4455 = vshrl.u32 %v4454, 7
    %v4456 = vsub.s32 %v4453, %v4455
    %v4457 = vrot.slane %v4449, %v4456
    %v4459 = vunpack.c.l.s4 1983009808
    %v4460 = vunpack.c.0.s8 %v4459
    %v4461 = vlaneseq
    %v4462 = vshrl.u32 %v4461, 7
    %v4463 = vsub.s32 %v4460, %v4462
    %v4464 = vrot.slane %v4450, %v4463
    %v4465 = vcombine.low %v4441, %v4457
    %v4466 = vcombine.high %v4441, %v4457
    %v4468 = vunpack.c.l.s4 1934713408
    %v4469 = vunpack.c.0.s8 %v4468
    %v4470 = vlaneseq
    %v4471 = vshrl.u32 %v4470, 7
    %v4472 = vsub.s32 %v4469, %v4471
    %v4473 = vrot.slane %v4465, %v4472
    %v4475 = vunpack.c.l.s4 1934713408
    %v4476 = vunpack.c.0.s8 %v4475
    %v4477 = vlaneseq
    %v4478 = vshrl.u32 %v4477, 7
    %v4479 = vsub.s32 %v4476, %v4478
    %v4480 = vrot.slane %v4466, %v4479
    %v4481 = vcombine.low %v4448, %v4464
    %v4482 = vcombine.high %v4448, %v4464
    %v4484 = vunpack.c.l.s4 1934713408
    %v4485 = vunpack.c.0.s8 %v4484
    %v4486 = vlaneseq
    %v4487 = vshrl.u32 %v4486, 7
    %v4488 = vsub.s32 %v4485, %v4487
    %v4489 = vrot.slane %v4481, %v4488
    %v4491 = vunpack.c.l.s4 1934713408
    %v4492 = vunpack.c.0.s8 %v4491
    %v4493 = vlaneseq
    %v4494 = vshrl.u32 %v4493, 7
    %v4495 = vsub.s32 %v4492, %v4494
    %v4496 = vrot.slane %v4482, %v4495
    %v4497 = vcombine.high %v4473, 0.0
    %v4498 = vcombine.high %v4480, 0.0
    %v4499 = vcombine.high %v4489, 0.0
    %v4500 = vcombine.high %v4496, 0.0
    %v4501 = vcombine.low %v244, %v780
    %v4502 = vcombine.high %v244, %v780
    %v4504 = vunpack.c.l.s4 1983009808
    %v4505 = vunpack.c.0.s8 %v4504
    %v4506 = vlaneseq
    %v4507 = vshrl.u32 %v4506, 7
    %v4508 = vsub.s32 %v4505, %v4507
    %v4509 = vrot.slane %v4501, %v4508
    %v4511 = vunpack.c.l.s4 1983009808
    %v4512 = vunpack.c.0.s8 %v4511
    %v4513 = vlaneseq
    %v4514 = vshrl.u32 %v4513, 7
    %v4515 = vsub.s32 %v4512, %v4514
    %v4516 = vrot.slane %v4502, %v4515
    %v4517 = vcombine.low %v512, %v1048
    %v4518 = vcombine.high %v512, %v1048
    %v4520 = vunpack.c.l.s4 1983009808
    %v4521 = vunpack.c.0.s8 %v4520
    %v4522 = vlaneseq
    %v4523 = vshrl.u32 %v4522, 7
    %v4524 = vsub.s32 %v4521, %v4523
    %v4525 = vrot.slane %v4517, %v4524
    %v4527 = vunpack.c.l.s4 1983009808
    %v4528 = vunpack.c.0.s8 %v4527
    %v4529 = vlaneseq
    %v4530 = vshrl.u32 %v4529, 7
    %v4531 = vsub.s32 %v4528, %v4530
    %v4532 = vrot.slane %v4518, %v4531
    %v4533 = vcombine.low %v4509, %v4525
    %v4534 = vcombine.high %v4509, %v4525
    %v4536 = vunpack.c.l.s4 1934713408
    %v4537 = vunpack.c.0.s8 %v4536
    %v4538 = vlaneseq
    %v4539 = vshrl.u32 %v4538, 7
    %v4540 = vsub.s32 %v4537, %v4539
    %v4541 = vrot.slane %v4533, %v4540
    %v4543 = vunpack.c.l.s4 1934713408
    %v4544 = vunpack.c.0.s8 %v4543
    %v4545 = vlaneseq
    %v4546 = vshrl.u32 %v4545, 7
    %v4547 = vsub.s32 %v4544, %v4546
    %v4548 = vrot.slane %v4534, %v4547
    %v4549 = vcombine.low %v4516, %v4532
    %v4550 = vcombine.high %v4516, %v4532
    %v4552 = vunpack.c.l.s4 1934713408
    %v4553 = vunpack.c.0.s8 %v4552
    %v4554 = vlaneseq
    %v4555 = vshrl.u32 %v4554, 7
    %v4556 = vsub.s32 %v4553, %v4555
    %v4557 = vrot.slane %v4549, %v4556
    %v4559 = vunpack.c.l.s4 1934713408
    %v4560 = vunpack.c.0.s8 %v4559
    %v4561 = vlaneseq
    %v4562 = vshrl.u32 %v4561, 7
    %v4563 = vsub.s32 %v4560, %v4562
    %v4564 = vrot.slane %v4550, %v4563
    %v4565 = vcombine.high %v4541, 0.0
    %v4566 = vcombine.high %v4548, 0.0
    %v4567 = vcombine.high %v4557, 0.0
    %v4568 = vcombine.high %v4564, 0.0
    %v4569 = vcombine.low %v248, %v784
    %v4570 = vcombine.high %v248, %v784
    %v4572 = vunpack.c.l.s4 1983009808
    %v4573 = vunpack.c.0.s8 %v4572
    %v4574 = vlaneseq
    %v4575 = vshrl.u32 %v4574, 7
    %v4576 = vsub.s32 %v4573, %v4575
    %v4577 = vrot.slane %v4569, %v4576
    %v4579 = vunpack.c.l.s4 1983009808
    %v4580 = vunpack.c.0.s8 %v4579
    %v4581 = vlaneseq
    %v4582 = vshrl.u32 %v4581, 7
    %v4583 = vsub.s32 %v4580, %v4582
    %v4584 = vrot.slane %v4570, %v4583
    %v4585 = vcombine.low %v516, %v1052
    %v4586 = vcombine.high %v516, %v1052
    %v4588 = vunpack.c.l.s4 1983009808
    %v4589 = vunpack.c.0.s8 %v4588
    %v4590 = vlaneseq
    %v4591 = vshrl.u32 %v4590, 7
    %v4592 = vsub.s32 %v4589, %v4591
    %v4593 = vrot.slane %v4585, %v4592
    %v4595 = vunpack.c.l.s4 1983009808
    %v4596 = vunpack.c.0.s8 %v4595
    %v4597 = vlaneseq
    %v4598 = vshrl.u32 %v4597, 7
    %v4599 = vsub.s32 %v4596, %v4598
    %v4600 = vrot.slane %v4586, %v4599
    %v4601 = vcombine.low %v4577, %v4593
    %v4602 = vcombine.high %v4577, %v4593
    %v4604 = vunpack.c.l.s4 1934713408
    %v4605 = vunpack.c.0.s8 %v4604
    %v4606 = vlaneseq
    %v4607 = vshrl.u32 %v4606, 7
    %v4608 = vsub.s32 %v4605, %v4607
    %v4609 = vrot.slane %v4601, %v4608
    %v4611 = vunpack.c.l.s4 1934713408
    %v4612 = vunpack.c.0.s8 %v4611
    %v4613 = vlaneseq
    %v4614 = vshrl.u32 %v4613, 7
    %v4615 = vsub.s32 %v4612, %v4614
    %v4616 = vrot.slane %v4602, %v4615
    %v4617 = vcombine.low %v4584, %v4600
    %v4618 = vcombine.high %v4584, %v4600
    %v4620 = vunpack.c.l.s4 1934713408
    %v4621 = vunpack.c.0.s8 %v4620
    %v4622 = vlaneseq
    %v4623 = vshrl.u32 %v4622, 7
    %v4624 = vsub.s32 %v4621, %v4623
    %v4625 = vrot.slane %v4617, %v4624
    %v4627 = vunpack.c.l.s4 1934713408
    %v4628 = vunpack.c.0.s8 %v4627
    %v4629 = vlaneseq
    %v4630 = vshrl.u32 %v4629, 7
    %v4631 = vsub.s32 %v4628, %v4630
    %v4632 = vrot.slane %v4618, %v4631
    %v4633 = vcombine.high %v4609, 0.0
    %v4634 = vcombine.high %v4616, 0.0
    %v4635 = vcombine.high %v4625, 0.0
    %v4636 = vcombine.high %v4632, 0.0
    %v4637 = vcombine.low %v252, %v788
    %v4638 = vcombine.high %v252, %v788
    %v4640 = vunpack.c.l.s4 1983009808
    %v4641 = vunpack.c.0.s8 %v4640
    %v4642 = vlaneseq
    %v4643 = vshrl.u32 %v4642, 7
    %v4644 = vsub.s32 %v4641, %v4643
    %v4645 = vrot.slane %v4637, %v4644
    %v4647 = vunpack.c.l.s4 1983009808
    %v4648 = vunpack.c.0.s8 %v4647
    %v4649 = vlaneseq
    %v4650 = vshrl.u32 %v4649, 7
    %v4651 = vsub.s32 %v4648, %v4650
    %v4652 = vrot.slane %v4638, %v4651
    %v4653 = vcombine.low %v520, %v1056
    %v4654 = vcombine.high %v520, %v1056
    %v4656 = vunpack.c.l.s4 1983009808
    %v4657 = vunpack.c.0.s8 %v4656
    %v4658 = vlaneseq
    %v4659 = vshrl.u32 %v4658, 7
    %v4660 = vsub.s32 %v4657, %v4659
    %v4661 = vrot.slane %v4653, %v4660
    %v4663 = vunpack.c.l.s4 1983009808
    %v4664 = vunpack.c.0.s8 %v4663
    %v4665 = vlaneseq
    %v4666 = vshrl.u32 %v4665, 7
    %v4667 = vsub.s32 %v4664, %v4666
    %v4668 = vrot.slane %v4654, %v4667
    %v4669 = vcombine.low %v4645, %v4661
    %v4670 = vcombine.high %v4645, %v4661
    %v4672 = vunpack.c.l.s4 1934713408
    %v4673 = vunpack.c.0.s8 %v4672
    %v4674 = vlaneseq
    %v4675 = vshrl.u32 %v4674, 7
    %v4676 = vsub.s32 %v4673, %v4675
    %v4677 = vrot.slane %v4669, %v4676
    %v4679 = vunpack.c.l.s4 1934713408
    %v4680 = vunpack.c.0.s8 %v4679
    %v4681 = vlaneseq
    %v4682 = vshrl.u32 %v4681, 7
    %v4683 = vsub.s32 %v4680, %v4682
    %v4684 = vrot.slane %v4670, %v4683
    %v4685 = vcombine.low %v4652, %v4668
    %v4686 = vcombine.high %v4652, %v4668
    %v4688 = vunpack.c.l.s4 1934713408
    %v4689 = vunpack.c.0.s8 %v4688
    %v4690 = vlaneseq
    %v4691 = vshrl.u32 %v4690, 7
    %v4692 = vsub.s32 %v4689, %v4691
    %v4693 = vrot.slane %v4685, %v4692
    %v4695 = vunpack.c.l.s4 1934713408
    %v4696 = vunpack.c.0.s8 %v4695
    %v4697 = vlaneseq
    %v4698 = vshrl.u32 %v4697, 7
    %v4699 = vsub.s32 %v4696, %v4698
    %v4700 = vrot.slane %v4686, %v4699
    %v4701 = vcombine.high %v4677, 0.0
    %v4702 = vcombine.high %v4684, 0.0
    %v4703 = vcombine.high %v4693, 0.0
    %v4704 = vcombine.high %v4700, 0.0
    %v4705 = vcombine.low %v256, %v792
    %v4706 = vcombine.high %v256, %v792
    %v4708 = vunpack.c.l.s4 1983009808
    %v4709 = vunpack.c.0.s8 %v4708
    %v4710 = vlaneseq
    %v4711 = vshrl.u32 %v4710, 7
    %v4712 = vsub.s32 %v4709, %v4711
    %v4713 = vrot.slane %v4705, %v4712
    %v4715 = vunpack.c.l.s4 1983009808
    %v4716 = vunpack.c.0.s8 %v4715
    %v4717 = vlaneseq
    %v4718 = vshrl.u32 %v4717, 7
    %v4719 = vsub.s32 %v4716, %v4718
    %v4720 = vrot.slane %v4706, %v4719
    %v4721 = vcombine.low %v524, %v1060
    %v4722 = vcombine.high %v524, %v1060
    %v4724 = vunpack.c.l.s4 1983009808
    %v4725 = vunpack.c.0.s8 %v4724
    %v4726 = vlaneseq
    %v4727 = vshrl.u32 %v4726, 7
    %v4728 = vsub.s32 %v4725, %v4727
    %v4729 = vrot.slane %v4721, %v4728
    %v4731 = vunpack.c.l.s4 1983009808
    %v4732 = vunpack.c.0.s8 %v4731
    %v4733 = vlaneseq
    %v4734 = vshrl.u32 %v4733, 7
    %v4735 = vsub.s32 %v4732, %v4734
    %v4736 = vrot.slane %v4722, %v4735
    %v4737 = vcombine.low %v4713, %v4729
    %v4738 = vcombine.high %v4713, %v4729
    %v4740 = vunpack.c.l.s4 1934713408
    %v4741 = vunpack.c.0.s8 %v4740
    %v4742 = vlaneseq
    %v4743 = vshrl.u32 %v4742, 7
    %v4744 = vsub.s32 %v4741, %v4743
    %v4745 = vrot.slane %v4737, %v4744
    %v4747 = vunpack.c.l.s4 1934713408
    %v4748 = vunpack.c.0.s8 %v4747
    %v4749 = vlaneseq
    %v4750 = vshrl.u32 %v4749, 7
    %v4751 = vsub.s32 %v4748, %v4750
    %v4752 = vrot.slane %v4738, %v4751
    %v4753 = vcombine.low %v4720, %v4736
    %v4754 = vcombine.high %v4720, %v4736
    %v4756 = vunpack.c.l.s4 1934713408
    %v4757 = vunpack.c.0.s8 %v4756
    %v4758 = vlaneseq
    %v4759 = vshrl.u32 %v4758, 7
    %v4760 = vsub.s32 %v4757, %v4759
    %v4761 = vrot.slane %v4753, %v4760
    %v4763 = vunpack.c.l.s4 1934713408
    %v4764 = vunpack.c.0.s8 %v4763
    %v4765 = vlaneseq
    %v4766 = vshrl.u32 %v4765, 7
    %v4767 = vsub.s32 %v4764, %v4766
    %v4768 = vrot.slane %v4754, %v4767
    %v4769 = vcombine.high %v4745, 0.0
    %v4770 = vcombine.high %v4752, 0.0
    %v4771 = vcombine.high %v4761, 0.0
    %v4772 = vcombine.high %v4768, 0.0
    %v4773 = vcombine.low %v260, %v796
    %v4774 = vcombine.high %v260, %v796
    %v4776 = vunpack.c.l.s4 1983009808
    %v4777 = vunpack.c.0.s8 %v4776
    %v4778 = vlaneseq
    %v4779 = vshrl.u32 %v4778, 7
    %v4780 = vsub.s32 %v4777, %v4779
    %v4781 = vrot.slane %v4773, %v4780
    %v4783 = vunpack.c.l.s4 1983009808
    %v4784 = vunpack.c.0.s8 %v4783
    %v4785 = vlaneseq
    %v4786 = vshrl.u32 %v4785, 7
    %v4787 = vsub.s32 %v4784, %v4786
    %v4788 = vrot.slane %v4774, %v4787
    %v4789 = vcombine.low %v528, %v1064
    %v4790 = vcombine.high %v528, %v1064
    %v4792 = vunpack.c.l.s4 1983009808
    %v4793 = vunpack.c.0.s8 %v4792
    %v4794 = vlaneseq
    %v4795 = vshrl.u32 %v4794, 7
    %v4796 = vsub.s32 %v4793, %v4795
    %v4797 = vrot.slane %v4789, %v4796
    %v4799 = vunpack.c.l.s4 1983009808
    %v4800 = vunpack.c.0.s8 %v4799
    %v4801 = vlaneseq
    %v4802 = vshrl.u32 %v4801, 7
    %v4803 = vsub.s32 %v4800, %v4802
    %v4804 = vrot.slane %v4790, %v4803
    %v4805 = vcombine.low %v4781, %v4797
    %v4806 = vcombine.high %v4781, %v4797
    %v4808 = vunpack.c.l.s4 1934713408
    %v4809 = vunpack.c.0.s8 %v4808
    %v4810 = vlaneseq
    %v4811 = vshrl.u32 %v4810, 7
    %v4812 = vsub.s32 %v4809, %v4811
    %v4813 = vrot.slane %v4805, %v4812
    %v4815 = vunpack.c.l.s4 1934713408
    %v4816 = vunpack.c.0.s8 %v4815
    %v4817 = vlaneseq
    %v4818 = vshrl.u32 %v4817, 7
    %v4819 = vsub.s32 %v4816, %v4818
    %v4820 = vrot.slane %v4806, %v4819
    %v4821 = vcombine.low %v4788, %v4804
    %v4822 = vcombine.high %v4788, %v4804
    %v4824 = vunpack.c.l.s4 1934713408
    %v4825 = vunpack.c.0.s8 %v4824
    %v4826 = vlaneseq
    %v4827 = vshrl.u32 %v4826, 7
    %v4828 = vsub.s32 %v4825, %v4827
    %v4829 = vrot.slane %v4821, %v4828
    %v4831 = vunpack.c.l.s4 1934713408
    %v4832 = vunpack.c.0.s8 %v4831
    %v4833 = vlaneseq
    %v4834 = vshrl.u32 %v4833, 7
    %v4835 = vsub.s32 %v4832, %v4834
    %v4836 = vrot.slane %v4822, %v4835
    %v4837 = vcombine.high %v4813, 0.0
    %v4838 = vcombine.high %v4820, 0.0
    %v4839 = vcombine.high %v4829, 0.0
    %v4840 = vcombine.high %v4836, 0.0
    %v4841 = vcombine.low %v264, %v800
    %v4842 = vcombine.high %v264, %v800
    %v4844 = vunpack.c.l.s4 1983009808
    %v4845 = vunpack.c.0.s8 %v4844
    %v4846 = vlaneseq
    %v4847 = vshrl.u32 %v4846, 7
    %v4848 = vsub.s32 %v4845, %v4847
    %v4849 = vrot.slane %v4841, %v4848
    %v4851 = vunpack.c.l.s4 1983009808
    %v4852 = vunpack.c.0.s8 %v4851
    %v4853 = vlaneseq
    %v4854 = vshrl.u32 %v4853, 7
    %v4855 = vsub.s32 %v4852, %v4854
    %v4856 = vrot.slane %v4842, %v4855
    %v4857 = vcombine.low %v532, %v1068
    %v4858 = vcombine.high %v532, %v1068
    %v4860 = vunpack.c.l.s4 1983009808
    %v4861 = vunpack.c.0.s8 %v4860
    %v4862 = vlaneseq
    %v4863 = vshrl.u32 %v4862, 7
    %v4864 = vsub.s32 %v4861, %v4863
    %v4865 = vrot.slane %v4857, %v4864
    %v4867 = vunpack.c.l.s4 1983009808
    %v4868 = vunpack.c.0.s8 %v4867
    %v4869 = vlaneseq
    %v4870 = vshrl.u32 %v4869, 7
    %v4871 = vsub.s32 %v4868, %v4870
    %v4872 = vrot.slane %v4858, %v4871
    %v4873 = vcombine.low %v4849, %v4865
    %v4874 = vcombine.high %v4849, %v4865
    %v4876 = vunpack.c.l.s4 1934713408
    %v4877 = vunpack.c.0.s8 %v4876
    %v4878 = vlaneseq
    %v4879 = vshrl.u32 %v4878, 7
    %v4880 = vsub.s32 %v4877, %v4879
    %v4881 = vrot.slane %v4873, %v4880
    %v4883 = vunpack.c.l.s4 1934713408
    %v4884 = vunpack.c.0.s8 %v4883
    %v4885 = vlaneseq
    %v4886 = vshrl.u32 %v4885, 7
    %v4887 = vsub.s32 %v4884, %v4886
    %v4888 = vrot.slane %v4874, %v4887
    %v4889 = vcombine.low %v4856, %v4872
    %v4890 = vcombine.high %v4856, %v4872
    %v4892 = vunpack.c.l.s4 1934713408
    %v4893 = vunpack.c.0.s8 %v4892
    %v4894 = vlaneseq
    %v4895 = vshrl.u32 %v4894, 7
    %v4896 = vsub.s32 %v4893, %v4895
    %v4897 = vrot.slane %v4889, %v4896
    %v4899 = vunpack.c.l.s4 1934713408
    %v4900 = vunpack.c.0.s8 %v4899
    %v4901 = vlaneseq
    %v4902 = vshrl.u32 %v4901, 7
    %v4903 = vsub.s32 %v4900, %v4902
    %v4904 = vrot.slane %v4890, %v4903
    %v4905 = vcombine.high %v4881, 0.0
    %v4906 = vcombine.high %v4888, 0.0
    %v4907 = vcombine.high %v4897, 0.0
    %v4908 = vcombine.high %v4904, 0.0
    %v4909 = vcombine.low %v268, %v804
    %v4910 = vcombine.high %v268, %v804
    %v4912 = vunpack.c.l.s4 1983009808
    %v4913 = vunpack.c.0.s8 %v4912
    %v4914 = vlaneseq
    %v4915 = vshrl.u32 %v4914, 7
    %v4916 = vsub.s32 %v4913, %v4915
    %v4917 = vrot.slane %v4909, %v4916
    %v4919 = vunpack.c.l.s4 1983009808
    %v4920 = vunpack.c.0.s8 %v4919
    %v4921 = vlaneseq
    %v4922 = vshrl.u32 %v4921, 7
    %v4923 = vsub.s32 %v4920, %v4922
    %v4924 = vrot.slane %v4910, %v4923
    %v4925 = vcombine.low %v536, %v1072
    %v4926 = vcombine.high %v536, %v1072
    %v4928 = vunpack.c.l.s4 1983009808
    %v4929 = vunpack.c.0.s8 %v4928
    %v4930 = vlaneseq
    %v4931 = vshrl.u32 %v4930, 7
    %v4932 = vsub.s32 %v4929, %v4931
    %v4933 = vrot.slane %v4925, %v4932
    %v4935 = vunpack.c.l.s4 1983009808
    %v4936 = vunpack.c.0.s8 %v4935
    %v4937 = vlaneseq
    %v4938 = vshrl.u32 %v4937, 7
    %v4939 = vsub.s32 %v4936, %v4938
    %v4940 = vrot.slane %v4926, %v4939
    %v4941 = vcombine.low %v4917, %v4933
    %v4942 = vcombine.high %v4917, %v4933
    %v4944 = vunpack.c.l.s4 1934713408
    %v4945 = vunpack.c.0.s8 %v4944
    %v4946 = vlaneseq
    %v4947 = vshrl.u32 %v4946, 7
    %v4948 = vsub.s32 %v4945, %v4947
    %v4949 = vrot.slane %v4941, %v4948
    %v4951 = vunpack.c.l.s4 1934713408
    %v4952 = vunpack.c.0.s8 %v4951
    %v4953 = vlaneseq
    %v4954 = vshrl.u32 %v4953, 7
    %v4955 = vsub.s32 %v4952, %v4954
    %v4956 = vrot.slane %v4942, %v4955
    %v4957 = vcombine.low %v4924, %v4940
    %v4958 = vcombine.high %v4924, %v4940
    %v4960 = vunpack.c.l.s4 1934713408
    %v4961 = vunpack.c.0.s8 %v4960
    %v4962 = vlaneseq
    %v4963 = vshrl.u32 %v4962, 7
    %v4964 = vsub.s32 %v4961, %v4963
    %v4965 = vrot.slane %v4957, %v4964
    %v4967 = vunpack.c.l.s4 1934713408
    %v4968 = vunpack.c.0.s8 %v4967
    %v4969 = vlaneseq
    %v4970 = vshrl.u32 %v4969, 7
    %v4971 = vsub.s32 %v4968, %v4970
    %v4972 = vrot.slane %v4958, %v4971
    %v4973 = vcombine.high %v4949, 0.0
    %v4974 = vcombine.high %v4956, 0.0
    %v4975 = vcombine.high %v4965, 0.0
    %v4976 = vcombine.high %v4972, 0.0
    %v4977 = vcombine.low %v272, %v808
    %v4978 = vcombine.high %v272, %v808
    %v4980 = vunpack.c.l.s4 1983009808
    %v4981 = vunpack.c.0.s8 %v4980
    %v4982 = vlaneseq
    %v4983 = vshrl.u32 %v4982, 7
    %v4984 = vsub.s32 %v4981, %v4983
    %v4985 = vrot.slane %v4977, %v4984
    %v4987 = vunpack.c.l.s4 1983009808
    %v4988 = vunpack.c.0.s8 %v4987
    %v4989 = vlaneseq
    %v4990 = vshrl.u32 %v4989, 7
    %v4991 = vsub.s32 %v4988, %v4990
    %v4992 = vrot.slane %v4978, %v4991
    %v4993 = vcombine.low %v540, %v1076
    %v4994 = vcombine.high %v540, %v1076
    %v4996 = vunpack.c.l.s4 1983009808
    %v4997 = vunpack.c.0.s8 %v4996
    %v4998 = vlaneseq
    %v4999 = vshrl.u32 %v4998, 7
    %v5000 = vsub.s32 %v4997, %v4999
    %v5001 = vrot.slane %v4993, %v5000
    %v5003 = vunpack.c.l.s4 1983009808
    %v5004 = vunpack.c.0.s8 %v5003
    %v5005 = vlaneseq
    %v5006 = vshrl.u32 %v5005, 7
    %v5007 = vsub.s32 %v5004, %v5006
    %v5008 = vrot.slane %v4994, %v5007
    %v5009 = vcombine.low %v4985, %v5001
    %v5010 = vcombine.high %v4985, %v5001
    %v5012 = vunpack.c.l.s4 1934713408
    %v5013 = vunpack.c.0.s8 %v5012
    %v5014 = vlaneseq
    %v5015 = vshrl.u32 %v5014, 7
    %v5016 = vsub.s32 %v5013, %v5015
    %v5017 = vrot.slane %v5009, %v5016
    %v5019 = vunpack.c.l.s4 1934713408
    %v5020 = vunpack.c.0.s8 %v5019
    %v5021 = vlaneseq
    %v5022 = vshrl.u32 %v5021, 7
    %v5023 = vsub.s32 %v5020, %v5022
    %v5024 = vrot.slane %v5010, %v5023
    %v5025 = vcombine.low %v4992, %v5008
    %v5026 = vcombine.high %v4992, %v5008
    %v5028 = vunpack.c.l.s4 1934713408
    %v5029 = vunpack.c.0.s8 %v5028
    %v5030 = vlaneseq
    %v5031 = vshrl.u32 %v5030, 7
    %v5032 = vsub.s32 %v5029, %v5031
    %v5033 = vrot.slane %v5025, %v5032
    %v5035 = vunpack.c.l.s4 1934713408
    %v5036 = vunpack.c.0.s8 %v5035
    %v5037 = vlaneseq
    %v5038 = vshrl.u32 %v5037, 7
    %v5039 = vsub.s32 %v5036, %v5038
    %v5040 = vrot.slane %v5026, %v5039
    %v5041 = vcombine.high %v5017, 0.0
    %v5042 = vcombine.high %v5024, 0.0
    %v5043 = vcombine.high %v5033, 0.0
    %v5044 = vcombine.high %v5040, 0.0
    %v5045 = vcombine.low %v276, %v812
    %v5046 = vcombine.high %v276, %v812
    %v5048 = vunpack.c.l.s4 1983009808
    %v5049 = vunpack.c.0.s8 %v5048
    %v5050 = vlaneseq
    %v5051 = vshrl.u32 %v5050, 7
    %v5052 = vsub.s32 %v5049, %v5051
    %v5053 = vrot.slane %v5045, %v5052
    %v5055 = vunpack.c.l.s4 1983009808
    %v5056 = vunpack.c.0.s8 %v5055
    %v5057 = vlaneseq
    %v5058 = vshrl.u32 %v5057, 7
    %v5059 = vsub.s32 %v5056, %v5058
    %v5060 = vrot.slane %v5046, %v5059
    %v5061 = vcombine.low %v544, %v1080
    %v5062 = vcombine.high %v544, %v1080
    %v5064 = vunpack.c.l.s4 1983009808
    %v5065 = vunpack.c.0.s8 %v5064
    %v5066 = vlaneseq
    %v5067 = vshrl.u32 %v5066, 7
    %v5068 = vsub.s32 %v5065, %v5067
    %v5069 = vrot.slane %v5061, %v5068
    %v5071 = vunpack.c.l.s4 1983009808
    %v5072 = vunpack.c.0.s8 %v5071
    %v5073 = vlaneseq
    %v5074 = vshrl.u32 %v5073, 7
    %v5075 = vsub.s32 %v5072, %v5074
    %v5076 = vrot.slane %v5062, %v5075
    %v5077 = vcombine.low %v5053, %v5069
    %v5078 = vcombine.high %v5053, %v5069
    %v5080 = vunpack.c.l.s4 1934713408
    %v5081 = vunpack.c.0.s8 %v5080
    %v5082 = vlaneseq
    %v5083 = vshrl.u32 %v5082, 7
    %v5084 = vsub.s32 %v5081, %v5083
    %v5085 = vrot.slane %v5077, %v5084
    %v5087 = vunpack.c.l.s4 1934713408
    %v5088 = vunpack.c.0.s8 %v5087
    %v5089 = vlaneseq
    %v5090 = vshrl.u32 %v5089, 7
    %v5091 = vsub.s32 %v5088, %v5090
    %v5092 = vrot.slane %v5078, %v5091
    %v5093 = vcombine.low %v5060, %v5076
    %v5094 = vcombine.high %v5060, %v5076
    %v5096 = vunpack.c.l.s4 1934713408
    %v5097 = vunpack.c.0.s8 %v5096
    %v5098 = vlaneseq
    %v5099 = vshrl.u32 %v5098, 7
    %v5100 = vsub.s32 %v5097, %v5099
    %v5101 = vrot.slane %v5093, %v5100
    %v5103 = vunpack.c.l.s4 1934713408
    %v5104 = vunpack.c.0.s8 %v5103
    %v5105 = vlaneseq
    %v5106 = vshrl.u32 %v5105, 7
    %v5107 = vsub.s32 %v5104, %v5106
    %v5108 = vrot.slane %v5094, %v5107
    %v5109 = vcombine.high %v5085, 0.0
    %v5110 = vcombine.high %v5092, 0.0
    %v5111 = vcombine.high %v5101, 0.0
    %v5112 = vcombine.high %v5108, 0.0
    %v5113 = vcombine.low %v280, %v816
    %v5114 = vcombine.high %v280, %v816
    %v5116 = vunpack.c.l.s4 1983009808
    %v5117 = vunpack.c.0.s8 %v5116
    %v5118 = vlaneseq
    %v5119 = vshrl.u32 %v5118, 7
    %v5120 = vsub.s32 %v5117, %v5119
    %v5121 = vrot.slane %v5113, %v5120
    %v5123 = vunpack.c.l.s4 1983009808
    %v5124 = vunpack.c.0.s8 %v5123
    %v5125 = vlaneseq
    %v5126 = vshrl.u32 %v5125, 7
    %v5127 = vsub.s32 %v5124, %v5126
    %v5128 = vrot.slane %v5114, %v5127
    %v5129 = vcombine.low %v548, %v1084
    %v5130 = vcombine.high %v548, %v1084
    %v5132 = vunpack.c.l.s4 1983009808
    %v5133 = vunpack.c.0.s8 %v5132
    %v5134 = vlaneseq
    %v5135 = vshrl.u32 %v5134, 7
    %v5136 = vsub.s32 %v5133, %v5135
    %v5137 = vrot.slane %v5129, %v5136
    %v5139 = vunpack.c.l.s4 1983009808
    %v5140 = vunpack.c.0.s8 %v5139
    %v5141 = vlaneseq
    %v5142 = vshrl.u32 %v5141, 7
    %v5143 = vsub.s32 %v5140, %v5142
    %v5144 = vrot.slane %v5130, %v5143
    %v5145 = vcombine.low %v5121, %v5137
    %v5146 = vcombine.high %v5121, %v5137
    %v5148 = vunpack.c.l.s4 1934713408
    %v5149 = vunpack.c.0.s8 %v5148
    %v5150 = vlaneseq
    %v5151 = vshrl.u32 %v5150, 7
    %v5152 = vsub.s32 %v5149, %v5151
    %v5153 = vrot.slane %v5145, %v5152
    %v5155 = vunpack.c.l.s4 1934713408
    %v5156 = vunpack.c.0.s8 %v5155
    %v5157 = vlaneseq
    %v5158 = vshrl.u32 %v5157, 7
    %v5159 = vsub.s32 %v5156, %v5158
    %v5160 = vrot.slane %v5146, %v5159
    %v5161 = vcombine.low %v5128, %v5144
    %v5162 = vcombine.high %v5128, %v5144
    %v5164 = vunpack.c.l.s4 1934713408
    %v5165 = vunpack.c.0.s8 %v5164
    %v5166 = vlaneseq
    %v5167 = vshrl.u32 %v5166, 7
    %v5168 = vsub.s32 %v5165, %v5167
    %v5169 = vrot.slane %v5161, %v5168
    %v5171 = vunpack.c.l.s4 1934713408
    %v5172 = vunpack.c.0.s8 %v5171
    %v5173 = vlaneseq
    %v5174 = vshrl.u32 %v5173, 7
    %v5175 = vsub.s32 %v5172, %v5174
    %v5176 = vrot.slane %v5162, %v5175
    %v5177 = vcombine.high %v5153, 0.0
    %v5178 = vcombine.high %v5160, 0.0
    %v5179 = vcombine.high %v5169, 0.0
    %v5180 = vcombine.high %v5176, 0.0
    %v5181 = vcombine.low %v284, %v820
    %v5182 = vcombine.high %v284, %v820
    %v5184 = vunpack.c.l.s4 1983009808
    %v5185 = vunpack.c.0.s8 %v5184
    %v5186 = vlaneseq
    %v5187 = vshrl.u32 %v5186, 7
    %v5188 = vsub.s32 %v5185, %v5187
    %v5189 = vrot.slane %v5181, %v5188
    %v5191 = vunpack.c.l.s4 1983009808
    %v5192 = vunpack.c.0.s8 %v5191
    %v5193 = vlaneseq
    %v5194 = vshrl.u32 %v5193, 7
    %v5195 = vsub.s32 %v5192, %v5194
    %v5196 = vrot.slane %v5182, %v5195
    %v5197 = vcombine.low %v552, %v1088
    %v5198 = vcombine.high %v552, %v1088
    %v5200 = vunpack.c.l.s4 1983009808
    %v5201 = vunpack.c.0.s8 %v5200
    %v5202 = vlaneseq
    %v5203 = vshrl.u32 %v5202, 7
    %v5204 = vsub.s32 %v5201, %v5203
    %v5205 = vrot.slane %v5197, %v5204
    %v5207 = vunpack.c.l.s4 1983009808
    %v5208 = vunpack.c.0.s8 %v5207
    %v5209 = vlaneseq
    %v5210 = vshrl.u32 %v5209, 7
    %v5211 = vsub.s32 %v5208, %v5210
    %v5212 = vrot.slane %v5198, %v5211
    %v5213 = vcombine.low %v5189, %v5205
    %v5214 = vcombine.high %v5189, %v5205
    %v5216 = vunpack.c.l.s4 1934713408
    %v5217 = vunpack.c.0.s8 %v5216
    %v5218 = vlaneseq
    %v5219 = vshrl.u32 %v5218, 7
    %v5220 = vsub.s32 %v5217, %v5219
    %v5221 = vrot.slane %v5213, %v5220
    %v5223 = vunpack.c.l.s4 1934713408
    %v5224 = vunpack.c.0.s8 %v5223
    %v5225 = vlaneseq
    %v5226 = vshrl.u32 %v5225, 7
    %v5227 = vsub.s32 %v5224, %v5226
    %v5228 = vrot.slane %v5214, %v5227
    %v5229 = vcombine.low %v5196, %v5212
    %v5230 = vcombine.high %v5196, %v5212
    %v5232 = vunpack.c.l.s4 1934713408
    %v5233 = vunpack.c.0.s8 %v5232
    %v5234 = vlaneseq
    %v5235 = vshrl.u32 %v5234, 7
    %v5236 = vsub.s32 %v5233, %v5235
    %v5237 = vrot.slane %v5229, %v5236
    %v5239 = vunpack.c.l.s4 1934713408
    %v5240 = vunpack.c.0.s8 %v5239
    %v5241 = vlaneseq
    %v5242 = vshrl.u32 %v5241, 7
    %v5243 = vsub.s32 %v5240, %v5242
    %v5244 = vrot.slane %v5230, %v5243
    %v5245 = vcombine.high %v5221, 0.0
    %v5246 = vcombine.high %v5228, 0.0
    %v5247 = vcombine.high %v5237, 0.0
    %v5248 = vcombine.high %v5244, 0.0
    %v5249 = vcombine.low %v288, %v824
    %v5250 = vcombine.high %v288, %v824
    %v5252 = vunpack.c.l.s4 1983009808
    %v5253 = vunpack.c.0.s8 %v5252
    %v5254 = vlaneseq
    %v5255 = vshrl.u32 %v5254, 7
    %v5256 = vsub.s32 %v5253, %v5255
    %v5257 = vrot.slane %v5249, %v5256
    %v5259 = vunpack.c.l.s4 1983009808
    %v5260 = vunpack.c.0.s8 %v5259
    %v5261 = vlaneseq
    %v5262 = vshrl.u32 %v5261, 7
    %v5263 = vsub.s32 %v5260, %v5262
    %v5264 = vrot.slane %v5250, %v5263
    %v5265 = vcombine.low %v556, %v1092
    %v5266 = vcombine.high %v556, %v1092
    %v5268 = vunpack.c.l.s4 1983009808
    %v5269 = vunpack.c.0.s8 %v5268
    %v5270 = vlaneseq
    %v5271 = vshrl.u32 %v5270, 7
    %v5272 = vsub.s32 %v5269, %v5271
    %v5273 = vrot.slane %v5265, %v5272
    %v5275 = vunpack.c.l.s4 1983009808
    %v5276 = vunpack.c.0.s8 %v5275
    %v5277 = vlaneseq
    %v5278 = vshrl.u32 %v5277, 7
    %v5279 = vsub.s32 %v5276, %v5278
    %v5280 = vrot.slane %v5266, %v5279
    %v5281 = vcombine.low %v5257, %v5273
    %v5282 = vcombine.high %v5257, %v5273
    %v5284 = vunpack.c.l.s4 1934713408
    %v5285 = vunpack.c.0.s8 %v5284
    %v5286 = vlaneseq
    %v5287 = vshrl.u32 %v5286, 7
    %v5288 = vsub.s32 %v5285, %v5287
    %v5289 = vrot.slane %v5281, %v5288
    %v5291 = vunpack.c.l.s4 1934713408
    %v5292 = vunpack.c.0.s8 %v5291
    %v5293 = vlaneseq
    %v5294 = vshrl.u32 %v5293, 7
    %v5295 = vsub.s32 %v5292, %v5294
    %v5296 = vrot.slane %v5282, %v5295
    %v5297 = vcombine.low %v5264, %v5280
    %v5298 = vcombine.high %v5264, %v5280
    %v5300 = vunpack.c.l.s4 1934713408
    %v5301 = vunpack.c.0.s8 %v5300
    %v5302 = vlaneseq
    %v5303 = vshrl.u32 %v5302, 7
    %v5304 = vsub.s32 %v5301, %v5303
    %v5305 = vrot.slane %v5297, %v5304
    %v5307 = vunpack.c.l.s4 1934713408
    %v5308 = vunpack.c.0.s8 %v5307
    %v5309 = vlaneseq
    %v5310 = vshrl.u32 %v5309, 7
    %v5311 = vsub.s32 %v5308, %v5310
    %v5312 = vrot.slane %v5298, %v5311
    %v5313 = vcombine.high %v5289, 0.0
    %v5314 = vcombine.high %v5296, 0.0
    %v5315 = vcombine.high %v5305, 0.0
    %v5316 = vcombine.high %v5312, 0.0
    %v5317 = vcombine.low %v292, %v828
    %v5318 = vcombine.high %v292, %v828
    %v5320 = vunpack.c.l.s4 1983009808
    %v5321 = vunpack.c.0.s8 %v5320
    %v5322 = vlaneseq
    %v5323 = vshrl.u32 %v5322, 7
    %v5324 = vsub.s32 %v5321, %v5323
    %v5325 = vrot.slane %v5317, %v5324
    %v5327 = vunpack.c.l.s4 1983009808
    %v5328 = vunpack.c.0.s8 %v5327
    %v5329 = vlaneseq
    %v5330 = vshrl.u32 %v5329, 7
    %v5331 = vsub.s32 %v5328, %v5330
    %v5332 = vrot.slane %v5318, %v5331
    %v5333 = vcombine.low %v560, %v1096
    %v5334 = vcombine.high %v560, %v1096
    %v5336 = vunpack.c.l.s4 1983009808
    %v5337 = vunpack.c.0.s8 %v5336
    %v5338 = vlaneseq
    %v5339 = vshrl.u32 %v5338, 7
    %v5340 = vsub.s32 %v5337, %v5339
    %v5341 = vrot.slane %v5333, %v5340
    %v5343 = vunpack.c.l.s4 1983009808
    %v5344 = vunpack.c.0.s8 %v5343
    %v5345 = vlaneseq
    %v5346 = vshrl.u32 %v5345, 7
    %v5347 = vsub.s32 %v5344, %v5346
    %v5348 = vrot.slane %v5334, %v5347
    %v5349 = vcombine.low %v5325, %v5341
    %v5350 = vcombine.high %v5325, %v5341
    %v5352 = vunpack.c.l.s4 1934713408
    %v5353 = vunpack.c.0.s8 %v5352
    %v5354 = vlaneseq
    %v5355 = vshrl.u32 %v5354, 7
    %v5356 = vsub.s32 %v5353, %v5355
    %v5357 = vrot.slane %v5349, %v5356
    %v5359 = vunpack.c.l.s4 1934713408
    %v5360 = vunpack.c.0.s8 %v5359
    %v5361 = vlaneseq
    %v5362 = vshrl.u32 %v5361, 7
    %v5363 = vsub.s32 %v5360, %v5362
    %v5364 = vrot.slane %v5350, %v5363
    %v5365 = vcombine.low %v5332, %v5348
    %v5366 = vcombine.high %v5332, %v5348
    %v5368 = vunpack.c.l.s4 1934713408
    %v5369 = vunpack.c.0.s8 %v5368
    %v5370 = vlaneseq
    %v5371 = vshrl.u32 %v5370, 7
    %v5372 = vsub.s32 %v5369, %v5371
    %v5373 = vrot.slane %v5365, %v5372
    %v5375 = vunpack.c.l.s4 1934713408
    %v5376 = vunpack.c.0.s8 %v5375
    %v5377 = vlaneseq
    %v5378 = vshrl.u32 %v5377, 7
    %v5379 = vsub.s32 %v5376, %v5378
    %v5380 = vrot.slane %v5366, %v5379
    %v5381 = vcombine.high %v5357, 0.0
    %v5382 = vcombine.high %v5364, 0.0
    %v5383 = vcombine.high %v5373, 0.0
    %v5384 = vcombine.high %v5380, 0.0
    %v5385 = vcombine.low %v296, %v832
    %v5386 = vcombine.high %v296, %v832
    %v5388 = vunpack.c.l.s4 1983009808
    %v5389 = vunpack.c.0.s8 %v5388
    %v5390 = vlaneseq
    %v5391 = vshrl.u32 %v5390, 7
    %v5392 = vsub.s32 %v5389, %v5391
    %v5393 = vrot.slane %v5385, %v5392
    %v5395 = vunpack.c.l.s4 1983009808
    %v5396 = vunpack.c.0.s8 %v5395
    %v5397 = vlaneseq
    %v5398 = vshrl.u32 %v5397, 7
    %v5399 = vsub.s32 %v5396, %v5398
    %v5400 = vrot.slane %v5386, %v5399
    %v5401 = vcombine.low %v564, %v1100
    %v5402 = vcombine.high %v564, %v1100
    %v5404 = vunpack.c.l.s4 1983009808
    %v5405 = vunpack.c.0.s8 %v5404
    %v5406 = vlaneseq
    %v5407 = vshrl.u32 %v5406, 7
    %v5408 = vsub.s32 %v5405, %v5407
    %v5409 = vrot.slane %v5401, %v5408
    %v5411 = vunpack.c.l.s4 1983009808
    %v5412 = vunpack.c.0.s8 %v5411
    %v5413 = vlaneseq
    %v5414 = vshrl.u32 %v5413, 7
    %v5415 = vsub.s32 %v5412, %v5414
    %v5416 = vrot.slane %v5402, %v5415
    %v5417 = vcombine.low %v5393, %v5409
    %v5418 = vcombine.high %v5393, %v5409
    %v5420 = vunpack.c.l.s4 1934713408
    %v5421 = vunpack.c.0.s8 %v5420
    %v5422 = vlaneseq
    %v5423 = vshrl.u32 %v5422, 7
    %v5424 = vsub.s32 %v5421, %v5423
    %v5425 = vrot.slane %v5417, %v5424
    %v5427 = vunpack.c.l.s4 1934713408
    %v5428 = vunpack.c.0.s8 %v5427
    %v5429 = vlaneseq
    %v5430 = vshrl.u32 %v5429, 7
    %v5431 = vsub.s32 %v5428, %v5430
    %v5432 = vrot.slane %v5418, %v5431
    %v5433 = vcombine.low %v5400, %v5416
    %v5434 = vcombine.high %v5400, %v5416
    %v5436 = vunpack.c.l.s4 1934713408
    %v5437 = vunpack.c.0.s8 %v5436
    %v5438 = vlaneseq
    %v5439 = vshrl.u32 %v5438, 7
    %v5440 = vsub.s32 %v5437, %v5439
    %v5441 = vrot.slane %v5433, %v5440
    %v5443 = vunpack.c.l.s4 1934713408
    %v5444 = vunpack.c.0.s8 %v5443
    %v5445 = vlaneseq
    %v5446 = vshrl.u32 %v5445, 7
    %v5447 = vsub.s32 %v5444, %v5446
    %v5448 = vrot.slane %v5434, %v5447
    %v5449 = vcombine.high %v5425, 0.0
    %v5450 = vcombine.high %v5432, 0.0
    %v5451 = vcombine.high %v5441, 0.0
    %v5452 = vcombine.high %v5448, 0.0
    %5454 = vrot.lane.b32.xlu0 %v1165, 2
    %v5455 = vpop.permute.xlu0 %5454
    %5458 = vrot.lane.b32.xlu0 %v1148, 4
    %v5459 = vpop.permute.xlu0 %5458
    %5462 = vrot.lane.b32.xlu0 %v1166, 6
    %v5463 = vpop.permute.xlu0 %5462
    %5466 = vrot.lane.b32.xlu0 %v1157, 8
    %v5467 = vpop.permute.xlu0 %5466
    %5470 = vrot.lane.b32.xlu0 %v1167, 10
    %v5471 = vpop.permute.xlu0 %5470
    %5474 = vrot.lane.b32.xlu0 %v1164, 12
    %v5475 = vpop.permute.xlu0 %5474
    %5478 = vrot.lane.b32.xlu0 %v1168, 14
    %v5479 = vpop.permute.xlu0 %5478
    %5482 = vrot.lane.b32.xlu0 %v1209, 16
    %v5483 = vpop.permute.xlu0 %5482
    %5486 = vrot.lane.b32.xlu0 %v1233, 18
    %v5487 = vpop.permute.xlu0 %5486
    %5490 = vrot.lane.b32.xlu0 %v1216, 20
    %v5491 = vpop.permute.xlu0 %5490
    %5494 = vrot.lane.b32.xlu0 %v1234, 22
    %v5495 = vpop.permute.xlu0 %5494
    %5498 = vrot.lane.b32.xlu0 %v1225, 24
    %v5499 = vpop.permute.xlu0 %5498
    %5502 = vrot.lane.b32.xlu0 %v1235, 26
    %v5503 = vpop.permute.xlu0 %5502
    %5506 = vrot.lane.b32.xlu0 %v1232, 28
    %v5507 = vpop.permute.xlu0 %5506
    %5510 = vrot.lane.b32.xlu0 %v1236, 30
    %v5511 = vpop.permute.xlu0 %5510
    %5514 = vrot.lane.b32.xlu0 %v1277, 32
    %v5515 = vpop.permute.xlu0 %5514
    %5518 = vrot.lane.b32.xlu0 %v1301, 34
    %v5519 = vpop.permute.xlu0 %5518
    %5522 = vrot.lane.b32.xlu0 %v1284, 36
    %v5523 = vpop.permute.xlu0 %5522
    %5526 = vrot.lane.b32.xlu0 %v1302, 38
    %v5527 = vpop.permute.xlu0 %5526
    %5530 = vrot.lane.b32.xlu0 %v1293, 40
    %v5531 = vpop.permute.xlu0 %5530
    %5534 = vrot.lane.b32.xlu0 %v1303, 42
    %v5535 = vpop.permute.xlu0 %5534
    %5538 = vrot.lane.b32.xlu0 %v1300, 44
    %v5539 = vpop.permute.xlu0 %5538
    %5542 = vrot.lane.b32.xlu0 %v1304, 46
    %v5543 = vpop.permute.xlu0 %5542
    %5546 = vrot.lane.b32.xlu0 %v1345, 48
    %v5547 = vpop.permute.xlu0 %5546
    %5550 = vrot.lane.b32.xlu0 %v1369, 50
    %v5551 = vpop.permute.xlu0 %5550
    %5554 = vrot.lane.b32.xlu0 %v1352, 52
    %v5555 = vpop.permute.xlu0 %5554
    %5558 = vrot.lane.b32.xlu0 %v1370, 54
    %v5559 = vpop.permute.xlu0 %5558
    %5562 = vrot.lane.b32.xlu0 %v1361, 56
    %v5563 = vpop.permute.xlu0 %5562
    %5566 = vrot.lane.b32.xlu0 %v1371, 58
    %v5567 = vpop.permute.xlu0 %5566
    %5570 = vrot.lane.b32.xlu0 %v1368, 60
    %v5571 = vpop.permute.xlu0 %5570
    %5574 = vrot.lane.b32.xlu0 %v1372, 62
    %v5575 = vpop.permute.xlu0 %5574
    %5578 = vrot.lane.b32.xlu0 %v1413, 64
    %v5579 = vpop.permute.xlu0 %5578
    %5582 = vrot.lane.b32.xlu0 %v1437, 66
    %v5583 = vpop.permute.xlu0 %5582
    %5586 = vrot.lane.b32.xlu0 %v1420, 68
    %v5587 = vpop.permute.xlu0 %5586
    %5590 = vrot.lane.b32.xlu0 %v1438, 70
    %v5591 = vpop.permute.xlu0 %5590
    %5594 = vrot.lane.b32.xlu0 %v1429, 72
    %v5595 = vpop.permute.xlu0 %5594
    %5598 = vrot.lane.b32.xlu0 %v1439, 74
    %v5599 = vpop.permute.xlu0 %5598
    %5602 = vrot.lane.b32.xlu0 %v1436, 76
    %v5603 = vpop.permute.xlu0 %5602
    %5606 = vrot.lane.b32.xlu0 %v1440, 78
    %v5607 = vpop.permute.xlu0 %5606
    %5610 = vrot.lane.b32.xlu0 %v1481, 80
    %v5611 = vpop.permute.xlu0 %5610
    %5614 = vrot.lane.b32.xlu0 %v1505, 82
    %v5615 = vpop.permute.xlu0 %5614
    %5618 = vrot.lane.b32.xlu0 %v1488, 84
    %v5619 = vpop.permute.xlu0 %5618
    %5622 = vrot.lane.b32.xlu0 %v1506, 86
    %v5623 = vpop.permute.xlu0 %5622
    %5626 = vrot.lane.b32.xlu0 %v1497, 88
    %v5627 = vpop.permute.xlu0 %5626
    %5630 = vrot.lane.b32.xlu0 %v1507, 90
    %v5631 = vpop.permute.xlu0 %5630
    %5634 = vrot.lane.b32.xlu0 %v1504, 92
    %v5635 = vpop.permute.xlu0 %5634
    %5638 = vrot.lane.b32.xlu0 %v1508, 94
    %v5639 = vpop.permute.xlu0 %5638
    %5642 = vrot.lane.b32.xlu0 %v1549, 96
    %v5643 = vpop.permute.xlu0 %5642
    %5646 = vrot.lane.b32.xlu0 %v1573, 98
    %v5647 = vpop.permute.xlu0 %5646
    %5650 = vrot.lane.b32.xlu0 %v1556, 100
    %v5651 = vpop.permute.xlu0 %5650
    %5654 = vrot.lane.b32.xlu0 %v1574, 102
    %v5655 = vpop.permute.xlu0 %5654
    %5658 = vrot.lane.b32.xlu0 %v1565, 104
    %v5659 = vpop.permute.xlu0 %5658
    %5662 = vrot.lane.b32.xlu0 %v1575, 106
    %v5663 = vpop.permute.xlu0 %5662
    %5666 = vrot.lane.b32.xlu0 %v1572, 108
    %v5667 = vpop.permute.xlu0 %5666
    %5670 = vrot.lane.b32.xlu0 %v1576, 110
    %v5671 = vpop.permute.xlu0 %5670
    %5674 = vrot.lane.b32.xlu0 %v1617, 112
    %v5675 = vpop.permute.xlu0 %5674
    %5678 = vrot.lane.b32.xlu0 %v1641, 114
    %v5679 = vpop.permute.xlu0 %5678
    %5682 = vrot.lane.b32.xlu0 %v1624, 116
    %v5683 = vpop.permute.xlu0 %5682
    %5686 = vrot.lane.b32.xlu0 %v1642, 118
    %v5687 = vpop.permute.xlu0 %5686
    %5690 = vrot.lane.b32.xlu0 %v1633, 120
    %v5691 = vpop.permute.xlu0 %5690
    %5694 = vrot.lane.b32.xlu0 %v1643, 122
    %v5695 = vpop.permute.xlu0 %5694
    %5698 = vrot.lane.b32.xlu0 %v1640, 124
    %v5699 = vpop.permute.xlu0 %5698
    %5702 = vrot.lane.b32.xlu0 %v1644, 126
    %v5703 = vpop.permute.xlu0 %5702
    %5706 = vrot.lane.b32.xlu0 %v1709, 2
    %v5707 = vpop.permute.xlu0 %5706
    %5710 = vrot.lane.b32.xlu0 %v1692, 4
    %v5711 = vpop.permute.xlu0 %5710
    %5714 = vrot.lane.b32.xlu0 %v1710, 6
    %v5715 = vpop.permute.xlu0 %5714
    %5718 = vrot.lane.b32.xlu0 %v1701, 8
    %v5719 = vpop.permute.xlu0 %5718
    %5722 = vrot.lane.b32.xlu0 %v1711, 10
    %v5723 = vpop.permute.xlu0 %5722
    %5726 = vrot.lane.b32.xlu0 %v1708, 12
    %v5727 = vpop.permute.xlu0 %5726
    %5730 = vrot.lane.b32.xlu0 %v1712, 14
    %v5731 = vpop.permute.xlu0 %5730
    %5734 = vrot.lane.b32.xlu0 %v1753, 16
    %v5735 = vpop.permute.xlu0 %5734
    %5738 = vrot.lane.b32.xlu0 %v1777, 18
    %v5739 = vpop.permute.xlu0 %5738
    %5742 = vrot.lane.b32.xlu0 %v1760, 20
    %v5743 = vpop.permute.xlu0 %5742
    %5746 = vrot.lane.b32.xlu0 %v1778, 22
    %v5747 = vpop.permute.xlu0 %5746
    %5750 = vrot.lane.b32.xlu0 %v1769, 24
    %v5751 = vpop.permute.xlu0 %5750
    %5754 = vrot.lane.b32.xlu0 %v1779, 26
    %v5755 = vpop.permute.xlu0 %5754
    %5758 = vrot.lane.b32.xlu0 %v1776, 28
    %v5759 = vpop.permute.xlu0 %5758
    %5762 = vrot.lane.b32.xlu0 %v1780, 30
    %v5763 = vpop.permute.xlu0 %5762
    %5766 = vrot.lane.b32.xlu0 %v1821, 32
    %v5767 = vpop.permute.xlu0 %5766
    %5770 = vrot.lane.b32.xlu0 %v1845, 34
    %v5771 = vpop.permute.xlu0 %5770
    %5774 = vrot.lane.b32.xlu0 %v1828, 36
    %v5775 = vpop.permute.xlu0 %5774
    %5778 = vrot.lane.b32.xlu0 %v1846, 38
    %v5779 = vpop.permute.xlu0 %5778
    %5782 = vrot.lane.b32.xlu0 %v1837, 40
    %v5783 = vpop.permute.xlu0 %5782
    %5786 = vrot.lane.b32.xlu0 %v1847, 42
    %v5787 = vpop.permute.xlu0 %5786
    %5790 = vrot.lane.b32.xlu0 %v1844, 44
    %v5791 = vpop.permute.xlu0 %5790
    %5794 = vrot.lane.b32.xlu0 %v1848, 46
    %v5795 = vpop.permute.xlu0 %5794
    %5798 = vrot.lane.b32.xlu0 %v1889, 48
    %v5799 = vpop.permute.xlu0 %5798
    %5802 = vrot.lane.b32.xlu0 %v1913, 50
    %v5803 = vpop.permute.xlu0 %5802
    %5806 = vrot.lane.b32.xlu0 %v1896, 52
    %v5807 = vpop.permute.xlu0 %5806
    %5810 = vrot.lane.b32.xlu0 %v1914, 54
    %v5811 = vpop.permute.xlu0 %5810
    %5814 = vrot.lane.b32.xlu0 %v1905, 56
    %v5815 = vpop.permute.xlu0 %5814
    %5818 = vrot.lane.b32.xlu0 %v1915, 58
    %v5819 = vpop.permute.xlu0 %5818
    %5822 = vrot.lane.b32.xlu0 %v1912, 60
    %v5823 = vpop.permute.xlu0 %5822
    %5826 = vrot.lane.b32.xlu0 %v1916, 62
    %v5827 = vpop.permute.xlu0 %5826
    %5830 = vrot.lane.b32.xlu0 %v1957, 64
    %v5831 = vpop.permute.xlu0 %5830
    %5834 = vrot.lane.b32.xlu0 %v1981, 66
    %v5835 = vpop.permute.xlu0 %5834
    %5838 = vrot.lane.b32.xlu0 %v1964, 68
    %v5839 = vpop.permute.xlu0 %5838
    %5842 = vrot.lane.b32.xlu0 %v1982, 70
    %v5843 = vpop.permute.xlu0 %5842
    %5846 = vrot.lane.b32.xlu0 %v1973, 72
    %v5847 = vpop.permute.xlu0 %5846
    %5850 = vrot.lane.b32.xlu0 %v1983, 74
    %v5851 = vpop.permute.xlu0 %5850
    %5854 = vrot.lane.b32.xlu0 %v1980, 76
    %v5855 = vpop.permute.xlu0 %5854
    %5858 = vrot.lane.b32.xlu0 %v1984, 78
    %v5859 = vpop.permute.xlu0 %5858
    %5862 = vrot.lane.b32.xlu0 %v2025, 80
    %v5863 = vpop.permute.xlu0 %5862
    %5866 = vrot.lane.b32.xlu0 %v2049, 82
    %v5867 = vpop.permute.xlu0 %5866
    %5870 = vrot.lane.b32.xlu0 %v2032, 84
    %v5871 = vpop.permute.xlu0 %5870
    %5874 = vrot.lane.b32.xlu0 %v2050, 86
    %v5875 = vpop.permute.xlu0 %5874
    %5878 = vrot.lane.b32.xlu0 %v2041, 88
    %v5879 = vpop.permute.xlu0 %5878
    %5882 = vrot.lane.b32.xlu0 %v2051, 90
    %v5883 = vpop.permute.xlu0 %5882
    %5886 = vrot.lane.b32.xlu0 %v2048, 92
    %v5887 = vpop.permute.xlu0 %5886
    %5890 = vrot.lane.b32.xlu0 %v2052, 94
    %v5891 = vpop.permute.xlu0 %5890
    %5894 = vrot.lane.b32.xlu0 %v2093, 96
    %v5895 = vpop.permute.xlu0 %5894
    %5898 = vrot.lane.b32.xlu0 %v2117, 98
    %v5899 = vpop.permute.xlu0 %5898
    %5902 = vrot.lane.b32.xlu0 %v2100, 100
    %v5903 = vpop.permute.xlu0 %5902
    %5906 = vrot.lane.b32.xlu0 %v2118, 102
    %v5907 = vpop.permute.xlu0 %5906
    %5910 = vrot.lane.b32.xlu0 %v2109, 104
    %v5911 = vpop.permute.xlu0 %5910
    %5914 = vrot.lane.b32.xlu0 %v2119, 106
    %v5915 = vpop.permute.xlu0 %5914
    %5918 = vrot.lane.b32.xlu0 %v2116, 108
    %v5919 = vpop.permute.xlu0 %5918
    %5922 = vrot.lane.b32.xlu0 %v2120, 110
    %v5923 = vpop.permute.xlu0 %5922
    %5926 = vrot.lane.b32.xlu0 %v2161, 112
    %v5927 = vpop.permute.xlu0 %5926
    %5930 = vrot.lane.b32.xlu0 %v2185, 114
    %v5931 = vpop.permute.xlu0 %5930
    %5934 = vrot.lane.b32.xlu0 %v2168, 116
    %v5935 = vpop.permute.xlu0 %5934
    %5938 = vrot.lane.b32.xlu0 %v2186, 118
    %v5939 = vpop.permute.xlu0 %5938
    %5942 = vrot.lane.b32.xlu0 %v2177, 120
    %v5943 = vpop.permute.xlu0 %5942
    %5946 = vrot.lane.b32.xlu0 %v2187, 122
    %v5947 = vpop.permute.xlu0 %5946
    %5950 = vrot.lane.b32.xlu0 %v2184, 124
    %v5951 = vpop.permute.xlu0 %5950
    %5954 = vrot.lane.b32.xlu0 %v2188, 126
    %v5955 = vpop.permute.xlu0 %5954
    %5958 = vrot.lane.b32.xlu0 %v2253, 2
    %v5959 = vpop.permute.xlu0 %5958
    %5962 = vrot.lane.b32.xlu0 %v2236, 4
    %v5963 = vpop.permute.xlu0 %5962
    %5966 = vrot.lane.b32.xlu0 %v2254, 6
    %v5967 = vpop.permute.xlu0 %5966
    %5970 = vrot.lane.b32.xlu0 %v2245, 8
    %v5971 = vpop.permute.xlu0 %5970
    %5974 = vrot.lane.b32.xlu0 %v2255, 10
    %v5975 = vpop.permute.xlu0 %5974
    %5978 = vrot.lane.b32.xlu0 %v2252, 12
    %v5979 = vpop.permute.xlu0 %5978
    %5982 = vrot.lane.b32.xlu0 %v2256, 14
    %v5983 = vpop.permute.xlu0 %5982
    %5986 = vrot.lane.b32.xlu0 %v2297, 16
    %v5987 = vpop.permute.xlu0 %5986
    %5990 = vrot.lane.b32.xlu0 %v2321, 18
    %v5991 = vpop.permute.xlu0 %5990
    %5994 = vrot.lane.b32.xlu0 %v2304, 20
    %v5995 = vpop.permute.xlu0 %5994
    %5998 = vrot.lane.b32.xlu0 %v2322, 22
    %v5999 = vpop.permute.xlu0 %5998
    %6002 = vrot.lane.b32.xlu0 %v2313, 24
    %v6003 = vpop.permute.xlu0 %6002
    %6006 = vrot.lane.b32.xlu0 %v2323, 26
    %v6007 = vpop.permute.xlu0 %6006
    %6010 = vrot.lane.b32.xlu0 %v2320, 28
    %v6011 = vpop.permute.xlu0 %6010
    %6014 = vrot.lane.b32.xlu0 %v2324, 30
    %v6015 = vpop.permute.xlu0 %6014
    %6018 = vrot.lane.b32.xlu0 %v2365, 32
    %v6019 = vpop.permute.xlu0 %6018
    %6022 = vrot.lane.b32.xlu0 %v2389, 34
    %v6023 = vpop.permute.xlu0 %6022
    %6026 = vrot.lane.b32.xlu0 %v2372, 36
    %v6027 = vpop.permute.xlu0 %6026
    %6030 = vrot.lane.b32.xlu0 %v2390, 38
    %v6031 = vpop.permute.xlu0 %6030
    %6034 = vrot.lane.b32.xlu0 %v2381, 40
    %v6035 = vpop.permute.xlu0 %6034
    %6038 = vrot.lane.b32.xlu0 %v2391, 42
    %v6039 = vpop.permute.xlu0 %6038
    %6042 = vrot.lane.b32.xlu0 %v2388, 44
    %v6043 = vpop.permute.xlu0 %6042
    %6046 = vrot.lane.b32.xlu0 %v2392, 46
    %v6047 = vpop.permute.xlu0 %6046
    %6050 = vrot.lane.b32.xlu0 %v2433, 48
    %v6051 = vpop.permute.xlu0 %6050
    %6054 = vrot.lane.b32.xlu0 %v2457, 50
    %v6055 = vpop.permute.xlu0 %6054
    %6058 = vrot.lane.b32.xlu0 %v2440, 52
    %v6059 = vpop.permute.xlu0 %6058
    %6062 = vrot.lane.b32.xlu0 %v2458, 54
    %v6063 = vpop.permute.xlu0 %6062
    %6066 = vrot.lane.b32.xlu0 %v2449, 56
    %v6067 = vpop.permute.xlu0 %6066
    %6070 = vrot.lane.b32.xlu0 %v2459, 58
    %v6071 = vpop.permute.xlu0 %6070
    %6074 = vrot.lane.b32.xlu0 %v2456, 60
    %v6075 = vpop.permute.xlu0 %6074
    %6078 = vrot.lane.b32.xlu0 %v2460, 62
    %v6079 = vpop.permute.xlu0 %6078
    %6082 = vrot.lane.b32.xlu0 %v2501, 64
    %v6083 = vpop.permute.xlu0 %6082
    %6086 = vrot.lane.b32.xlu0 %v2525, 66
    %v6087 = vpop.permute.xlu0 %6086
    %6090 = vrot.lane.b32.xlu0 %v2508, 68
    %v6091 = vpop.permute.xlu0 %6090
    %6094 = vrot.lane.b32.xlu0 %v2526, 70
    %v6095 = vpop.permute.xlu0 %6094
    %6098 = vrot.lane.b32.xlu0 %v2517, 72
    %v6099 = vpop.permute.xlu0 %6098
    %6102 = vrot.lane.b32.xlu0 %v2527, 74
    %v6103 = vpop.permute.xlu0 %6102
    %6106 = vrot.lane.b32.xlu0 %v2524, 76
    %v6107 = vpop.permute.xlu0 %6106
    %6110 = vrot.lane.b32.xlu0 %v2528, 78
    %v6111 = vpop.permute.xlu0 %6110
    %6114 = vrot.lane.b32.xlu0 %v2569, 80
    %v6115 = vpop.permute.xlu0 %6114
    %6118 = vrot.lane.b32.xlu0 %v2593, 82
    %v6119 = vpop.permute.xlu0 %6118
    %6122 = vrot.lane.b32.xlu0 %v2576, 84
    %v6123 = vpop.permute.xlu0 %6122
    %6126 = vrot.lane.b32.xlu0 %v2594, 86
    %v6127 = vpop.permute.xlu0 %6126
    %6130 = vrot.lane.b32.xlu0 %v2585, 88
    %v6131 = vpop.permute.xlu0 %6130
    %6134 = vrot.lane.b32.xlu0 %v2595, 90
    %v6135 = vpop.permute.xlu0 %6134
    %6138 = vrot.lane.b32.xlu0 %v2592, 92
    %v6139 = vpop.permute.xlu0 %6138
    %6142 = vrot.lane.b32.xlu0 %v2596, 94
    %v6143 = vpop.permute.xlu0 %6142
    %6146 = vrot.lane.b32.xlu0 %v2637, 96
    %v6147 = vpop.permute.xlu0 %6146
    %6150 = vrot.lane.b32.xlu0 %v2661, 98
    %v6151 = vpop.permute.xlu0 %6150
    %6154 = vrot.lane.b32.xlu0 %v2644, 100
    %v6155 = vpop.permute.xlu0 %6154
    %6158 = vrot.lane.b32.xlu0 %v2662, 102
    %v6159 = vpop.permute.xlu0 %6158
    %6162 = vrot.lane.b32.xlu0 %v2653, 104
    %v6163 = vpop.permute.xlu0 %6162
    %6166 = vrot.lane.b32.xlu0 %v2663, 106
    %v6167 = vpop.permute.xlu0 %6166
    %6170 = vrot.lane.b32.xlu0 %v2660, 108
    %v6171 = vpop.permute.xlu0 %6170
    %6174 = vrot.lane.b32.xlu0 %v2664, 110
    %v6175 = vpop.permute.xlu0 %6174
    %6178 = vrot.lane.b32.xlu0 %v2705, 112
    %v6179 = vpop.permute.xlu0 %6178
    %6182 = vrot.lane.b32.xlu0 %v2729, 114
    %v6183 = vpop.permute.xlu0 %6182
    %6186 = vrot.lane.b32.xlu0 %v2712, 116
    %v6187 = vpop.permute.xlu0 %6186
    %6190 = vrot.lane.b32.xlu0 %v2730, 118
    %v6191 = vpop.permute.xlu0 %6190
    %6194 = vrot.lane.b32.xlu0 %v2721, 120
    %v6195 = vpop.permute.xlu0 %6194
    %6198 = vrot.lane.b32.xlu0 %v2731, 122
    %v6199 = vpop.permute.xlu0 %6198
    %6202 = vrot.lane.b32.xlu0 %v2728, 124
    %v6203 = vpop.permute.xlu0 %6202
    %6206 = vrot.lane.b32.xlu0 %v2732, 126
    %v6207 = vpop.permute.xlu0 %6206
    %6210 = vrot.lane.b32.xlu0 %v2797, 2
    %v6211 = vpop.permute.xlu0 %6210
    %6214 = vrot.lane.b32.xlu0 %v2780, 4
    %v6215 = vpop.permute.xlu0 %6214
    %6218 = vrot.lane.b32.xlu0 %v2798, 6
    %v6219 = vpop.permute.xlu0 %6218
    %6222 = vrot.lane.b32.xlu0 %v2789, 8
    %v6223 = vpop.permute.xlu0 %6222
    %6226 = vrot.lane.b32.xlu0 %v2799, 10
    %v6227 = vpop.permute.xlu0 %6226
    %6230 = vrot.lane.b32.xlu0 %v2796, 12
    %v6231 = vpop.permute.xlu0 %6230
    %6234 = vrot.lane.b32.xlu0 %v2800, 14
    %v6235 = vpop.permute.xlu0 %6234
    %6238 = vrot.lane.b32.xlu0 %v2841, 16
    %v6239 = vpop.permute.xlu0 %6238
    %6242 = vrot.lane.b32.xlu0 %v2865, 18
    %v6243 = vpop.permute.xlu0 %6242
    %6246 = vrot.lane.b32.xlu0 %v2848, 20
    %v6247 = vpop.permute.xlu0 %6246
    %6250 = vrot.lane.b32.xlu0 %v2866, 22
    %v6251 = vpop.permute.xlu0 %6250
    %6254 = vrot.lane.b32.xlu0 %v2857, 24
    %v6255 = vpop.permute.xlu0 %6254
    %6258 = vrot.lane.b32.xlu0 %v2867, 26
    %v6259 = vpop.permute.xlu0 %6258
    %6262 = vrot.lane.b32.xlu0 %v2864, 28
    %v6263 = vpop.permute.xlu0 %6262
    %6266 = vrot.lane.b32.xlu0 %v2868, 30
    %v6267 = vpop.permute.xlu0 %6266
    %6270 = vrot.lane.b32.xlu0 %v2909, 32
    %v6271 = vpop.permute.xlu0 %6270
    %6274 = vrot.lane.b32.xlu0 %v2933, 34
    %v6275 = vpop.permute.xlu0 %6274
    %6278 = vrot.lane.b32.xlu0 %v2916, 36
    %v6279 = vpop.permute.xlu0 %6278
    %6282 = vrot.lane.b32.xlu0 %v2934, 38
    %v6283 = vpop.permute.xlu0 %6282
    %6286 = vrot.lane.b32.xlu0 %v2925, 40
    %v6287 = vpop.permute.xlu0 %6286
    %6290 = vrot.lane.b32.xlu0 %v2935, 42
    %v6291 = vpop.permute.xlu0 %6290
    %6294 = vrot.lane.b32.xlu0 %v2932, 44
    %v6295 = vpop.permute.xlu0 %6294
    %6298 = vrot.lane.b32.xlu0 %v2936, 46
    %v6299 = vpop.permute.xlu0 %6298
    %6302 = vrot.lane.b32.xlu0 %v2977, 48
    %v6303 = vpop.permute.xlu0 %6302
    %6306 = vrot.lane.b32.xlu0 %v3001, 50
    %v6307 = vpop.permute.xlu0 %6306
    %6310 = vrot.lane.b32.xlu0 %v2984, 52
    %v6311 = vpop.permute.xlu0 %6310
    %6314 = vrot.lane.b32.xlu0 %v3002, 54
    %v6315 = vpop.permute.xlu0 %6314
    %6318 = vrot.lane.b32.xlu0 %v2993, 56
    %v6319 = vpop.permute.xlu0 %6318
    %6322 = vrot.lane.b32.xlu0 %v3003, 58
    %v6323 = vpop.permute.xlu0 %6322
    %6326 = vrot.lane.b32.xlu0 %v3000, 60
    %v6327 = vpop.permute.xlu0 %6326
    %6330 = vrot.lane.b32.xlu0 %v3004, 62
    %v6331 = vpop.permute.xlu0 %6330
    %6334 = vrot.lane.b32.xlu0 %v3045, 64
    %v6335 = vpop.permute.xlu0 %6334
    %6338 = vrot.lane.b32.xlu0 %v3069, 66
    %v6339 = vpop.permute.xlu0 %6338
    %6342 = vrot.lane.b32.xlu0 %v3052, 68
    %v6343 = vpop.permute.xlu0 %6342
    %6346 = vrot.lane.b32.xlu0 %v3070, 70
    %v6347 = vpop.permute.xlu0 %6346
    %6350 = vrot.lane.b32.xlu0 %v3061, 72
    %v6351 = vpop.permute.xlu0 %6350
    %6354 = vrot.lane.b32.xlu0 %v3071, 74
    %v6355 = vpop.permute.xlu0 %6354
    %6358 = vrot.lane.b32.xlu0 %v3068, 76
    %v6359 = vpop.permute.xlu0 %6358
    %6362 = vrot.lane.b32.xlu0 %v3072, 78
    %v6363 = vpop.permute.xlu0 %6362
    %6366 = vrot.lane.b32.xlu0 %v3113, 80
    %v6367 = vpop.permute.xlu0 %6366
    %6370 = vrot.lane.b32.xlu0 %v3137, 82
    %v6371 = vpop.permute.xlu0 %6370
    %6374 = vrot.lane.b32.xlu0 %v3120, 84
    %v6375 = vpop.permute.xlu0 %6374
    %6378 = vrot.lane.b32.xlu0 %v3138, 86
    %v6379 = vpop.permute.xlu0 %6378
    %6382 = vrot.lane.b32.xlu0 %v3129, 88
    %v6383 = vpop.permute.xlu0 %6382
    %6386 = vrot.lane.b32.xlu0 %v3139, 90
    %v6387 = vpop.permute.xlu0 %6386
    %6390 = vrot.lane.b32.xlu0 %v3136, 92
    %v6391 = vpop.permute.xlu0 %6390
    %6394 = vrot.lane.b32.xlu0 %v3140, 94
    %v6395 = vpop.permute.xlu0 %6394
    %6398 = vrot.lane.b32.xlu0 %v3181, 96
    %v6399 = vpop.permute.xlu0 %6398
    %6402 = vrot.lane.b32.xlu0 %v3205, 98
    %v6403 = vpop.permute.xlu0 %6402
    %6406 = vrot.lane.b32.xlu0 %v3188, 100
    %v6407 = vpop.permute.xlu0 %6406
    %6410 = vrot.lane.b32.xlu0 %v3206, 102
    %v6411 = vpop.permute.xlu0 %6410
    %6414 = vrot.lane.b32.xlu0 %v3197, 104
    %v6415 = vpop.permute.xlu0 %6414
    %6418 = vrot.lane.b32.xlu0 %v3207, 106
    %v6419 = vpop.permute.xlu0 %6418
    %6422 = vrot.lane.b32.xlu0 %v3204, 108
    %v6423 = vpop.permute.xlu0 %6422
    %6426 = vrot.lane.b32.xlu0 %v3208, 110
    %v6427 = vpop.permute.xlu0 %6426
    %6430 = vrot.lane.b32.xlu0 %v3249, 112
    %v6431 = vpop.permute.xlu0 %6430
    %6434 = vrot.lane.b32.xlu0 %v3273, 114
    %v6435 = vpop.permute.xlu0 %6434
    %6438 = vrot.lane.b32.xlu0 %v3256, 116
    %v6439 = vpop.permute.xlu0 %6438
    %6442 = vrot.lane.b32.xlu0 %v3274, 118
    %v6443 = vpop.permute.xlu0 %6442
    %6446 = vrot.lane.b32.xlu0 %v3265, 120
    %v6447 = vpop.permute.xlu0 %6446
    %6450 = vrot.lane.b32.xlu0 %v3275, 122
    %v6451 = vpop.permute.xlu0 %6450
    %6454 = vrot.lane.b32.xlu0 %v3272, 124
    %v6455 = vpop.permute.xlu0 %6454
    %6458 = vrot.lane.b32.xlu0 %v3276, 126
    %v6459 = vpop.permute.xlu0 %6458
    %6462 = vrot.lane.b32.xlu0 %v3341, 2
    %v6463 = vpop.permute.xlu0 %6462
    %6466 = vrot.lane.b32.xlu0 %v3324, 4
    %v6467 = vpop.permute.xlu0 %6466
    %6470 = vrot.lane.b32.xlu0 %v3342, 6
    %v6471 = vpop.permute.xlu0 %6470
    %6474 = vrot.lane.b32.xlu0 %v3333, 8
    %v6475 = vpop.permute.xlu0 %6474
    %6478 = vrot.lane.b32.xlu0 %v3343, 10
    %v6479 = vpop.permute.xlu0 %6478
    %6482 = vrot.lane.b32.xlu0 %v3340, 12
    %v6483 = vpop.permute.xlu0 %6482
    %6486 = vrot.lane.b32.xlu0 %v3344, 14
    %v6487 = vpop.permute.xlu0 %6486
    %6490 = vrot.lane.b32.xlu0 %v3385, 16
    %v6491 = vpop.permute.xlu0 %6490
    %6494 = vrot.lane.b32.xlu0 %v3409, 18
    %v6495 = vpop.permute.xlu0 %6494
    %6498 = vrot.lane.b32.xlu0 %v3392, 20
    %v6499 = vpop.permute.xlu0 %6498
    %6502 = vrot.lane.b32.xlu0 %v3410, 22
    %v6503 = vpop.permute.xlu0 %6502
    %6506 = vrot.lane.b32.xlu0 %v3401, 24
    %v6507 = vpop.permute.xlu0 %6506
    %6510 = vrot.lane.b32.xlu0 %v3411, 26
    %v6511 = vpop.permute.xlu0 %6510
    %6514 = vrot.lane.b32.xlu0 %v3408, 28
    %v6515 = vpop.permute.xlu0 %6514
    %6518 = vrot.lane.b32.xlu0 %v3412, 30
    %v6519 = vpop.permute.xlu0 %6518
    %6522 = vrot.lane.b32.xlu0 %v3453, 32
    %v6523 = vpop.permute.xlu0 %6522
    %6526 = vrot.lane.b32.xlu0 %v3477, 34
    %v6527 = vpop.permute.xlu0 %6526
    %6530 = vrot.lane.b32.xlu0 %v3460, 36
    %v6531 = vpop.permute.xlu0 %6530
    %6534 = vrot.lane.b32.xlu0 %v3478, 38
    %v6535 = vpop.permute.xlu0 %6534
    %6538 = vrot.lane.b32.xlu0 %v3469, 40
    %v6539 = vpop.permute.xlu0 %6538
    %6542 = vrot.lane.b32.xlu0 %v3479, 42
    %v6543 = vpop.permute.xlu0 %6542
    %6546 = vrot.lane.b32.xlu0 %v3476, 44
    %v6547 = vpop.permute.xlu0 %6546
    %6550 = vrot.lane.b32.xlu0 %v3480, 46
    %v6551 = vpop.permute.xlu0 %6550
    %6554 = vrot.lane.b32.xlu0 %v3521, 48
    %v6555 = vpop.permute.xlu0 %6554
    %6558 = vrot.lane.b32.xlu0 %v3545, 50
    %v6559 = vpop.permute.xlu0 %6558
    %6562 = vrot.lane.b32.xlu0 %v3528, 52
    %v6563 = vpop.permute.xlu0 %6562
    %6566 = vrot.lane.b32.xlu0 %v3546, 54
    %v6567 = vpop.permute.xlu0 %6566
    %6570 = vrot.lane.b32.xlu0 %v3537, 56
    %v6571 = vpop.permute.xlu0 %6570
    %6574 = vrot.lane.b32.xlu0 %v3547, 58
    %v6575 = vpop.permute.xlu0 %6574
    %6578 = vrot.lane.b32.xlu0 %v3544, 60
    %v6579 = vpop.permute.xlu0 %6578
    %6582 = vrot.lane.b32.xlu0 %v3548, 62
    %v6583 = vpop.permute.xlu0 %6582
    %6586 = vrot.lane.b32.xlu0 %v3589, 64
    %v6587 = vpop.permute.xlu0 %6586
    %6590 = vrot.lane.b32.xlu0 %v3613, 66
    %v6591 = vpop.permute.xlu0 %6590
    %6594 = vrot.lane.b32.xlu0 %v3596, 68
    %v6595 = vpop.permute.xlu0 %6594
    %6598 = vrot.lane.b32.xlu0 %v3614, 70
    %v6599 = vpop.permute.xlu0 %6598
    %6602 = vrot.lane.b32.xlu0 %v3605, 72
    %v6603 = vpop.permute.xlu0 %6602
    %6606 = vrot.lane.b32.xlu0 %v3615, 74
    %v6607 = vpop.permute.xlu0 %6606
    %6610 = vrot.lane.b32.xlu0 %v3612, 76
    %v6611 = vpop.permute.xlu0 %6610
    %6614 = vrot.lane.b32.xlu0 %v3616, 78
    %v6615 = vpop.permute.xlu0 %6614
    %6618 = vrot.lane.b32.xlu0 %v3657, 80
    %v6619 = vpop.permute.xlu0 %6618
    %6622 = vrot.lane.b32.xlu0 %v3681, 82
    %v6623 = vpop.permute.xlu0 %6622
    %6626 = vrot.lane.b32.xlu0 %v3664, 84
    %v6627 = vpop.permute.xlu0 %6626
    %6630 = vrot.lane.b32.xlu0 %v3682, 86
    %v6631 = vpop.permute.xlu0 %6630
    %6634 = vrot.lane.b32.xlu0 %v3673, 88
    %v6635 = vpop.permute.xlu0 %6634
    %6638 = vrot.lane.b32.xlu0 %v3683, 90
    %v6639 = vpop.permute.xlu0 %6638
    %6642 = vrot.lane.b32.xlu0 %v3680, 92
    %v6643 = vpop.permute.xlu0 %6642
    %6646 = vrot.lane.b32.xlu0 %v3684, 94
    %v6647 = vpop.permute.xlu0 %6646
    %6650 = vrot.lane.b32.xlu0 %v3725, 96
    %v6651 = vpop.permute.xlu0 %6650
    %6654 = vrot.lane.b32.xlu0 %v3749, 98
    %v6655 = vpop.permute.xlu0 %6654
    %6658 = vrot.lane.b32.xlu0 %v3732, 100
    %v6659 = vpop.permute.xlu0 %6658
    %6662 = vrot.lane.b32.xlu0 %v3750, 102
    %v6663 = vpop.permute.xlu0 %6662
    %6666 = vrot.lane.b32.xlu0 %v3741, 104
    %v6667 = vpop.permute.xlu0 %6666
    %6670 = vrot.lane.b32.xlu0 %v3751, 106
    %v6671 = vpop.permute.xlu0 %6670
    %6674 = vrot.lane.b32.xlu0 %v3748, 108
    %v6675 = vpop.permute.xlu0 %6674
    %6678 = vrot.lane.b32.xlu0 %v3752, 110
    %v6679 = vpop.permute.xlu0 %6678
    %6682 = vrot.lane.b32.xlu0 %v3793, 112
    %v6683 = vpop.permute.xlu0 %6682
    %6686 = vrot.lane.b32.xlu0 %v3817, 114
    %v6687 = vpop.permute.xlu0 %6686
    %6690 = vrot.lane.b32.xlu0 %v3800, 116
    %v6691 = vpop.permute.xlu0 %6690
    %6694 = vrot.lane.b32.xlu0 %v3818, 118
    %v6695 = vpop.permute.xlu0 %6694
    %6698 = vrot.lane.b32.xlu0 %v3809, 120
    %v6699 = vpop.permute.xlu0 %6698
    %6702 = vrot.lane.b32.xlu0 %v3819, 122
    %v6703 = vpop.permute.xlu0 %6702
    %6706 = vrot.lane.b32.xlu0 %v3816, 124
    %v6707 = vpop.permute.xlu0 %6706
    %6710 = vrot.lane.b32.xlu0 %v3820, 126
    %v6711 = vpop.permute.xlu0 %6710
    %6714 = vrot.lane.b32.xlu0 %v3885, 2
    %v6715 = vpop.permute.xlu0 %6714
    %6718 = vrot.lane.b32.xlu0 %v3868, 4
    %v6719 = vpop.permute.xlu0 %6718
    %6722 = vrot.lane.b32.xlu0 %v3886, 6
    %v6723 = vpop.permute.xlu0 %6722
    %6726 = vrot.lane.b32.xlu0 %v3877, 8
    %v6727 = vpop.permute.xlu0 %6726
    %6730 = vrot.lane.b32.xlu0 %v3887, 10
    %v6731 = vpop.permute.xlu0 %6730
    %6734 = vrot.lane.b32.xlu0 %v3884, 12
    %v6735 = vpop.permute.xlu0 %6734
    %6738 = vrot.lane.b32.xlu0 %v3888, 14
    %v6739 = vpop.permute.xlu0 %6738
    %6742 = vrot.lane.b32.xlu0 %v3929, 16
    %v6743 = vpop.permute.xlu0 %6742
    %6746 = vrot.lane.b32.xlu0 %v3953, 18
    %v6747 = vpop.permute.xlu0 %6746
    %6750 = vrot.lane.b32.xlu0 %v3936, 20
    %v6751 = vpop.permute.xlu0 %6750
    %6754 = vrot.lane.b32.xlu0 %v3954, 22
    %v6755 = vpop.permute.xlu0 %6754
    %6758 = vrot.lane.b32.xlu0 %v3945, 24
    %v6759 = vpop.permute.xlu0 %6758
    %6762 = vrot.lane.b32.xlu0 %v3955, 26
    %v6763 = vpop.permute.xlu0 %6762
    %6766 = vrot.lane.b32.xlu0 %v3952, 28
    %v6767 = vpop.permute.xlu0 %6766
    %6770 = vrot.lane.b32.xlu0 %v3956, 30
    %v6771 = vpop.permute.xlu0 %6770
    %6774 = vrot.lane.b32.xlu0 %v3997, 32
    %v6775 = vpop.permute.xlu0 %6774
    %6778 = vrot.lane.b32.xlu0 %v4021, 34
    %v6779 = vpop.permute.xlu0 %6778
    %6782 = vrot.lane.b32.xlu0 %v4004, 36
    %v6783 = vpop.permute.xlu0 %6782
    %6786 = vrot.lane.b32.xlu0 %v4022, 38
    %v6787 = vpop.permute.xlu0 %6786
    %6790 = vrot.lane.b32.xlu0 %v4013, 40
    %v6791 = vpop.permute.xlu0 %6790
    %6794 = vrot.lane.b32.xlu0 %v4023, 42
    %v6795 = vpop.permute.xlu0 %6794
    %6798 = vrot.lane.b32.xlu0 %v4020, 44
    %v6799 = vpop.permute.xlu0 %6798
    %6802 = vrot.lane.b32.xlu0 %v4024, 46
    %v6803 = vpop.permute.xlu0 %6802
    %6806 = vrot.lane.b32.xlu0 %v4065, 48
    %v6807 = vpop.permute.xlu0 %6806
    %6810 = vrot.lane.b32.xlu0 %v4089, 50
    %v6811 = vpop.permute.xlu0 %6810
    %6814 = vrot.lane.b32.xlu0 %v4072, 52
    %v6815 = vpop.permute.xlu0 %6814
    %6818 = vrot.lane.b32.xlu0 %v4090, 54
    %v6819 = vpop.permute.xlu0 %6818
    %6822 = vrot.lane.b32.xlu0 %v4081, 56
    %v6823 = vpop.permute.xlu0 %6822
    %6826 = vrot.lane.b32.xlu0 %v4091, 58
    %v6827 = vpop.permute.xlu0 %6826
    %6830 = vrot.lane.b32.xlu0 %v4088, 60
    %v6831 = vpop.permute.xlu0 %6830
    %6834 = vrot.lane.b32.xlu0 %v4092, 62
    %v6835 = vpop.permute.xlu0 %6834
    %6838 = vrot.lane.b32.xlu0 %v4133, 64
    %v6839 = vpop.permute.xlu0 %6838
    %6842 = vrot.lane.b32.xlu0 %v4157, 66
    %v6843 = vpop.permute.xlu0 %6842
    %6846 = vrot.lane.b32.xlu0 %v4140, 68
    %v6847 = vpop.permute.xlu0 %6846
    %6850 = vrot.lane.b32.xlu0 %v4158, 70
    %v6851 = vpop.permute.xlu0 %6850
    %6854 = vrot.lane.b32.xlu0 %v4149, 72
    %v6855 = vpop.permute.xlu0 %6854
    %6858 = vrot.lane.b32.xlu0 %v4159, 74
    %v6859 = vpop.permute.xlu0 %6858
    %6862 = vrot.lane.b32.xlu0 %v4156, 76
    %v6863 = vpop.permute.xlu0 %6862
    %6866 = vrot.lane.b32.xlu0 %v4160, 78
    %v6867 = vpop.permute.xlu0 %6866
    %6870 = vrot.lane.b32.xlu0 %v4201, 80
    %v6871 = vpop.permute.xlu0 %6870
    %6874 = vrot.lane.b32.xlu0 %v4225, 82
    %v6875 = vpop.permute.xlu0 %6874
    %6878 = vrot.lane.b32.xlu0 %v4208, 84
    %v6879 = vpop.permute.xlu0 %6878
    %6882 = vrot.lane.b32.xlu0 %v4226, 86
    %v6883 = vpop.permute.xlu0 %6882
    %6886 = vrot.lane.b32.xlu0 %v4217, 88
    %v6887 = vpop.permute.xlu0 %6886
    %6890 = vrot.lane.b32.xlu0 %v4227, 90
    %v6891 = vpop.permute.xlu0 %6890
    %6894 = vrot.lane.b32.xlu0 %v4224, 92
    %v6895 = vpop.permute.xlu0 %6894
    %6898 = vrot.lane.b32.xlu0 %v4228, 94
    %v6899 = vpop.permute.xlu0 %6898
    %6902 = vrot.lane.b32.xlu0 %v4269, 96
    %v6903 = vpop.permute.xlu0 %6902
    %6906 = vrot.lane.b32.xlu0 %v4293, 98
    %v6907 = vpop.permute.xlu0 %6906
    %6910 = vrot.lane.b32.xlu0 %v4276, 100
    %v6911 = vpop.permute.xlu0 %6910
    %6914 = vrot.lane.b32.xlu0 %v4294, 102
    %v6915 = vpop.permute.xlu0 %6914
    %6918 = vrot.lane.b32.xlu0 %v4285, 104
    %v6919 = vpop.permute.xlu0 %6918
    %6922 = vrot.lane.b32.xlu0 %v4295, 106
    %v6923 = vpop.permute.xlu0 %6922
    %6926 = vrot.lane.b32.xlu0 %v4292, 108
    %v6927 = vpop.permute.xlu0 %6926
    %6930 = vrot.lane.b32.xlu0 %v4296, 110
    %v6931 = vpop.permute.xlu0 %6930
    %6934 = vrot.lane.b32.xlu0 %v4337, 112
    %v6935 = vpop.permute.xlu0 %6934
    %6938 = vrot.lane.b32.xlu0 %v4361, 114
    %v6939 = vpop.permute.xlu0 %6938
    %6942 = vrot.lane.b32.xlu0 %v4344, 116
    %v6943 = vpop.permute.xlu0 %6942
    %6946 = vrot.lane.b32.xlu0 %v4362, 118
    %v6947 = vpop.permute.xlu0 %6946
    %6950 = vrot.lane.b32.xlu0 %v4353, 120
    %v6951 = vpop.permute.xlu0 %6950
    %6954 = vrot.lane.b32.xlu0 %v4363, 122
    %v6955 = vpop.permute.xlu0 %6954
    %6958 = vrot.lane.b32.xlu0 %v4360, 124
    %v6959 = vpop.permute.xlu0 %6958
    %6962 = vrot.lane.b32.xlu0 %v4364, 126
    %v6963 = vpop.permute.xlu0 %6962
    %6966 = vrot.lane.b32.xlu0 %v4429, 2
    %v6967 = vpop.permute.xlu0 %6966
    %6970 = vrot.lane.b32.xlu0 %v4412, 4
    %v6971 = vpop.permute.xlu0 %6970
    %6974 = vrot.lane.b32.xlu0 %v4430, 6
    %v6975 = vpop.permute.xlu0 %6974
    %6978 = vrot.lane.b32.xlu0 %v4421, 8
    %v6979 = vpop.permute.xlu0 %6978
    %6982 = vrot.lane.b32.xlu0 %v4431, 10
    %v6983 = vpop.permute.xlu0 %6982
    %6986 = vrot.lane.b32.xlu0 %v4428, 12
    %v6987 = vpop.permute.xlu0 %6986
    %6990 = vrot.lane.b32.xlu0 %v4432, 14
    %v6991 = vpop.permute.xlu0 %6990
    %6994 = vrot.lane.b32.xlu0 %v4473, 16
    %v6995 = vpop.permute.xlu0 %6994
    %6998 = vrot.lane.b32.xlu0 %v4497, 18
    %v6999 = vpop.permute.xlu0 %6998
    %7002 = vrot.lane.b32.xlu0 %v4480, 20
    %v7003 = vpop.permute.xlu0 %7002
    %7006 = vrot.lane.b32.xlu0 %v4498, 22
    %v7007 = vpop.permute.xlu0 %7006
    %7010 = vrot.lane.b32.xlu0 %v4489, 24
    %v7011 = vpop.permute.xlu0 %7010
    %7014 = vrot.lane.b32.xlu0 %v4499, 26
    %v7015 = vpop.permute.xlu0 %7014
    %7018 = vrot.lane.b32.xlu0 %v4496, 28
    %v7019 = vpop.permute.xlu0 %7018
    %7022 = vrot.lane.b32.xlu0 %v4500, 30
    %v7023 = vpop.permute.xlu0 %7022
    %7026 = vrot.lane.b32.xlu0 %v4541, 32
    %v7027 = vpop.permute.xlu0 %7026
    %7030 = vrot.lane.b32.xlu0 %v4565, 34
    %v7031 = vpop.permute.xlu0 %7030
    %7034 = vrot.lane.b32.xlu0 %v4548, 36
    %v7035 = vpop.permute.xlu0 %7034
    %7038 = vrot.lane.b32.xlu0 %v4566, 38
    %v7039 = vpop.permute.xlu0 %7038
    %7042 = vrot.lane.b32.xlu0 %v4557, 40
    %v7043 = vpop.permute.xlu0 %7042
    %7046 = vrot.lane.b32.xlu0 %v4567, 42
    %v7047 = vpop.permute.xlu0 %7046
    %7050 = vrot.lane.b32.xlu0 %v4564, 44
    %v7051 = vpop.permute.xlu0 %7050
    %7054 = vrot.lane.b32.xlu0 %v4568, 46
    %v7055 = vpop.permute.xlu0 %7054
    %7058 = vrot.lane.b32.xlu0 %v4609, 48
    %v7059 = vpop.permute.xlu0 %7058
    %7062 = vrot.lane.b32.xlu0 %v4633, 50
    %v7063 = vpop.permute.xlu0 %7062
    %7066 = vrot.lane.b32.xlu0 %v4616, 52
    %v7067 = vpop.permute.xlu0 %7066
    %7070 = vrot.lane.b32.xlu0 %v4634, 54
    %v7071 = vpop.permute.xlu0 %7070
    %7074 = vrot.lane.b32.xlu0 %v4625, 56
    %v7075 = vpop.permute.xlu0 %7074
    %7078 = vrot.lane.b32.xlu0 %v4635, 58
    %v7079 = vpop.permute.xlu0 %7078
    %7082 = vrot.lane.b32.xlu0 %v4632, 60
    %v7083 = vpop.permute.xlu0 %7082
    %7086 = vrot.lane.b32.xlu0 %v4636, 62
    %v7087 = vpop.permute.xlu0 %7086
    %7090 = vrot.lane.b32.xlu0 %v4677, 64
    %v7091 = vpop.permute.xlu0 %7090
    %7094 = vrot.lane.b32.xlu0 %v4701, 66
    %v7095 = vpop.permute.xlu0 %7094
    %7098 = vrot.lane.b32.xlu0 %v4684, 68
    %v7099 = vpop.permute.xlu0 %7098
    %7102 = vrot.lane.b32.xlu0 %v4702, 70
    %v7103 = vpop.permute.xlu0 %7102
    %7106 = vrot.lane.b32.xlu0 %v4693, 72
    %v7107 = vpop.permute.xlu0 %7106
    %7110 = vrot.lane.b32.xlu0 %v4703, 74
    %v7111 = vpop.permute.xlu0 %7110
    %7114 = vrot.lane.b32.xlu0 %v4700, 76
    %v7115 = vpop.permute.xlu0 %7114
    %7118 = vrot.lane.b32.xlu0 %v4704, 78
    %v7119 = vpop.permute.xlu0 %7118
    %7122 = vrot.lane.b32.xlu0 %v4745, 80
    %v7123 = vpop.permute.xlu0 %7122
    %7126 = vrot.lane.b32.xlu0 %v4769, 82
    %v7127 = vpop.permute.xlu0 %7126
    %7130 = vrot.lane.b32.xlu0 %v4752, 84
    %v7131 = vpop.permute.xlu0 %7130
    %7134 = vrot.lane.b32.xlu0 %v4770, 86
    %v7135 = vpop.permute.xlu0 %7134
    %7138 = vrot.lane.b32.xlu0 %v4761, 88
    %v7139 = vpop.permute.xlu0 %7138
    %7142 = vrot.lane.b32.xlu0 %v4771, 90
    %v7143 = vpop.permute.xlu0 %7142
    %7146 = vrot.lane.b32.xlu0 %v4768, 92
    %v7147 = vpop.permute.xlu0 %7146
    %7150 = vrot.lane.b32.xlu0 %v4772, 94
    %v7151 = vpop.permute.xlu0 %7150
    %7154 = vrot.lane.b32.xlu0 %v4813, 96
    %v7155 = vpop.permute.xlu0 %7154
    %7158 = vrot.lane.b32.xlu0 %v4837, 98
    %v7159 = vpop.permute.xlu0 %7158
    %7162 = vrot.lane.b32.xlu0 %v4820, 100
    %v7163 = vpop.permute.xlu0 %7162
    %7166 = vrot.lane.b32.xlu0 %v4838, 102
    %v7167 = vpop.permute.xlu0 %7166
    %7170 = vrot.lane.b32.xlu0 %v4829, 104
    %v7171 = vpop.permute.xlu0 %7170
    %7174 = vrot.lane.b32.xlu0 %v4839, 106
    %v7175 = vpop.permute.xlu0 %7174
    %7178 = vrot.lane.b32.xlu0 %v4836, 108
    %v7179 = vpop.permute.xlu0 %7178
    %7182 = vrot.lane.b32.xlu0 %v4840, 110
    %v7183 = vpop.permute.xlu0 %7182
    %7186 = vrot.lane.b32.xlu0 %v4881, 112
    %v7187 = vpop.permute.xlu0 %7186
    %7190 = vrot.lane.b32.xlu0 %v4905, 114
    %v7191 = vpop.permute.xlu0 %7190
    %7194 = vrot.lane.b32.xlu0 %v4888, 116
    %v7195 = vpop.permute.xlu0 %7194
    %7198 = vrot.lane.b32.xlu0 %v4906, 118
    %v7199 = vpop.permute.xlu0 %7198
    %7202 = vrot.lane.b32.xlu0 %v4897, 120
    %v7203 = vpop.permute.xlu0 %7202
    %7206 = vrot.lane.b32.xlu0 %v4907, 122
    %v7207 = vpop.permute.xlu0 %7206
    %7210 = vrot.lane.b32.xlu0 %v4904, 124
    %v7211 = vpop.permute.xlu0 %7210
    %7214 = vrot.lane.b32.xlu0 %v4908, 126
    %v7215 = vpop.permute.xlu0 %7214
    %7218 = vrot.lane.b32.xlu0 %v4973, 2
    %v7219 = vpop.permute.xlu0 %7218
    %7222 = vrot.lane.b32.xlu0 %v4956, 4
    %v7223 = vpop.permute.xlu0 %7222
    %7226 = vrot.lane.b32.xlu0 %v4974, 6
    %v7227 = vpop.permute.xlu0 %7226
    %7230 = vrot.lane.b32.xlu0 %v4965, 8
    %v7231 = vpop.permute.xlu0 %7230
    %7234 = vrot.lane.b32.xlu0 %v4975, 10
    %v7235 = vpop.permute.xlu0 %7234
    %7238 = vrot.lane.b32.xlu0 %v4972, 12
    %v7239 = vpop.permute.xlu0 %7238
    %7242 = vrot.lane.b32.xlu0 %v4976, 14
    %v7243 = vpop.permute.xlu0 %7242
    %7246 = vrot.lane.b32.xlu0 %v5017, 16
    %v7247 = vpop.permute.xlu0 %7246
    %7250 = vrot.lane.b32.xlu0 %v5041, 18
    %v7251 = vpop.permute.xlu0 %7250
    %7254 = vrot.lane.b32.xlu0 %v5024, 20
    %v7255 = vpop.permute.xlu0 %7254
    %7258 = vrot.lane.b32.xlu0 %v5042, 22
    %v7259 = vpop.permute.xlu0 %7258
    %7262 = vrot.lane.b32.xlu0 %v5033, 24
    %v7263 = vpop.permute.xlu0 %7262
    %7266 = vrot.lane.b32.xlu0 %v5043, 26
    %v7267 = vpop.permute.xlu0 %7266
    %7270 = vrot.lane.b32.xlu0 %v5040, 28
    %v7271 = vpop.permute.xlu0 %7270
    %7274 = vrot.lane.b32.xlu0 %v5044, 30
    %v7275 = vpop.permute.xlu0 %7274
    %7278 = vrot.lane.b32.xlu0 %v5085, 32
    %v7279 = vpop.permute.xlu0 %7278
    %7282 = vrot.lane.b32.xlu0 %v5109, 34
    %v7283 = vpop.permute.xlu0 %7282
    %7286 = vrot.lane.b32.xlu0 %v5092, 36
    %v7287 = vpop.permute.xlu0 %7286
    %7290 = vrot.lane.b32.xlu0 %v5110, 38
    %v7291 = vpop.permute.xlu0 %7290
    %7294 = vrot.lane.b32.xlu0 %v5101, 40
    %v7295 = vpop.permute.xlu0 %7294
    %7298 = vrot.lane.b32.xlu0 %v5111, 42
    %v7299 = vpop.permute.xlu0 %7298
    %7302 = vrot.lane.b32.xlu0 %v5108, 44
    %v7303 = vpop.permute.xlu0 %7302
    %7306 = vrot.lane.b32.xlu0 %v5112, 46
    %v7307 = vpop.permute.xlu0 %7306
    %7310 = vrot.lane.b32.xlu0 %v5153, 48
    %v7311 = vpop.permute.xlu0 %7310
    %7314 = vrot.lane.b32.xlu0 %v5177, 50
    %v7315 = vpop.permute.xlu0 %7314
    %7318 = vrot.lane.b32.xlu0 %v5160, 52
    %v7319 = vpop.permute.xlu0 %7318
    %7322 = vrot.lane.b32.xlu0 %v5178, 54
    %v7323 = vpop.permute.xlu0 %7322
    %7326 = vrot.lane.b32.xlu0 %v5169, 56
    %v7327 = vpop.permute.xlu0 %7326
    %7330 = vrot.lane.b32.xlu0 %v5179, 58
    %v7331 = vpop.permute.xlu0 %7330
    %7334 = vrot.lane.b32.xlu0 %v5176, 60
    %v7335 = vpop.permute.xlu0 %7334
    %7338 = vrot.lane.b32.xlu0 %v5180, 62
    %v7339 = vpop.permute.xlu0 %7338
    %7342 = vrot.lane.b32.xlu0 %v5221, 64
    %v7343 = vpop.permute.xlu0 %7342
    %7346 = vrot.lane.b32.xlu0 %v5245, 66
    %v7347 = vpop.permute.xlu0 %7346
    %7350 = vrot.lane.b32.xlu0 %v5228, 68
    %v7351 = vpop.permute.xlu0 %7350
    %7354 = vrot.lane.b32.xlu0 %v5246, 70
    %v7355 = vpop.permute.xlu0 %7354
    %7358 = vrot.lane.b32.xlu0 %v5237, 72
    %v7359 = vpop.permute.xlu0 %7358
    %7362 = vrot.lane.b32.xlu0 %v5247, 74
    %v7363 = vpop.permute.xlu0 %7362
    %7366 = vrot.lane.b32.xlu0 %v5244, 76
    %v7367 = vpop.permute.xlu0 %7366
    %7370 = vrot.lane.b32.xlu0 %v5248, 78
    %v7371 = vpop.permute.xlu0 %7370
    %7374 = vrot.lane.b32.xlu0 %v5289, 80
    %v7375 = vpop.permute.xlu0 %7374
    %7378 = vrot.lane.b32.xlu0 %v5313, 82
    %v7379 = vpop.permute.xlu0 %7378
    %7382 = vrot.lane.b32.xlu0 %v5296, 84
    %v7383 = vpop.permute.xlu0 %7382
    %7386 = vrot.lane.b32.xlu0 %v5314, 86
    %v7387 = vpop.permute.xlu0 %7386
    %7390 = vrot.lane.b32.xlu0 %v5305, 88
    %v7391 = vpop.permute.xlu0 %7390
    %7394 = vrot.lane.b32.xlu0 %v5315, 90
    %v7395 = vpop.permute.xlu0 %7394
    %7398 = vrot.lane.b32.xlu0 %v5312, 92
    %v7399 = vpop.permute.xlu0 %7398
    %7402 = vrot.lane.b32.xlu0 %v5316, 94
    %v7403 = vpop.permute.xlu0 %7402
    %7406 = vrot.lane.b32.xlu0 %v5357, 96
    %v7407 = vpop.permute.xlu0 %7406
    %7410 = vrot.lane.b32.xlu0 %v5381, 98
    %v7411 = vpop.permute.xlu0 %7410
    %7414 = vrot.lane.b32.xlu0 %v5364, 100
    %v7415 = vpop.permute.xlu0 %7414
    %7418 = vrot.lane.b32.xlu0 %v5382, 102
    %v7419 = vpop.permute.xlu0 %7418
    %7422 = vrot.lane.b32.xlu0 %v5373, 104
    %v7423 = vpop.permute.xlu0 %7422
    %7426 = vrot.lane.b32.xlu0 %v5383, 106
    %v7427 = vpop.permute.xlu0 %7426
    %7430 = vrot.lane.b32.xlu0 %v5380, 108
    %v7431 = vpop.permute.xlu0 %7430
    %7434 = vrot.lane.b32.xlu0 %v5384, 110
    %v7435 = vpop.permute.xlu0 %7434
    %7438 = vrot.lane.b32.xlu0 %v5425, 112
    %v7439 = vpop.permute.xlu0 %7438
    %7442 = vrot.lane.b32.xlu0 %v5449, 114
    %v7443 = vpop.permute.xlu0 %7442
    %7446 = vrot.lane.b32.xlu0 %v5432, 116
    %v7447 = vpop.permute.xlu0 %7446
    %7450 = vrot.lane.b32.xlu0 %v5450, 118
    %v7451 = vpop.permute.xlu0 %7450
    %7454 = vrot.lane.b32.xlu0 %v5441, 120
    %v7455 = vpop.permute.xlu0 %7454
    %7458 = vrot.lane.b32.xlu0 %v5451, 122
    %v7459 = vpop.permute.xlu0 %7458
    %7462 = vrot.lane.b32.xlu0 %v5448, 124
    %v7463 = vpop.permute.xlu0 %7462
    %7466 = vrot.lane.b32.xlu0 %v5452, 126
    %v7467 = vpop.permute.xlu0 %7466
    %vm7469 = vcmask 15360
    %v7470 = vsel %vm7469, %v1141, %v5455
    %vm7471 = vcmask 31744
    %v7472 = vsel %vm7471, %v7470, %v5459
    %vm7473 = vcmask 48128
    %v7474 = vsel %vm7473, %v7472, %v5463
    %vm7475 = vcmask 64512
    %v7476 = vsel %vm7475, %v7474, %v5467
    %vm7477 = vcmask 80896
    %v7478 = vsel %vm7477, %v7476, %v5471
    %vm7479 = vcmask 97280
    %v7480 = vsel %vm7479, %v7478, %v5475
    %vm7481 = vcmask 113664
    %v7482 = vsel %vm7481, %v7480, %v5479
    %vm7483 = vcmask 130048
    %v7484 = vsel %vm7483, %v7482, %v5483
    %vm7485 = vcmask 146432
    %v7486 = vsel %vm7485, %v7484, %v5487
    %vm7487 = vcmask 162816
    %v7488 = vsel %vm7487, %v7486, %v5491
    %vm7489 = vcmask 179200
    %v7490 = vsel %vm7489, %v7488, %v5495
    %vm7491 = vcmask 195584
    %v7492 = vsel %vm7491, %v7490, %v5499
    %vm7493 = vcmask 211968
    %v7494 = vsel %vm7493, %v7492, %v5503
    %vm7495 = vcmask 228352
    %v7496 = vsel %vm7495, %v7494, %v5507
    %vm7497 = vcmask 244736
    %v7498 = vsel %vm7497, %v7496, %v5511
    %vm7499 = vcmask 261120
    %v7500 = vsel %vm7499, %v7498, %v5515
    %vm7501 = vcmask 277504
    %v7502 = vsel %vm7501, %v7500, %v5519
    %vm7503 = vcmask 293888
    %v7504 = vsel %vm7503, %v7502, %v5523
    %vm7505 = vcmask 310272
    %v7506 = vsel %vm7505, %v7504, %v5527
    %vm7507 = vcmask 326656
    %v7508 = vsel %vm7507, %v7506, %v5531
    %vm7509 = vcmask 343040
    %v7510 = vsel %vm7509, %v7508, %v5535
    %vm7511 = vcmask 359424
    %v7512 = vsel %vm7511, %v7510, %v5539
    %vm7513 = vcmask 375808
    %v7514 = vsel %vm7513, %v7512, %v5543
    %vm7515 = vcmask 392192
    %v7516 = vsel %vm7515, %v7514, %v5547
    %vm7517 = vcmask 408576
    %v7518 = vsel %vm7517, %v7516, %v5551
    %vm7519 = vcmask 424960
    %v7520 = vsel %vm7519, %v7518, %v5555
    %vm7521 = vcmask 441344
    %v7522 = vsel %vm7521, %v7520, %v5559
    %vm7523 = vcmask 457728
    %v7524 = vsel %vm7523, %v7522, %v5563
    %vm7525 = vcmask 474112
    %v7526 = vsel %vm7525, %v7524, %v5567
    %vm7527 = vcmask 490496
    %v7528 = vsel %vm7527, %v7526, %v5571
    %vm7529 = vcmask 506880
    %v7530 = vsel %vm7529, %v7528, %v5575
    %vm7531 = vcmask 523264
    %v7532 = vsel %vm7531, %v7530, %v5579
    %vm7533 = vcmask 539648
    %v7534 = vsel %vm7533, %v7532, %v5583
    %vm7535 = vcmask 556032
    %v7536 = vsel %vm7535, %v7534, %v5587
    %vm7537 = vcmask 572416
    %v7538 = vsel %vm7537, %v7536, %v5591
    %vm7539 = vcmask 588800
    %v7540 = vsel %vm7539, %v7538, %v5595
    %vm7541 = vcmask 605184
    %v7542 = vsel %vm7541, %v7540, %v5599
    %vm7543 = vcmask 621568
    %v7544 = vsel %vm7543, %v7542, %v5603
    %vm7545 = vcmask 637952
    %v7546 = vsel %vm7545, %v7544, %v5607
    %vm7547 = vcmask 654336
    %v7548 = vsel %vm7547, %v7546, %v5611
    %vm7549 = vcmask 670720
    %v7550 = vsel %vm7549, %v7548, %v5615
    %vm7551 = vcmask 687104
    %v7552 = vsel %vm7551, %v7550, %v5619
    %vm7553 = vcmask 703488
    %v7554 = vsel %vm7553, %v7552, %v5623
    %vm7555 = vcmask 719872
    %v7556 = vsel %vm7555, %v7554, %v5627
    %vm7557 = vcmask 736256
    %v7558 = vsel %vm7557, %v7556, %v5631
    %vm7559 = vcmask 752640
    %v7560 = vsel %vm7559, %v7558, %v5635
    %vm7561 = vcmask 769024
    %v7562 = vsel %vm7561, %v7560, %v5639
    %vm7563 = vcmask 785408
    %v7564 = vsel %vm7563, %v7562, %v5643
    %vm7565 = vcmask 801792
    %v7566 = vsel %vm7565, %v7564, %v5647
    %vm7567 = vcmask 818176
    %v7568 = vsel %vm7567, %v7566, %v5651
    %vm7569 = vcmask 834560
    %v7570 = vsel %vm7569, %v7568, %v5655
    %vm7571 = vcmask 850944
    %v7572 = vsel %vm7571, %v7570, %v5659
    %vm7573 = vcmask 867328
    %v7574 = vsel %vm7573, %v7572, %v5663
    %vm7575 = vcmask 883712
    %v7576 = vsel %vm7575, %v7574, %v5667
    %vm7577 = vcmask 900096
    %v7578 = vsel %vm7577, %v7576, %v5671
    %vm7579 = vcmask 916480
    %v7580 = vsel %vm7579, %v7578, %v5675
    %vm7581 = vcmask 932864
    %v7582 = vsel %vm7581, %v7580, %v5679
    %vm7583 = vcmask 949248
    %v7584 = vsel %vm7583, %v7582, %v5683
    %vm7585 = vcmask 965632
    %v7586 = vsel %vm7585, %v7584, %v5687
    %vm7587 = vcmask 982016
    %v7588 = vsel %vm7587, %v7586, %v5691
    %vm7589 = vcmask 998400
    %v7590 = vsel %vm7589, %v7588, %v5695
    %vm7591 = vcmask 1014784
    %v7592 = vsel %vm7591, %v7590, %v5699
    %vm7593 = vcmask 1031168
    %v7594 = vsel %vm7593, %v7592, %v5703
    %v7595 = vsel %vm7469, %v1685, %v5707
    %v7596 = vsel %vm7471, %v7595, %v5711
    %v7597 = vsel %vm7473, %v7596, %v5715
    %v7598 = vsel %vm7475, %v7597, %v5719
    %v7599 = vsel %vm7477, %v7598, %v5723
    %v7600 = vsel %vm7479, %v7599, %v5727
    %v7601 = vsel %vm7481, %v7600, %v5731
    %v7602 = vsel %vm7483, %v7601, %v5735
    %v7603 = vsel %vm7485, %v7602, %v5739
    %v7604 = vsel %vm7487, %v7603, %v5743
    %v7605 = vsel %vm7489, %v7604, %v5747
    %v7606 = vsel %vm7491, %v7605, %v5751
    %v7607 = vsel %vm7493, %v7606, %v5755
    %v7608 = vsel %vm7495, %v7607, %v5759
    %v7609 = vsel %vm7497, %v7608, %v5763
    %v7610 = vsel %vm7499, %v7609, %v5767
    %v7611 = vsel %vm7501, %v7610, %v5771
    %v7612 = vsel %vm7503, %v7611, %v5775
    %v7613 = vsel %vm7505, %v7612, %v5779
    %v7614 = vsel %vm7507, %v7613, %v5783
    %v7615 = vsel %vm7509, %v7614, %v5787
    %v7616 = vsel %vm7511, %v7615, %v5791
    %v7617 = vsel %vm7513, %v7616, %v5795
    %v7618 = vsel %vm7515, %v7617, %v5799
    %v7619 = vsel %vm7517, %v7618, %v5803
    %v7620 = vsel %vm7519, %v7619, %v5807
    %v7621 = vsel %vm7521, %v7620, %v5811
    %v7622 = vsel %vm7523, %v7621, %v5815
    %v7623 = vsel %vm7525, %v7622, %v5819
    %v7624 = vsel %vm7527, %v7623, %v5823
    %v7625 = vsel %vm7529, %v7624, %v5827
    %v7626 = vsel %vm7531, %v7625, %v5831
    %v7627 = vsel %vm7533, %v7626, %v5835
    %v7628 = vsel %vm7535, %v7627, %v5839
    %v7629 = vsel %vm7537, %v7628, %v5843
    %v7630 = vsel %vm7539, %v7629, %v5847
    %v7631 = vsel %vm7541, %v7630, %v5851
    %v7632 = vsel %vm7543, %v7631, %v5855
    %v7633 = vsel %vm7545, %v7632, %v5859
    %v7634 = vsel %vm7547, %v7633, %v5863
    %v7635 = vsel %vm7549, %v7634, %v5867
    %v7636 = vsel %vm7551, %v7635, %v5871
    %v7637 = vsel %vm7553, %v7636, %v5875
    %v7638 = vsel %vm7555, %v7637, %v5879
    %v7639 = vsel %vm7557, %v7638, %v5883
    %v7640 = vsel %vm7559, %v7639, %v5887
    %v7641 = vsel %vm7561, %v7640, %v5891
    %v7642 = vsel %vm7563, %v7641, %v5895
    %v7643 = vsel %vm7565, %v7642, %v5899
    %v7644 = vsel %vm7567, %v7643, %v5903
    %v7645 = vsel %vm7569, %v7644, %v5907
    %v7646 = vsel %vm7571, %v7645, %v5911
    %v7647 = vsel %vm7573, %v7646, %v5915
    %v7648 = vsel %vm7575, %v7647, %v5919
    %v7649 = vsel %vm7577, %v7648, %v5923
    %v7650 = vsel %vm7579, %v7649, %v5927
    %v7651 = vsel %vm7581, %v7650, %v5931
    %v7652 = vsel %vm7583, %v7651, %v5935
    %v7653 = vsel %vm7585, %v7652, %v5939
    %v7654 = vsel %vm7587, %v7653, %v5943
    %v7655 = vsel %vm7589, %v7654, %v5947
    %v7656 = vsel %vm7591, %v7655, %v5951
    %v7657 = vsel %vm7593, %v7656, %v5955
    %v7658 = vsel %vm7469, %v2229, %v5959
    %v7659 = vsel %vm7471, %v7658, %v5963
    %v7660 = vsel %vm7473, %v7659, %v5967
    %v7661 = vsel %vm7475, %v7660, %v5971
    %v7662 = vsel %vm7477, %v7661, %v5975
    %v7663 = vsel %vm7479, %v7662, %v5979
    %v7664 = vsel %vm7481, %v7663, %v5983
    %v7665 = vsel %vm7483, %v7664, %v5987
    %v7666 = vsel %vm7485, %v7665, %v5991
    %v7667 = vsel %vm7487, %v7666, %v5995
    %v7668 = vsel %vm7489, %v7667, %v5999
    %v7669 = vsel %vm7491, %v7668, %v6003
    %v7670 = vsel %vm7493, %v7669, %v6007
    %v7671 = vsel %vm7495, %v7670, %v6011
    %v7672 = vsel %vm7497, %v7671, %v6015
    %v7673 = vsel %vm7499, %v7672, %v6019
    %v7674 = vsel %vm7501, %v7673, %v6023
    %v7675 = vsel %vm7503, %v7674, %v6027
    %v7676 = vsel %vm7505, %v7675, %v6031
    %v7677 = vsel %vm7507, %v7676, %v6035
    %v7678 = vsel %vm7509, %v7677, %v6039
    %v7679 = vsel %vm7511, %v7678, %v6043
    %v7680 = vsel %vm7513, %v7679, %v6047
    %v7681 = vsel %vm7515, %v7680, %v6051
    %v7682 = vsel %vm7517, %v7681, %v6055
    %v7683 = vsel %vm7519, %v7682, %v6059
    %v7684 = vsel %vm7521, %v7683, %v6063
    %v7685 = vsel %vm7523, %v7684, %v6067
    %v7686 = vsel %vm7525, %v7685, %v6071
    %v7687 = vsel %vm7527, %v7686, %v6075
    %v7688 = vsel %vm7529, %v7687, %v6079
    %v7689 = vsel %vm7531, %v7688, %v6083
    %v7690 = vsel %vm7533, %v7689, %v6087
    %v7691 = vsel %vm7535, %v7690, %v6091
    %v7692 = vsel %vm7537, %v7691, %v6095
    %v7693 = vsel %vm7539, %v7692, %v6099
    %v7694 = vsel %vm7541, %v7693, %v6103
    %v7695 = vsel %vm7543, %v7694, %v6107
    %v7696 = vsel %vm7545, %v7695, %v6111
    %v7697 = vsel %vm7547, %v7696, %v6115
    %v7698 = vsel %vm7549, %v7697, %v6119
    %v7699 = vsel %vm7551, %v7698, %v6123
    %v7700 = vsel %vm7553, %v7699, %v6127
    %v7701 = vsel %vm7555, %v7700, %v6131
    %v7702 = vsel %vm7557, %v7701, %v6135
    %v7703 = vsel %vm7559, %v7702, %v6139
    %v7704 = vsel %vm7561, %v7703, %v6143
    %v7705 = vsel %vm7563, %v7704, %v6147
    %v7706 = vsel %vm7565, %v7705, %v6151
    %v7707 = vsel %vm7567, %v7706, %v6155
    %v7708 = vsel %vm7569, %v7707, %v6159
    %v7709 = vsel %vm7571, %v7708, %v6163
    %v7710 = vsel %vm7573, %v7709, %v6167
    %v7711 = vsel %vm7575, %v7710, %v6171
    %v7712 = vsel %vm7577, %v7711, %v6175
    %v7713 = vsel %vm7579, %v7712, %v6179
    %v7714 = vsel %vm7581, %v7713, %v6183
    %v7715 = vsel %vm7583, %v7714, %v6187
    %v7716 = vsel %vm7585, %v7715, %v6191
    %v7717 = vsel %vm7587, %v7716, %v6195
    %v7718 = vsel %vm7589, %v7717, %v6199
    %v7719 = vsel %vm7591, %v7718, %v6203
    %v7720 = vsel %vm7593, %v7719, %v6207
    %v7721 = vsel %vm7469, %v2773, %v6211
    %v7722 = vsel %vm7471, %v7721, %v6215
    %v7723 = vsel %vm7473, %v7722, %v6219
    %v7724 = vsel %vm7475, %v7723, %v6223
    %v7725 = vsel %vm7477, %v7724, %v6227
    %v7726 = vsel %vm7479, %v7725, %v6231
    %v7727 = vsel %vm7481, %v7726, %v6235
    %v7728 = vsel %vm7483, %v7727, %v6239
    %v7729 = vsel %vm7485, %v7728, %v6243
    %v7730 = vsel %vm7487, %v7729, %v6247
    %v7731 = vsel %vm7489, %v7730, %v6251
    %v7732 = vsel %vm7491, %v7731, %v6255
    %v7733 = vsel %vm7493, %v7732, %v6259
    %v7734 = vsel %vm7495, %v7733, %v6263
    %v7735 = vsel %vm7497, %v7734, %v6267
    %v7736 = vsel %vm7499, %v7735, %v6271
    %v7737 = vsel %vm7501, %v7736, %v6275
    %v7738 = vsel %vm7503, %v7737, %v6279
    %v7739 = vsel %vm7505, %v7738, %v6283
    %v7740 = vsel %vm7507, %v7739, %v6287
    %v7741 = vsel %vm7509, %v7740, %v6291
    %v7742 = vsel %vm7511, %v7741, %v6295
    %v7743 = vsel %vm7513, %v7742, %v6299
    %v7744 = vsel %vm7515, %v7743, %v6303
    %v7745 = vsel %vm7517, %v7744, %v6307
    %v7746 = vsel %vm7519, %v7745, %v6311
    %v7747 = vsel %vm7521, %v7746, %v6315
    %v7748 = vsel %vm7523, %v7747, %v6319
    %v7749 = vsel %vm7525, %v7748, %v6323
    %v7750 = vsel %vm7527, %v7749, %v6327
    %v7751 = vsel %vm7529, %v7750, %v6331
    %v7752 = vsel %vm7531, %v7751, %v6335
    %v7753 = vsel %vm7533, %v7752, %v6339
    %v7754 = vsel %vm7535, %v7753, %v6343
    %v7755 = vsel %vm7537, %v7754, %v6347
    %v7756 = vsel %vm7539, %v7755, %v6351
    %v7757 = vsel %vm7541, %v7756, %v6355
    %v7758 = vsel %vm7543, %v7757, %v6359
    %v7759 = vsel %vm7545, %v7758, %v6363
    %v7760 = vsel %vm7547, %v7759, %v6367
    %v7761 = vsel %vm7549, %v7760, %v6371
    %v7762 = vsel %vm7551, %v7761, %v6375
    %v7763 = vsel %vm7553, %v7762, %v6379
    %v7764 = vsel %vm7555, %v7763, %v6383
    %v7765 = vsel %vm7557, %v7764, %v6387
    %v7766 = vsel %vm7559, %v7765, %v6391
    %v7767 = vsel %vm7561, %v7766, %v6395
    %v7768 = vsel %vm7563, %v7767, %v6399
    %v7769 = vsel %vm7565, %v7768, %v6403
    %v7770 = vsel %vm7567, %v7769, %v6407
    %v7771 = vsel %vm7569, %v7770, %v6411
    %v7772 = vsel %vm7571, %v7771, %v6415
    %v7773 = vsel %vm7573, %v7772, %v6419
    %v7774 = vsel %vm7575, %v7773, %v6423
    %v7775 = vsel %vm7577, %v7774, %v6427
    %v7776 = vsel %vm7579, %v7775, %v6431
    %v7777 = vsel %vm7581, %v7776, %v6435
    %v7778 = vsel %vm7583, %v7777, %v6439
    %v7779 = vsel %vm7585, %v7778, %v6443
    %v7780 = vsel %vm7587, %v7779, %v6447
    %v7781 = vsel %vm7589, %v7780, %v6451
    %v7782 = vsel %vm7591, %v7781, %v6455
    %v7783 = vsel %vm7593, %v7782, %v6459
    %v7784 = vsel %vm7469, %v3317, %v6463
    %v7785 = vsel %vm7471, %v7784, %v6467
    %v7786 = vsel %vm7473, %v7785, %v6471
    %v7787 = vsel %vm7475, %v7786, %v6475
    %v7788 = vsel %vm7477, %v7787, %v6479
    %v7789 = vsel %vm7479, %v7788, %v6483
    %v7790 = vsel %vm7481, %v7789, %v6487
    %v7791 = vsel %vm7483, %v7790, %v6491
    %v7792 = vsel %vm7485, %v7791, %v6495
    %v7793 = vsel %vm7487, %v7792, %v6499
    %v7794 = vsel %vm7489, %v7793, %v6503
    %v7795 = vsel %vm7491, %v7794, %v6507
    %v7796 = vsel %vm7493, %v7795, %v6511
    %v7797 = vsel %vm7495, %v7796, %v6515
    %v7798 = vsel %vm7497, %v7797, %v6519
    %v7799 = vsel %vm7499, %v7798, %v6523
    %v7800 = vsel %vm7501, %v7799, %v6527
    %v7801 = vsel %vm7503, %v7800, %v6531
    %v7802 = vsel %vm7505, %v7801, %v6535
    %v7803 = vsel %vm7507, %v7802, %v6539
    %v7804 = vsel %vm7509, %v7803, %v6543
    %v7805 = vsel %vm7511, %v7804, %v6547
    %v7806 = vsel %vm7513, %v7805, %v6551
    %v7807 = vsel %vm7515, %v7806, %v6555
    %v7808 = vsel %vm7517, %v7807, %v6559
    %v7809 = vsel %vm7519, %v7808, %v6563
    %v7810 = vsel %vm7521, %v7809, %v6567
    %v7811 = vsel %vm7523, %v7810, %v6571
    %v7812 = vsel %vm7525, %v7811, %v6575
    %v7813 = vsel %vm7527, %v7812, %v6579
    %v7814 = vsel %vm7529, %v7813, %v6583
    %v7815 = vsel %vm7531, %v7814, %v6587
    %v7816 = vsel %vm7533, %v7815, %v6591
    %v7817 = vsel %vm7535, %v7816, %v6595
    %v7818 = vsel %vm7537, %v7817, %v6599
    %v7819 = vsel %vm7539, %v7818, %v6603
    %v7820 = vsel %vm7541, %v7819, %v6607
    %v7821 = vsel %vm7543, %v7820, %v6611
    %v7822 = vsel %vm7545, %v7821, %v6615
    %v7823 = vsel %vm7547, %v7822, %v6619
    %v7824 = vsel %vm7549, %v7823, %v6623
    %v7825 = vsel %vm7551, %v7824, %v6627
    %v7826 = vsel %vm7553, %v7825, %v6631
    %v7827 = vsel %vm7555, %v7826, %v6635
    %v7828 = vsel %vm7557, %v7827, %v6639
    %v7829 = vsel %vm7559, %v7828, %v6643
    %v7830 = vsel %vm7561, %v7829, %v6647
    %v7831 = vsel %vm7563, %v7830, %v6651
    %v7832 = vsel %vm7565, %v7831, %v6655
    %v7833 = vsel %vm7567, %v7832, %v6659
    %v7834 = vsel %vm7569, %v7833, %v6663
    %v7835 = vsel %vm7571, %v7834, %v6667
    %v7836 = vsel %vm7573, %v7835, %v6671
    %v7837 = vsel %vm7575, %v7836, %v6675
    %v7838 = vsel %vm7577, %v7837, %v6679
    %v7839 = vsel %vm7579, %v7838, %v6683
    %v7840 = vsel %vm7581, %v7839, %v6687
    %v7841 = vsel %vm7583, %v7840, %v6691
    %v7842 = vsel %vm7585, %v7841, %v6695
    %v7843 = vsel %vm7587, %v7842, %v6699
    %v7844 = vsel %vm7589, %v7843, %v6703
    %v7845 = vsel %vm7591, %v7844, %v6707
    %v7846 = vsel %vm7593, %v7845, %v6711
    %v7847 = vsel %vm7469, %v3861, %v6715
    %v7848 = vsel %vm7471, %v7847, %v6719
    %v7849 = vsel %vm7473, %v7848, %v6723
    %v7850 = vsel %vm7475, %v7849, %v6727
    %v7851 = vsel %vm7477, %v7850, %v6731
    %v7852 = vsel %vm7479, %v7851, %v6735
    %v7853 = vsel %vm7481, %v7852, %v6739
    %v7854 = vsel %vm7483, %v7853, %v6743
    %v7855 = vsel %vm7485, %v7854, %v6747
    %v7856 = vsel %vm7487, %v7855, %v6751
    %v7857 = vsel %vm7489, %v7856, %v6755
    %v7858 = vsel %vm7491, %v7857, %v6759
    %v7859 = vsel %vm7493, %v7858, %v6763
    %v7860 = vsel %vm7495, %v7859, %v6767
    %v7861 = vsel %vm7497, %v7860, %v6771
    %v7862 = vsel %vm7499, %v7861, %v6775
    %v7863 = vsel %vm7501, %v7862, %v6779
    %v7864 = vsel %vm7503, %v7863, %v6783
    %v7865 = vsel %vm7505, %v7864, %v6787
    %v7866 = vsel %vm7507, %v7865, %v6791
    %v7867 = vsel %vm7509, %v7866, %v6795
    %v7868 = vsel %vm7511, %v7867, %v6799
    %v7869 = vsel %vm7513, %v7868, %v6803
    %v7870 = vsel %vm7515, %v7869, %v6807
    %v7871 = vsel %vm7517, %v7870, %v6811
    %v7872 = vsel %vm7519, %v7871, %v6815
    %v7873 = vsel %vm7521, %v7872, %v6819
    %v7874 = vsel %vm7523, %v7873, %v6823
    %v7875 = vsel %vm7525, %v7874, %v6827
    %v7876 = vsel %vm7527, %v7875, %v6831
    %v7877 = vsel %vm7529, %v7876, %v6835
    %v7878 = vsel %vm7531, %v7877, %v6839
    %v7879 = vsel %vm7533, %v7878, %v6843
    %v7880 = vsel %vm7535, %v7879, %v6847
    %v7881 = vsel %vm7537, %v7880, %v6851
    %v7882 = vsel %vm7539, %v7881, %v6855
    %v7883 = vsel %vm7541, %v7882, %v6859
    %v7884 = vsel %vm7543, %v7883, %v6863
    %v7885 = vsel %vm7545, %v7884, %v6867
    %v7886 = vsel %vm7547, %v7885, %v6871
    %v7887 = vsel %vm7549, %v7886, %v6875
    %v7888 = vsel %vm7551, %v7887, %v6879
    %v7889 = vsel %vm7553, %v7888, %v6883
    %v7890 = vsel %vm7555, %v7889, %v6887
    %v7891 = vsel %vm7557, %v7890, %v6891
    %v7892 = vsel %vm7559, %v7891, %v6895
    %v7893 = vsel %vm7561, %v7892, %v6899
    %v7894 = vsel %vm7563, %v7893, %v6903
    %v7895 = vsel %vm7565, %v7894, %v6907
    %v7896 = vsel %vm7567, %v7895, %v6911
    %v7897 = vsel %vm7569, %v7896, %v6915
    %v7898 = vsel %vm7571, %v7897, %v6919
    %v7899 = vsel %vm7573, %v7898, %v6923
    %v7900 = vsel %vm7575, %v7899, %v6927
    %v7901 = vsel %vm7577, %v7900, %v6931
    %v7902 = vsel %vm7579, %v7901, %v6935
    %v7903 = vsel %vm7581, %v7902, %v6939
    %v7904 = vsel %vm7583, %v7903, %v6943
    %v7905 = vsel %vm7585, %v7904, %v6947
    %v7906 = vsel %vm7587, %v7905, %v6951
    %v7907 = vsel %vm7589, %v7906, %v6955
    %v7908 = vsel %vm7591, %v7907, %v6959
    %v7909 = vsel %vm7593, %v7908, %v6963
    %v7910 = vsel %vm7469, %v4405, %v6967
    %v7911 = vsel %vm7471, %v7910, %v6971
    %v7912 = vsel %vm7473, %v7911, %v6975
    %v7913 = vsel %vm7475, %v7912, %v6979
    %v7914 = vsel %vm7477, %v7913, %v6983
    %v7915 = vsel %vm7479, %v7914, %v6987
    %v7916 = vsel %vm7481, %v7915, %v6991
    %v7917 = vsel %vm7483, %v7916, %v6995
    %v7918 = vsel %vm7485, %v7917, %v6999
    %v7919 = vsel %vm7487, %v7918, %v7003
    %v7920 = vsel %vm7489, %v7919, %v7007
    %v7921 = vsel %vm7491, %v7920, %v7011
    %v7922 = vsel %vm7493, %v7921, %v7015
    %v7923 = vsel %vm7495, %v7922, %v7019
    %v7924 = vsel %vm7497, %v7923, %v7023
    %v7925 = vsel %vm7499, %v7924, %v7027
    %v7926 = vsel %vm7501, %v7925, %v7031
    %v7927 = vsel %vm7503, %v7926, %v7035
    %v7928 = vsel %vm7505, %v7927, %v7039
    %v7929 = vsel %vm7507, %v7928, %v7043
    %v7930 = vsel %vm7509, %v7929, %v7047
    %v7931 = vsel %vm7511, %v7930, %v7051
    %v7932 = vsel %vm7513, %v7931, %v7055
    %v7933 = vsel %vm7515, %v7932, %v7059
    %v7934 = vsel %vm7517, %v7933, %v7063
    %v7935 = vsel %vm7519, %v7934, %v7067
    %v7936 = vsel %vm7521, %v7935, %v7071
    %v7937 = vsel %vm7523, %v7936, %v7075
    %v7938 = vsel %vm7525, %v7937, %v7079
    %v7939 = vsel %vm7527, %v7938, %v7083
    %v7940 = vsel %vm7529, %v7939, %v7087
    %v7941 = vsel %vm7531, %v7940, %v7091
    %v7942 = vsel %vm7533, %v7941, %v7095
    %v7943 = vsel %vm7535, %v7942, %v7099
    %v7944 = vsel %vm7537, %v7943, %v7103
    %v7945 = vsel %vm7539, %v7944, %v7107
    %v7946 = vsel %vm7541, %v7945, %v7111
    %v7947 = vsel %vm7543, %v7946, %v7115
    %v7948 = vsel %vm7545, %v7947, %v7119
    %v7949 = vsel %vm7547, %v7948, %v7123
    %v7950 = vsel %vm7549, %v7949, %v7127
    %v7951 = vsel %vm7551, %v7950, %v7131
    %v7952 = vsel %vm7553, %v7951, %v7135
    %v7953 = vsel %vm7555, %v7952, %v7139
    %v7954 = vsel %vm7557, %v7953, %v7143
    %v7955 = vsel %vm7559, %v7954, %v7147
    %v7956 = vsel %vm7561, %v7955, %v7151
    %v7957 = vsel %vm7563, %v7956, %v7155
    %v7958 = vsel %vm7565, %v7957, %v7159
    %v7959 = vsel %vm7567, %v7958, %v7163
    %v7960 = vsel %vm7569, %v7959, %v7167
    %v7961 = vsel %vm7571, %v7960, %v7171
    %v7962 = vsel %vm7573, %v7961, %v7175
    %v7963 = vsel %vm7575, %v7962, %v7179
    %v7964 = vsel %vm7577, %v7963, %v7183
    %v7965 = vsel %vm7579, %v7964, %v7187
    %v7966 = vsel %vm7581, %v7965, %v7191
    %v7967 = vsel %vm7583, %v7966, %v7195
    %v7968 = vsel %vm7585, %v7967, %v7199
    %v7969 = vsel %vm7587, %v7968, %v7203
    %v7970 = vsel %vm7589, %v7969, %v7207
    %v7971 = vsel %vm7591, %v7970, %v7211
    %v7972 = vsel %vm7593, %v7971, %v7215
    %v7973 = vsel %vm7469, %v4949, %v7219
    %v7974 = vsel %vm7471, %v7973, %v7223
    %v7975 = vsel %vm7473, %v7974, %v7227
    %v7976 = vsel %vm7475, %v7975, %v7231
    %v7977 = vsel %vm7477, %v7976, %v7235
    %v7978 = vsel %vm7479, %v7977, %v7239
    %v7979 = vsel %vm7481, %v7978, %v7243
    %v7980 = vsel %vm7483, %v7979, %v7247
    %v7981 = vsel %vm7485, %v7980, %v7251
    %v7982 = vsel %vm7487, %v7981, %v7255
    %v7983 = vsel %vm7489, %v7982, %v7259
    %v7984 = vsel %vm7491, %v7983, %v7263
    %v7985 = vsel %vm7493, %v7984, %v7267
    %v7986 = vsel %vm7495, %v7985, %v7271
    %v7987 = vsel %vm7497, %v7986, %v7275
    %v7988 = vsel %vm7499, %v7987, %v7279
    %v7989 = vsel %vm7501, %v7988, %v7283
    %v7990 = vsel %vm7503, %v7989, %v7287
    %v7991 = vsel %vm7505, %v7990, %v7291
    %v7992 = vsel %vm7507, %v7991, %v7295
    %v7993 = vsel %vm7509, %v7992, %v7299
    %v7994 = vsel %vm7511, %v7993, %v7303
    %v7995 = vsel %vm7513, %v7994, %v7307
    %v7996 = vsel %vm7515, %v7995, %v7311
    %v7997 = vsel %vm7517, %v7996, %v7315
    %v7998 = vsel %vm7519, %v7997, %v7319
    %v7999 = vsel %vm7521, %v7998, %v7323
    %v8000 = vsel %vm7523, %v7999, %v7327
    %v8001 = vsel %vm7525, %v8000, %v7331
    %v8002 = vsel %vm7527, %v8001, %v7335
    %v8003 = vsel %vm7529, %v8002, %v7339
    %v8004 = vsel %vm7531, %v8003, %v7343
    %v8005 = vsel %vm7533, %v8004, %v7347
    %v8006 = vsel %vm7535, %v8005, %v7351
    %v8007 = vsel %vm7537, %v8006, %v7355
    %v8008 = vsel %vm7539, %v8007, %v7359
    %v8009 = vsel %vm7541, %v8008, %v7363
    %v8010 = vsel %vm7543, %v8009, %v7367
    %v8011 = vsel %vm7545, %v8010, %v7371
    %v8012 = vsel %vm7547, %v8011, %v7375
    %v8013 = vsel %vm7549, %v8012, %v7379
    %v8014 = vsel %vm7551, %v8013, %v7383
    %v8015 = vsel %vm7553, %v8014, %v7387
    %v8016 = vsel %vm7555, %v8015, %v7391
    %v8017 = vsel %vm7557, %v8016, %v7395
    %v8018 = vsel %vm7559, %v8017, %v7399
    %v8019 = vsel %vm7561, %v8018, %v7403
    %v8020 = vsel %vm7563, %v8019, %v7407
    %v8021 = vsel %vm7565, %v8020, %v7411
    %v8022 = vsel %vm7567, %v8021, %v7415
    %v8023 = vsel %vm7569, %v8022, %v7419
    %v8024 = vsel %vm7571, %v8023, %v7423
    %v8025 = vsel %vm7573, %v8024, %v7427
    %v8026 = vsel %vm7575, %v8025, %v7431
    %v8027 = vsel %vm7577, %v8026, %v7435
    %v8028 = vsel %vm7579, %v8027, %v7439
    %v8029 = vsel %vm7581, %v8028, %v7443
    %v8030 = vsel %vm7583, %v8029, %v7447
    %v8031 = vsel %vm7585, %v8030, %v7451
    %v8032 = vsel %vm7587, %v8031, %v7455
    %v8033 = vsel %vm7589, %v8032, %v7459
    %v8034 = vsel %vm7591, %v8033, %v7463
    %v8035 = vsel %vm7593, %v8034, %v7467
    %v8044 = vcombine.low %v7594, %v7657
    %v8045 = vcombine.low %v7720, %v7783
    %v8046 = vcombine.low %v7846, %v7909
    %v8047 = vcombine.low %v7972, %v8035
    %8052 = vst [vmem:[#allocation5] sm:$0xff] %v8044
    %8053 = vst [vmem:[#allocation5 + $0x8] sm:$0xff] %v8045
    %8054 = vst [vmem:[#allocation5 + $0x10] sm:$0xff] %v8046
    %8055 = vst [vmem:[#allocation5 + $0x18] sm:$0xff] %v8047
    // Predicated region
    $region10: #{tpu_custom_call.1} parent=1 // pred_check
      _
    $region11: #{tpu_custom_call.1} parent=1 // pred_check_branch
      %8057 = sbr.rel (0) target = $region13
    $region12: #{tpu_custom_call.1} parent=1 // pred_region
      %s8059 = ssub.s32 512, 512
      %8060 = vsyncadd [#allocation4], %s8059
      %s8062 = sshll.u32 [#allocation5], 4
      %s8063 = int_to_ptr.vmem [resolvable:$true] %s8062
      %8065 = dma.vmem_to_hbm [thread:$0]  %s8063, 512, %s1, [#allocation4]
    $region13: #{tpu_custom_call.1} parent=1 // pred_fallthru
      _
    // Predicated region
    $region14: #{tpu_custom_call.1} parent=1 // pred_check
      _
    $region15: #{tpu_custom_call.1} parent=1 // pred_check_branch
      %8067 = sbr.rel (0) target = $region17
    $region16: #{tpu_custom_call.1} parent=1 // pred_region
      %8068 = dma.done [#allocation4], 512
    $region17: #{tpu_custom_call.1} parent=1 // pred_fallthru
      _
    %8069 = vsyncpa [#allocation3], 1
    %8070 = vsyncpa [#allocation4], 1

</llo_original>
